<compile_context>
chip_gen: v6e
topology: v6e:2x2x1
jax: 0.10.0
libtpu: 0.0.40
codegen_flags: <defaults>
</compile_context>

<pallas_src>
import jax
import jax.numpy as jnp
import numpy as np
from jax.experimental import pallas as pl
from jax.experimental.pallas import tpu as pltpu

LANE = 128                # feature dims padded to multiples of this (lane-dense stores)
DEFAULT_NODE_TILE = 512   # node-row / node-contraction tile for the large-graph path


# --------------------------------------------------------------------------- #
# Small helpers
# --------------------------------------------------------------------------- #
def _round_up(x, m):
    return ((x + m - 1) // m) * m


def _pad2(a, rows, cols, dtype=jnp.float32):
    a = jnp.asarray(a, jnp.float32)
    out = jnp.pad(a, ((0, rows - a.shape[0]), (0, cols - a.shape[1])))
    return out.astype(dtype)


def _vmem_budget_bytes():
    """Usable-VMEM estimate per TPU generation (~75% of physical)."""
    try:
        info = pltpu.get_tpu_info()
        cap = int(getattr(info, "vmem_capacity_bytes", 0) or 0)
        if cap > 0:
            return int(cap * 0.75)
    except Exception:
        pass
    return int(0.75 * 64 * 1024 * 1024)  # conservative fallback = v7x physical VMEM


# --------------------------------------------------------------------------- #
# Kernels
# --------------------------------------------------------------------------- #
def _fused_gcn_kernel(a_ref, x_ref, w1_ref, b1_ref, w2_ref, b2_ref, o_ref):
    """Whole forward with every operand VMEM-resident (small graphs, grid=())."""
    xw1 = jnp.dot(x_ref[...], w1_ref[...], preferred_element_type=jnp.float32)
    h = jnp.dot(a_ref[...], xw1.astype(jnp.bfloat16),
                preferred_element_type=jnp.float32)
    h = jnp.maximum(h + b1_ref[...], 0.0).astype(jnp.bfloat16)
    hw2 = jnp.dot(h, w2_ref[...], preferred_element_type=jnp.float32).astype(jnp.bfloat16)
    o_ref[...] = jnp.dot(a_ref[...], hw2, preferred_element_type=jnp.float32) + b2_ref[...]


def _xw_kernel(x_ref, w_ref, o_ref):
    """Per row-tile feature transform: XW = X @ W (bf16 in, f32 accum, bf16 out)."""
    o_ref[...] = jnp.dot(
        x_ref[...], w_ref[...], preferred_element_type=jnp.float32
    ).astype(o_ref.dtype)


def _make_prop1_kernel(resident_act, tk):
    """acc += A[i,k] @ XW1[k]; last k: H = relu(acc + b1); HW2 = H @ W2 (epilogue fused)."""

    def kernel(a_ref, xw1_ref, b1_ref, w2_ref, hw2_ref, acc_ref):
        k = pl.program_id(1)

        @pl.when(k == 0)
        def _():
            acc_ref[...] = jnp.zeros_like(acc_ref)

        if resident_act:
            start = pl.multiple_of(k * tk, tk)
            xw1_blk = xw1_ref[pl.ds(start, tk), :]
        else:
            xw1_blk = xw1_ref[...]
        acc_ref[...] += jnp.dot(a_ref[...], xw1_blk, preferred_element_type=jnp.float32)

        @pl.when(k == pl.num_programs(1) - 1)
        def _():
            h = jnp.maximum(acc_ref[...] + b1_ref[...], 0.0).astype(w2_ref.dtype)
            hw2_ref[...] = jnp.dot(
                h, w2_ref[...], preferred_element_type=jnp.float32
            ).astype(hw2_ref.dtype)

    return kernel


def _make_prop2_kernel(resident_act, tk):
    """acc += A[i,k] @ HW2[k]; last k: Out = acc + b2."""

    def kernel(a_ref, hw2_ref, b2_ref, o_ref, acc_ref):
        k = pl.program_id(1)

        @pl.when(k == 0)
        def _():
            acc_ref[...] = jnp.zeros_like(acc_ref)

        if resident_act:
            start = pl.multiple_of(k * tk, tk)
            hw2_blk = hw2_ref[pl.ds(start, tk), :]
        else:
            hw2_blk = hw2_ref[...]
        acc_ref[...] += jnp.dot(a_ref[...], hw2_blk, preferred_element_type=jnp.float32)

        @pl.when(k == pl.num_programs(1) - 1)
        def _():
            o_ref[...] = (acc_ref[...] + b2_ref[...]).astype(o_ref.dtype)

    return kernel


# --------------------------------------------------------------------------- #
# One-time preparation (graph + parameters are static across forwards)
# --------------------------------------------------------------------------- #
def prepare_gcn(adj_norm, w1, b1, w2, b2, *, node_tile=DEFAULT_NODE_TILE):
    """Pad + bf16-cast the static operands once (hoisted out of the forward)."""
    n = adj_norm.shape[0]
    f_in, hidden = w1.shape
    c_out = w2.shape[1]

    n_p = _round_up(n, node_tile)
    f_p = _round_up(f_in, LANE)
    h_p = _round_up(hidden, LANE)
    c_p = _round_up(c_out, LANE)

    # Row/contraction tile for the tiled path; keep >= 2 row tiles so v7x's two
    # TensorCores both get work on the "parallel" axis.
    tm = node_tile
    while tm > 256 and (n_p // tm) < 2:
        tm //= 2
    tk = tm
    assert n_p % tm == 0 and n_p % tk == 0

    return {
        "a_bf": _pad2(adj_norm, n_p, n_p, jnp.bfloat16),
        "w1_bf": _pad2(w1, f_p, h_p, jnp.bfloat16),
        "w2_bf": _pad2(w2, h_p, c_p, jnp.bfloat16),
        "b1_p": _pad2(jnp.reshape(jnp.asarray(b1), (1, -1)), 1, h_p, jnp.float32),
        "b2_p": _pad2(jnp.reshape(jnp.asarray(b2), (1, -1)), 1, c_p, jnp.float32),
        "dims": (n, f_in, hidden, c_out),
        "pads": (n_p, f_p, h_p, c_p),
        "tiles": (tm, tk),
    }


# --------------------------------------------------------------------------- #
# Forward
# --------------------------------------------------------------------------- #
def gcn_encoder_forward(prep, x, *, force_path=None, activation_budget_bytes=None):
    n, f_in, hidden, c_out = prep["dims"]
    n_p, f_p, h_p, c_p = prep["pads"]
    tm, tk = prep["tiles"]
    a_bf, w1_bf, w2_bf = prep["a_bf"], prep["w1_bf"], prep["w2_bf"]
    b1_p, b2_p = prep["b1_p"], prep["b2_p"]

    assert x.shape == (n, f_in)
    x_bf = _pad2(x, n_p, f_p, jnp.bfloat16)   # cheap (N x F) relative to the N x N graph

    budget = _vmem_budget_bytes()
    vmem_limit = budget

    # ---------------- Small-graph fast path: one fully-resident kernel -------
    fused_bytes = (
        a_bf.size * 2 + x_bf.size * 2 + w1_bf.size * 2 + w2_bf.size * 2
        + (b1_p.size + b2_p.size) * 4
        + n_p * c_p * 4                      # output block
        + n_p * h_p * 12 + n_p * c_p * 10    # generous f32/bf16 intermediate estimate
    )
    use_fused = (force_path == "fused") or (force_path is None and fused_bytes <= budget // 2)

    if use_fused:
        out_p = pl.pallas_call(
            _fused_gcn_kernel,
            out_shape=jax.ShapeDtypeStruct((n_p, c_p), jnp.float32),
            in_specs=[
                pl.BlockSpec((n_p, n_p), lambda: (0, 0)),
                pl.BlockSpec((n_p, f_p), lambda: (0, 0)),
                pl.BlockSpec((f_p, h_p), lambda: (0, 0)),
                pl.BlockSpec((1, h_p), lambda: (0, 0)),
                pl.BlockSpec((h_p, c_p), lambda: (0, 0)),
                pl.BlockSpec((1, c_p), lambda: (0, 0)),
            ],
            out_specs=pl.BlockSpec((n_p, c_p), lambda: (0, 0)),
            compiler_params=pltpu.CompilerParams(vmem_limit_bytes=vmem_limit),
            cost_estimate=pl.CostEstimate(
                flops=2 * n_p * f_p * h_p + 2 * n_p * n_p * h_p
                + 2 * n_p * h_p * c_p + 2 * n_p * n_p * c_p,
                transcendentals=0,
                bytes_accessed=2 * (a_bf.size + x_bf.size + w1_bf.size + w2_bf.size)
                + 4 * (b1_p.size + b2_p.size) + 4 * n_p * c_p,
            ),
        )(a_bf, x_bf, w1_bf, b1_p, w2_bf, b2_p)
        return out_p[:n, :c_out]

    # ---------------- Large-graph tiled path ---------------------------------
    gi = n_p // tm
    gk = n_p // tk

    cparams_1d = pltpu.CompilerParams(
        dimension_semantics=("parallel",), vmem_limit_bytes=vmem_limit)
    cparams_2d = pltpu.CompilerParams(
        dimension_semantics=("parallel", "arbitrary"), vmem_limit_bytes=vmem_limit)

    # Stage 1: XW1 = X @ W1 (computed once, streamed by the propagation).
    xw1 = pl.pallas_call(
        _xw_kernel,
        out_shape=jax.ShapeDtypeStruct((n_p, h_p), jnp.bfloat16),
        grid=(gi,),
        in_specs=[
            pl.BlockSpec((tm, f_p), lambda i: (i, 0)),
            pl.BlockSpec((f_p, h_p), lambda i: (0, 0)),      # W1 resident
        ],
        out_specs=pl.BlockSpec((tm, h_p), lambda i: (i, 0)),
        compiler_params=cparams_1d,
        cost_estimate=pl.CostEstimate(
            flops=2 * n_p * f_p * h_p, transcendentals=0,
            bytes_accessed=2 * (n_p * f_p + f_p * h_p + n_p * h_p)),
    )(x_bf, w1_bf)

    # Hold XW1 / HW2 fully VMEM-resident when they fit the per-gen budget
    # (removes the gi-fold re-read from HBM); otherwise stream k-panels.
    if activation_budget_bytes is None:
        activation_budget_bytes = budget // 2   # headroom for A tiles, acc, outputs
    a_tile_bytes = 2 * (tm * tk * 2)            # double-buffered A row-panel tiles
    xw1_resident = (
        a_tile_bytes + 2 * n_p * h_p * 2 + 2 * h_p * c_p * 2
        + 2 * tm * c_p * 2 + tm * h_p * 4 + h_p * 4
    ) <= activation_budget_bytes
    hw2_resident = (
        a_tile_bytes + 2 * n_p * c_p * 2
        + 2 * tm * c_p * 4 + tm * c_p * 4 + c_p * 4
    ) <= activation_budget_bytes

    xw1_spec = (pl.BlockSpec((n_p, h_p), lambda i, k: (0, 0)) if xw1_resident
                else pl.BlockSpec((tk, h_p), lambda i, k: (k, 0)))
    hw2_spec = (pl.BlockSpec((n_p, c_p), lambda i, k: (0, 0)) if hw2_resident
                else pl.BlockSpec((tk, c_p), lambda i, k: (k, 0)))

    xw1_read_bytes = n_p * h_p * 2 * (1 if xw1_resident else gi)
    hw2_read_bytes = n_p * c_p * 2 * (1 if hw2_resident else gi)

    # Stage 2: HW2 = relu(A_hat @ XW1 + b1) @ W2  (ReLU + W2 epilogue-fused).
    hw2 = pl.pallas_call(
        _make_prop1_kernel(xw1_resident, tk),
        out_shape=jax.ShapeDtypeStruct((n_p, c_p), jnp.bfloat16),
        grid=(gi, gk),
        in_specs=[
            pl.BlockSpec((tm, tk), lambda i, k: (i, k)),      # A_hat streamed once
            xw1_spec,
            pl.BlockSpec((1, h_p), lambda i, k: (0, 0)),      # b1 resident
            pl.BlockSpec((h_p, c_p), lambda i, k: (0, 0)),    # W2 resident
        ],
        out_specs=pl.BlockSpec((tm, c_p), lambda i, k: (i, 0)),
        scratch_shapes=[pltpu.VMEM((tm, h_p), jnp.float32)],
        compiler_params=cparams_2d,
        cost_estimate=pl.CostEstimate(
            flops=2 * n_p * n_p * h_p + 2 * n_p * h_p * c_p,
            transcendentals=0,
            bytes_accessed=n_p * n_p * 2 + xw1_read_bytes
            + h_p * 4 + h_p * c_p * 2 + n_p * c_p * 2,
        ),
    )(a_bf, xw1, b1_p, w2_bf)

    # Stage 3: Out = A_hat @ HW2 + b2.
    out_p = pl.pallas_call(
        _make_prop2_kernel(hw2_resident, tk),
        out_shape=jax.ShapeDtypeStruct((n_p, c_p), jnp.float32),
        grid=(gi, gk),
        in_specs=[
            pl.BlockSpec((tm, tk), lambda i, k: (i, k)),
            hw2_spec,
            pl.BlockSpec((1, c_p), lambda i, k: (0, 0)),
        ],
        out_specs=pl.BlockSpec((tm, c_p), lambda i, k: (i, 0)),
        scratch_shapes=[pltpu.VMEM((tm, c_p), jnp.float32)],
        compiler_params=cparams_2d,
        cost_estimate=pl.CostEstimate(
            flops=2 * n_p * n_p * c_p, transcendentals=0,
            bytes_accessed=n_p * n_p * 2 + hw2_read_bytes + c_p * 4 + n_p * c_p * 4),
    )(a_bf, hw2, b2_p)

    # Padded rows/cols carry bias-only garbage by construction; always slice.
    return out_p[:n, :c_out]


# --------------------------------------------------------------------------- #
# Host-side graph normalization + reference
# --------------------------------------------------------------------------- #
def build_normalized_adjacency(edge_index, num_nodes):
    """Dense GCN-normalized adjacency: D^{-1/2} (A + I) D^{-1/2}."""
    a = np.zeros((num_nodes, num_nodes), dtype=np.float32)
    src, dst = edge_index
    a[src, dst] = 1.0
    a = a + np.eye(num_nodes, dtype=np.float32)  # self-loops
    deg = a.sum(axis=1)
    d_inv_sqrt = np.where(deg > 0, 1.0 / np.sqrt(deg), 0.0)
    return (d_inv_sqrt[:, None] * a) * d_inv_sqrt[None, :]


def reference_forward(adj_norm, x, w1, b1, w2, b2):
    """Pure-JAX reference mirroring the kernels' bf16-operand / f32-accumulate path."""
    a = adj_norm.astype(jnp.bfloat16)
    xw1 = jnp.dot(x.astype(jnp.bfloat16), w1.astype(jnp.bfloat16),
                  preferred_element_type=jnp.float32).astype(jnp.bfloat16)
    h = jnp.maximum(jnp.dot(a, xw1, preferred_element_type=jnp.float32) + b1, 0.0)
    hw2 = jnp.dot(h.astype(jnp.bfloat16), w2.astype(jnp.bfloat16),
                  preferred_element_type=jnp.float32).astype(jnp.bfloat16)
    return jnp.dot(a, hw2, preferred_element_type=jnp.float32) + b2


# --------------------------------------------------------------------------- #
# Demo / correctness check
# --------------------------------------------------------------------------- #
if __name__ == "__main__":
    num_nodes = 500               # deliberately not a multiple of the tile -> tests padding
    in_channels = 64
    out_channels = 100            # matches the original module's out_channels
    hidden = 2 * out_channels

    # Deterministic graph: ring + chord edges, undirected (both directions).
    idx = np.arange(num_nodes)
    ring = np.stack([idx, (idx + 1) % num_nodes])
    chord = np.stack([idx, (idx + 7) % num_nodes])
    fwd = np.concatenate([ring, chord], axis=1)
    edge_index = np.concatenate([fwd, fwd[::-1]], axis=1)   # (2, 4N)

    adj_norm = jnp.asarray(build_normalized_adjacency(edge_index, num_nodes))

    key = jax.random.PRNGKey(0)
    kx, kw1, kw2, kb1, kb2 = jax.random.split(key, 5)
    x = jax.random.normal(kx, (num_nodes, in_channels), dtype=jnp.float32)

    s1 = float(np.sqrt(6.0 / (in_channels + hidden)))
    s2 = float(np.sqrt(6.0 / (hidden + out_channels)))
    w1 = jax.random.uniform(kw1, (in_channels, hidden), jnp.float32, -s1, s1)
    b1 = 0.1 * jax.random.normal(kb1, (hidden,), jnp.float32)
    w2 = jax.random.uniform(kw2, (hidden, out_channels), jnp.float32, -s2, s2)
    b2 = 0.1 * jax.random.normal(kb2, (out_channels,), jnp.float32)

    # One-time prep: pad + bf16 cast of the static graph + parameters.
    prep = prepare_gcn(adj_norm, w1, b1, w2, b2)

    ref = np.asarray(reference_forward(adj_norm, x, w1, b1, w2, b2), dtype=np.float32)

    # 1) auto path (fused fully-resident single kernel at this size).
    out_fused = jax.block_until_ready(gcn_encoder_forward(prep, x))
    np.testing.assert_allclose(np.asarray(out_fused), ref, rtol=1e-2, atol=1e-2)

    # 2) large-graph tiled path, auto activation residency.
    out_tiled = jax.block_until_ready(gcn_encoder_forward(prep, x, force_path="tiled"))
    np.testing.assert_allclose(np.asarray(out_tiled), ref, rtol=1e-2, atol=1e-2)

    # 3) large-graph tiled path with streamed activation k-panels (VMEM-tight fallback).
    out_stream = jax.block_until_ready(
        gcn_encoder_forward(prep, x, force_path="tiled", activation_budget_bytes=0))
    np.testing.assert_allclose(np.asarray(out_stream), ref, rtol=1e-2, atol=1e-2)

    print("KERNEL_OK")
</pallas_src>

<mosaic_0001>
module attributes {stable_mosaic.version = 11 : i64} {
  func.func @_fused_gcn_kernel(%arg0: memref<512x512xbf16, #tpu.memory_space<vmem>>, %arg1: memref<512x128xbf16, #tpu.memory_space<vmem>>, %arg2: memref<128x256xbf16, #tpu.memory_space<vmem>>, %arg3: memref<1x256xf32, #tpu.memory_space<vmem>>, %arg4: memref<256x128xbf16, #tpu.memory_space<vmem>>, %arg5: memref<1x128xf32, #tpu.memory_space<vmem>>, %arg6: memref<512x128xf32, #tpu.memory_space<vmem>>) attributes {dimension_semantics = [], scalar_prefetch = 0 : i64, scratch_operands = 0 : i64, tpu.core_type = #tpu.core_type<tc>} {
    %c0 = arith.constant 0 : index
    %c0_0 = arith.constant 0 : index
    %0 = vector.load %arg1[%c0, %c0_0] : memref<512x128xbf16, #tpu.memory_space<vmem>>, vector<512x128xbf16>
    %c0_1 = arith.constant 0 : index
    %c0_2 = arith.constant 0 : index
    %1 = vector.load %arg2[%c0_1, %c0_2] : memref<128x256xbf16, #tpu.memory_space<vmem>>, vector<128x256xbf16>
    %cst = arith.constant dense<0.000000e+00> : vector<512x256xf32>
    %2 = tpu.matmul %0, %1, %cst {dimension_numbers = #tpu.dot_dimension_numbers<[1], [0], [0], [1], [0, 0, 1, 1], [], []>} : vector<512x128xbf16>, vector<128x256xbf16>, vector<512x256xf32> -> vector<512x256xf32>
    %c0_3 = arith.constant 0 : index
    %c0_4 = arith.constant 0 : index
    %3 = vector.load %arg0[%c0_3, %c0_4] : memref<512x512xbf16, #tpu.memory_space<vmem>>, vector<512x512xbf16>
    %4 = arith.truncf %2 : vector<512x256xf32> to vector<512x256xbf16>
    %cst_5 = arith.constant dense<0.000000e+00> : vector<512x256xf32>
    %5 = tpu.matmul %3, %4, %cst_5 {dimension_numbers = #tpu.dot_dimension_numbers<[1], [0], [0], [1], [0, 0, 1, 1], [], []>} : vector<512x512xbf16>, vector<512x256xbf16>, vector<512x256xf32> -> vector<512x256xf32>
    %c0_6 = arith.constant 0 : index
    %c0_7 = arith.constant 0 : index
    %6 = vector.load %arg3[%c0_6, %c0_7] : memref<1x256xf32, #tpu.memory_space<vmem>>, vector<1x256xf32>
    %7 = vector.broadcast %6 : vector<1x256xf32> to vector<512x256xf32>
    %8 = arith.addf %5, %7 : vector<512x256xf32>
    %cst_8 = arith.constant 0.000000e+00 : f32
    %9 = vector.broadcast %cst_8 : f32 to vector<512x256xf32>
    %10 = arith.maximumf %8, %9 : vector<512x256xf32>
    %11 = arith.truncf %10 : vector<512x256xf32> to vector<512x256xbf16>
    %c0_9 = arith.constant 0 : index
    %c0_10 = arith.constant 0 : index
    %12 = vector.load %arg4[%c0_9, %c0_10] : memref<256x128xbf16, #tpu.memory_space<vmem>>, vector<256x128xbf16>
    %cst_11 = arith.constant dense<0.000000e+00> : vector<512x128xf32>
    %13 = tpu.matmul %11, %12, %cst_11 {dimension_numbers = #tpu.dot_dimension_numbers<[1], [0], [0], [1], [0, 0, 1, 1], [], []>} : vector<512x256xbf16>, vector<256x128xbf16>, vector<512x128xf32> -> vector<512x128xf32>
    %14 = arith.truncf %13 : vector<512x128xf32> to vector<512x128xbf16>
    %c0_12 = arith.constant 0 : index
    %c0_13 = arith.constant 0 : index
    %15 = vector.load %arg0[%c0_12, %c0_13] : memref<512x512xbf16, #tpu.memory_space<vmem>>, vector<512x512xbf16>
    %cst_14 = arith.constant dense<0.000000e+00> : vector<512x128xf32>
    %16 = tpu.matmul %15, %14, %cst_14 {dimension_numbers = #tpu.dot_dimension_numbers<[1], [0], [0], [1], [0, 0, 1, 1], [], []>} : vector<512x512xbf16>, vector<512x128xbf16>, vector<512x128xf32> -> vector<512x128xf32>
    %c0_15 = arith.constant 0 : index
    %c0_16 = arith.constant 0 : index
    %17 = vector.load %arg5[%c0_15, %c0_16] : memref<1x128xf32, #tpu.memory_space<vmem>>, vector<1x128xf32>
    %18 = vector.broadcast %17 : vector<1x128xf32> to vector<512x128xf32>
    %19 = arith.addf %16, %18 : vector<512x128xf32>
    %c0_17 = arith.constant 0 : index
    %c0_18 = arith.constant 0 : index
    %20 = vector.load %arg6[%c0_17, %c0_18] : memref<512x128xf32, #tpu.memory_space<vmem>>, vector<512x128xf32>
    tpu.vector_store %arg6[%c0_17, %c0_18], %19 {strides = array<i32>} : memref<512x128xf32, #tpu.memory_space<vmem>>, vector<512x128xf32>,
    return
  }
}

</mosaic_0001>

<llo_original>
// kernel: tpu_custom_call.1
$region0: #{tpu_custom_call.1}
  #allocation0 [shape = 'u32[]', space=smem, size = 0x4, offset = 0x4, fixed_abs, tag = 'smem constant byte address 0x4 - core index']
  #allocation1 [shape = 'u32[144,128]{1,0:T(1,128)}', space=vmem, size = 0x12000, scoped, tag = 'internal scratch']
  %s0 = inlined_call_operand.hbm [shape: bf16[512,512], index: 0, kind: input, shape index: {}]
  %s1 = inlined_call_operand.hbm [shape: bf16[512,128], index: 1, kind: input, shape index: {}]
  %s2 = inlined_call_operand.hbm [shape: bf16[128,256], index: 2, kind: input, shape index: {}]
  %s3 = inlined_call_operand.vmem [shape: f32[1,256], index: 3, kind: input, shape index: {}]
  %s4 = inlined_call_operand.hbm [shape: bf16[256,128], index: 4, kind: input, shape index: {}]
  %s5 = inlined_call_operand.vmem [shape: f32[1,128], index: 5, kind: input, shape index: {}]
  %s6 = inlined_call_operand.hbm [shape: f32[512,128], index: 6, kind: output, shape index: {}]
  %s7 = sld [smem:[#allocation0]]
  $region50: #{tpu_custom_call.1} parent=0
    _
  %s9 = ssub.s32 1, %s7
  %s10 = scalar_select 0, %s9, %s7
  $region1: #{tpu_custom_call.1} parent=0
    #allocation2 [shape = 'u8[524288]{0}', space=vmem, size = 0x80000, scoped, tag = 'input window, operand 0, single buffered']
    #allocation3 [shape = 's32[1]{0}', space=sflag, size = 0x4, scoped, tag = 'scoped memory for tpu_custom_call.1']
    #allocation4 [shape = 's32[1]{0}', space=sflag, size = 0x4, scoped, tag = 'scoped memory for tpu_custom_call.1']
    #allocation5 [shape = 'u8[131072]{0}', space=vmem, size = 0x20000, scoped, tag = 'input window, operand 1, single buffered']
    #allocation6 [shape = 's32[1]{0}', space=sflag, size = 0x4, scoped, tag = 'scoped memory for tpu_custom_call.1']
    #allocation7 [shape = 'u8[65536]{0}', space=vmem, size = 0x10000, scoped, tag = 'input window, operand 2, single buffered']
    #allocation8 [shape = 'u8[65536]{0}', space=vmem, size = 0x10000, scoped, tag = 'input window, operand 4, single buffered']
    #allocation9 [shape = 's32[1]{0}', space=sflag, size = 0x4, scoped, tag = 'scoped memory for tpu_custom_call.1']
    #allocation10 [shape = 'u8[262144]{0}', space=vmem, size = 0x40000, scoped, tag = 'output window, operand 0, single buffered']
    %11 = vsyncpa [#allocation3], 0
    %12 = vsyncpa [#allocation6], 0
    %13 = vsyncpa [#allocation9], 0
    %14 = vsyncpa [#allocation4], 0
    // Predicated region
    $region2: #{tpu_custom_call.1} parent=1 // pred_check
      _
    $region3: #{tpu_custom_call.1} parent=1 // pred_check_branch
      %16 = sbr.rel (0) target = $region5
    $region4: #{tpu_custom_call.1} parent=1 // pred_region
      %s18 = ssub.s32 16384, 16384
      %19 = vsyncadd [#allocation3], %s18
      %s20 = sshll.u32 [#allocation2], 4
      %s21 = int_to_ptr.vmem [resolvable:$true] %s20
      %26 = dma.hbm_to_vmem [thread:$0]  %s0, 16384, %s21, [#allocation3], 256, 256, 16
    $region5: #{tpu_custom_call.1} parent=1 // pred_fallthru
      _
    // Predicated region
    $region6: #{tpu_custom_call.1} parent=1 // pred_check
      _
    $region7: #{tpu_custom_call.1} parent=1 // pred_check_branch
      %28 = sbr.rel (0) target = $region9
    $region8: #{tpu_custom_call.1} parent=1 // pred_region
      %s30 = ssub.s32 4096, 4096
      %31 = vsyncadd [#allocation6], %s30
      %s32 = sshll.u32 [#allocation5], 4
      %s33 = int_to_ptr.vmem [resolvable:$true] %s32
      %38 = dma.hbm_to_vmem [thread:$0]  %s1, 4096, %s33, [#allocation6], 64, 64, 4
    $region9: #{tpu_custom_call.1} parent=1 // pred_fallthru
      _
    // Predicated region
    $region10: #{tpu_custom_call.1} parent=1 // pred_check
      _
    $region11: #{tpu_custom_call.1} parent=1 // pred_check_branch
      %40 = sbr.rel (0) target = $region13
    $region12: #{tpu_custom_call.1} parent=1 // pred_region
      %s42 = ssub.s32 2048, 2048
      %43 = vsyncadd [#allocation6], %s42
      %s44 = sshll.u32 [#allocation7], 4
      %s45 = int_to_ptr.vmem [resolvable:$true] %s44
      %50 = dma.hbm_to_vmem [thread:$0]  %s2, 2048, %s45, [#allocation6], 128, 128, 8
    $region13: #{tpu_custom_call.1} parent=1 // pred_fallthru
      _
    // Predicated region
    $region14: #{tpu_custom_call.1} parent=1 // pred_check
      _
    $region15: #{tpu_custom_call.1} parent=1 // pred_check_branch
      %52 = sbr.rel (0) target = $region17
    $region16: #{tpu_custom_call.1} parent=1 // pred_region
      _
    $region17: #{tpu_custom_call.1} parent=1 // pred_fallthru
      _
    // Predicated region
    $region18: #{tpu_custom_call.1} parent=1 // pred_check
      _
    $region19: #{tpu_custom_call.1} parent=1 // pred_check_branch
      %54 = sbr.rel (0) target = $region21
    $region20: #{tpu_custom_call.1} parent=1 // pred_region
      %s56 = ssub.s32 2048, 2048
      %57 = vsyncadd [#allocation9], %s56
      %s58 = sshll.u32 [#allocation8], 4
      %s59 = int_to_ptr.vmem [resolvable:$true] %s58
      %64 = dma.hbm_to_vmem [thread:$0]  %s4, 2048, %s59, [#allocation9], 64, 64, 4
    $region21: #{tpu_custom_call.1} parent=1 // pred_fallthru
      _
    // Predicated region
    $region22: #{tpu_custom_call.1} parent=1 // pred_check
      _
    $region23: #{tpu_custom_call.1} parent=1 // pred_check_branch
      %66 = sbr.rel (0) target = $region25
    $region24: #{tpu_custom_call.1} parent=1 // pred_region
      _
    $region25: #{tpu_custom_call.1} parent=1 // pred_fallthru
      _
    // Predicated region
    $region26: #{tpu_custom_call.1} parent=1 // pred_check
      _
    $region27: #{tpu_custom_call.1} parent=1 // pred_check_branch
      %68 = sbr.rel (0) target = $region29
    $region28: #{tpu_custom_call.1} parent=1 // pred_region
      %69 = dma.done [#allocation3], 16384
    $region29: #{tpu_custom_call.1} parent=1 // pred_fallthru
      _
    // Predicated region
    $region30: #{tpu_custom_call.1} parent=1 // pred_check
      _
    $region31: #{tpu_custom_call.1} parent=1 // pred_check_branch
      %71 = sbr.rel (0) target = $region33
    $region32: #{tpu_custom_call.1} parent=1 // pred_region
      %72 = dma.done [#allocation6], 4096
    $region33: #{tpu_custom_call.1} parent=1 // pred_fallthru
      _
    // Predicated region
    $region34: #{tpu_custom_call.1} parent=1 // pred_check
      _
    $region35: #{tpu_custom_call.1} parent=1 // pred_check_branch
      %74 = sbr.rel (0) target = $region37
    $region36: #{tpu_custom_call.1} parent=1 // pred_region
      %75 = dma.done [#allocation6], 2048
    $region37: #{tpu_custom_call.1} parent=1 // pred_fallthru
      _
    // Predicated region
    $region38: #{tpu_custom_call.1} parent=1 // pred_check
      _
    $region39: #{tpu_custom_call.1} parent=1 // pred_check_branch
      %77 = sbr.rel (0) target = $region41
    $region40: #{tpu_custom_call.1} parent=1 // pred_region
      %78 = dma.done [#allocation9], 2048
    $region41: #{tpu_custom_call.1} parent=1 // pred_fallthru
      _
    %v80 = vld [vmem:[#allocation5] sm:$0xf]
    %v81 = vld [vmem:[#allocation5 + $0x4] sm:$0xf]
    %v82 = vld [vmem:[#allocation5 + $0x8] sm:$0xf]
    %v83 = vld [vmem:[#allocation5 + $0xc] sm:$0xf]
    %v84 = vld [vmem:[#allocation5 + $0x10] sm:$0xf]
    %v85 = vld [vmem:[#allocation5 + $0x14] sm:$0xf]
    %v86 = vld [vmem:[#allocation5 + $0x18] sm:$0xf]
    %v87 = vld [vmem:[#allocation5 + $0x1c] sm:$0xf]
    %v88 = vld [vmem:[#allocation5 + $0x20] sm:$0xf]
    %v89 = vld [vmem:[#allocation5 + $0x24] sm:$0xf]
    %v90 = vld [vmem:[#allocation5 + $0x28] sm:$0xf]
    %v91 = vld [vmem:[#allocation5 + $0x2c] sm:$0xf]
    %v92 = vld [vmem:[#allocation5 + $0x30] sm:$0xf]
    %v93 = vld [vmem:[#allocation5 + $0x34] sm:$0xf]
    %v94 = vld [vmem:[#allocation5 + $0x38] sm:$0xf]
    %v95 = vld [vmem:[#allocation5 + $0x3c] sm:$0xf]
    %v96 = vld [vmem:[#allocation5 + $0x40] sm:$0xf]
    %v97 = vld [vmem:[#allocation5 + $0x44] sm:$0xf]
    %v98 = vld [vmem:[#allocation5 + $0x48] sm:$0xf]
    %v99 = vld [vmem:[#allocation5 + $0x4c] sm:$0xf]
    %v100 = vld [vmem:[#allocation5 + $0x50] sm:$0xf]
    %v101 = vld [vmem:[#allocation5 + $0x54] sm:$0xf]
    %v102 = vld [vmem:[#allocation5 + $0x58] sm:$0xf]
    %v103 = vld [vmem:[#allocation5 + $0x5c] sm:$0xf]
    %v104 = vld [vmem:[#allocation5 + $0x60] sm:$0xf]
    %v105 = vld [vmem:[#allocation5 + $0x64] sm:$0xf]
    %v106 = vld [vmem:[#allocation5 + $0x68] sm:$0xf]
    %v107 = vld [vmem:[#allocation5 + $0x6c] sm:$0xf]
    %v108 = vld [vmem:[#allocation5 + $0x70] sm:$0xf]
    %v109 = vld [vmem:[#allocation5 + $0x74] sm:$0xf]
    %v110 = vld [vmem:[#allocation5 + $0x78] sm:$0xf]
    %v111 = vld [vmem:[#allocation5 + $0x7c] sm:$0xf]
    %v112 = vld [vmem:[#allocation5 + $0x80] sm:$0xf]
    %v113 = vld [vmem:[#allocation5 + $0x84] sm:$0xf]
    %v114 = vld [vmem:[#allocation5 + $0x88] sm:$0xf]
    %v115 = vld [vmem:[#allocation5 + $0x8c] sm:$0xf]
    %v116 = vld [vmem:[#allocation5 + $0x90] sm:$0xf]
    %v117 = vld [vmem:[#allocation5 + $0x94] sm:$0xf]
    %v118 = vld [vmem:[#allocation5 + $0x98] sm:$0xf]
    %v119 = vld [vmem:[#allocation5 + $0x9c] sm:$0xf]
    %v120 = vld [vmem:[#allocation5 + $0xa0] sm:$0xf]
    %v121 = vld [vmem:[#allocation5 + $0xa4] sm:$0xf]
    %v122 = vld [vmem:[#allocation5 + $0xa8] sm:$0xf]
    %v123 = vld [vmem:[#allocation5 + $0xac] sm:$0xf]
    %v124 = vld [vmem:[#allocation5 + $0xb0] sm:$0xf]
    %v125 = vld [vmem:[#allocation5 + $0xb4] sm:$0xf]
    %v126 = vld [vmem:[#allocation5 + $0xb8] sm:$0xf]
    %v127 = vld [vmem:[#allocation5 + $0xbc] sm:$0xf]
    %v128 = vld [vmem:[#allocation5 + $0xc0] sm:$0xf]
    %v129 = vld [vmem:[#allocation5 + $0xc4] sm:$0xf]
    %v130 = vld [vmem:[#allocation5 + $0xc8] sm:$0xf]
    %v131 = vld [vmem:[#allocation5 + $0xcc] sm:$0xf]
    %v132 = vld [vmem:[#allocation5 + $0xd0] sm:$0xf]
    %v133 = vld [vmem:[#allocation5 + $0xd4] sm:$0xf]
    %v134 = vld [vmem:[#allocation5 + $0xd8] sm:$0xf]
    %v135 = vld [vmem:[#allocation5 + $0xdc] sm:$0xf]
    %v136 = vld [vmem:[#allocation5 + $0xe0] sm:$0xf]
    %v137 = vld [vmem:[#allocation5 + $0xe4] sm:$0xf]
    %v138 = vld [vmem:[#allocation5 + $0xe8] sm:$0xf]
    %v139 = vld [vmem:[#allocation5 + $0xec] sm:$0xf]
    %v140 = vld [vmem:[#allocation5 + $0xf0] sm:$0xf]
    %v141 = vld [vmem:[#allocation5 + $0xf4] sm:$0xf]
    %v142 = vld [vmem:[#allocation5 + $0xf8] sm:$0xf]
    %v143 = vld [vmem:[#allocation5 + $0xfc] sm:$0xf]
    %v144 = vld [vmem:[#allocation7] sm:$0xff]
    %v145 = vld [vmem:[#allocation7 + $0x8] sm:$0xff]
    %v146 = vld [vmem:[#allocation7 + $0x10] sm:$0xff]
    %v147 = vld [vmem:[#allocation7 + $0x18] sm:$0xff]
    %v148 = vld [vmem:[#allocation7 + $0x20] sm:$0xff]
    %v149 = vld [vmem:[#allocation7 + $0x28] sm:$0xff]
    %v150 = vld [vmem:[#allocation7 + $0x30] sm:$0xff]
    %v151 = vld [vmem:[#allocation7 + $0x38] sm:$0xff]
    %v152 = vld [vmem:[#allocation7 + $0x40] sm:$0xff]
    %v153 = vld [vmem:[#allocation7 + $0x48] sm:$0xff]
    %v154 = vld [vmem:[#allocation7 + $0x50] sm:$0xff]
    %v155 = vld [vmem:[#allocation7 + $0x58] sm:$0xff]
    %v156 = vld [vmem:[#allocation7 + $0x60] sm:$0xff]
    %v157 = vld [vmem:[#allocation7 + $0x68] sm:$0xff]
    %v158 = vld [vmem:[#allocation7 + $0x70] sm:$0xff]
    %v159 = vld [vmem:[#allocation7 + $0x78] sm:$0xff]
    %v224 = vunpack.c.l.b16 %v80
    %v225 = vunpack.c.l.b16 %v81
    %v226 = vunpack.c.l.b16 %v82
    %v227 = vunpack.c.l.b16 %v83
    %v228 = vunpack.c.l.b16 %v84
    %v229 = vunpack.c.l.b16 %v85
    %v230 = vunpack.c.l.b16 %v86
    %v231 = vunpack.c.l.b16 %v87
    %v232 = vunpack.c.l.b16 %v88
    %v233 = vunpack.c.l.b16 %v89
    %v234 = vunpack.c.l.b16 %v90
    %v235 = vunpack.c.l.b16 %v91
    %v236 = vunpack.c.l.b16 %v92
    %v237 = vunpack.c.l.b16 %v93
    %v238 = vunpack.c.l.b16 %v94
    %v239 = vunpack.c.l.b16 %v95
    %v240 = vunpack.c.l.b16 %v96
    %v241 = vunpack.c.l.b16 %v97
    %v242 = vunpack.c.l.b16 %v98
    %v243 = vunpack.c.l.b16 %v99
    %v244 = vunpack.c.l.b16 %v100
    %v245 = vunpack.c.l.b16 %v101
    %v246 = vunpack.c.l.b16 %v102
    %v247 = vunpack.c.l.b16 %v103
    %v248 = vunpack.c.l.b16 %v104
    %v249 = vunpack.c.l.b16 %v105
    %v250 = vunpack.c.l.b16 %v106
    %v251 = vunpack.c.l.b16 %v107
    %v252 = vunpack.c.l.b16 %v108
    %v253 = vunpack.c.l.b16 %v109
    %v254 = vunpack.c.l.b16 %v110
    %v255 = vunpack.c.l.b16 %v111
    %v256 = vunpack.c.l.b16 %v112
    %v257 = vunpack.c.l.b16 %v113
    %v258 = vunpack.c.l.b16 %v114
    %v259 = vunpack.c.l.b16 %v115
    %v260 = vunpack.c.l.b16 %v116
    %v261 = vunpack.c.l.b16 %v117
    %v262 = vunpack.c.l.b16 %v118
    %v263 = vunpack.c.l.b16 %v119
    %v264 = vunpack.c.l.b16 %v120
    %v265 = vunpack.c.l.b16 %v121
    %v266 = vunpack.c.l.b16 %v122
    %v267 = vunpack.c.l.b16 %v123
    %v268 = vunpack.c.l.b16 %v124
    %v269 = vunpack.c.l.b16 %v125
    %v270 = vunpack.c.l.b16 %v126
    %v271 = vunpack.c.l.b16 %v127
    %v272 = vunpack.c.l.b16 %v128
    %v273 = vunpack.c.l.b16 %v129
    %v274 = vunpack.c.l.b16 %v130
    %v275 = vunpack.c.l.b16 %v131
    %v276 = vunpack.c.l.b16 %v132
    %v277 = vunpack.c.l.b16 %v133
    %v278 = vunpack.c.l.b16 %v134
    %v279 = vunpack.c.l.b16 %v135
    %v280 = vunpack.c.l.b16 %v136
    %v281 = vunpack.c.l.b16 %v137
    %v282 = vunpack.c.l.b16 %v138
    %v283 = vunpack.c.l.b16 %v139
    %v284 = vunpack.c.l.b16 %v140
    %v285 = vunpack.c.l.b16 %v141
    %v286 = vunpack.c.l.b16 %v142
    %v287 = vunpack.c.l.b16 %v143
    %v288 = vpack.c.b16 %v225, %v224
    %v289 = vpack.c.b16 %v227, %v226
    %v290 = vpack.c.b16 %v229, %v228
    %v291 = vpack.c.b16 %v231, %v230
    %v292 = vpack.c.b16 %v233, %v232
    %v293 = vpack.c.b16 %v235, %v234
    %v294 = vpack.c.b16 %v237, %v236
    %v295 = vpack.c.b16 %v239, %v238
    %v296 = vpack.c.b16 %v241, %v240
    %v297 = vpack.c.b16 %v243, %v242
    %v298 = vpack.c.b16 %v245, %v244
    %v299 = vpack.c.b16 %v247, %v246
    %v300 = vpack.c.b16 %v249, %v248
    %v301 = vpack.c.b16 %v251, %v250
    %v302 = vpack.c.b16 %v253, %v252
    %v303 = vpack.c.b16 %v255, %v254
    %v304 = vpack.c.b16 %v257, %v256
    %v305 = vpack.c.b16 %v259, %v258
    %v306 = vpack.c.b16 %v261, %v260
    %v307 = vpack.c.b16 %v263, %v262
    %v308 = vpack.c.b16 %v265, %v264
    %v309 = vpack.c.b16 %v267, %v266
    %v310 = vpack.c.b16 %v269, %v268
    %v311 = vpack.c.b16 %v271, %v270
    %v312 = vpack.c.b16 %v273, %v272
    %v313 = vpack.c.b16 %v275, %v274
    %v314 = vpack.c.b16 %v277, %v276
    %v315 = vpack.c.b16 %v279, %v278
    %v316 = vpack.c.b16 %v281, %v280
    %v317 = vpack.c.b16 %v283, %v282
    %v318 = vpack.c.b16 %v285, %v284
    %v319 = vpack.c.b16 %v287, %v286
    %v368 = vunpack.c.l.b16 %v144
    %v369 = vunpack.c.h.b16 %v144
    %v370 = vunpack.c.l.b16 %v145
    %v371 = vunpack.c.h.b16 %v145
    %v372 = vunpack.c.l.b16 %v146
    %v373 = vunpack.c.h.b16 %v146
    %v374 = vunpack.c.l.b16 %v147
    %v375 = vunpack.c.h.b16 %v147
    %v376 = vunpack.c.l.b16 %v148
    %v377 = vunpack.c.h.b16 %v148
    %v378 = vunpack.c.l.b16 %v149
    %v379 = vunpack.c.h.b16 %v149
    %v380 = vunpack.c.l.b16 %v150
    %v381 = vunpack.c.h.b16 %v150
    %v382 = vunpack.c.l.b16 %v151
    %v383 = vunpack.c.h.b16 %v151
    %v384 = vunpack.c.l.b16 %v152
    %v385 = vunpack.c.h.b16 %v152
    %v386 = vunpack.c.l.b16 %v153
    %v387 = vunpack.c.h.b16 %v153
    %v388 = vunpack.c.l.b16 %v154
    %v389 = vunpack.c.h.b16 %v154
    %v390 = vunpack.c.l.b16 %v155
    %v391 = vunpack.c.h.b16 %v155
    %v392 = vunpack.c.l.b16 %v156
    %v393 = vunpack.c.h.b16 %v156
    %v394 = vunpack.c.l.b16 %v157
    %v395 = vunpack.c.h.b16 %v157
    %v396 = vunpack.c.l.b16 %v158
    %v397 = vunpack.c.h.b16 %v158
    %v398 = vunpack.c.l.b16 %v159
    %v399 = vunpack.c.h.b16 %v159
    %v400 = vpack.c.b16 %v370, %v368
    %v401 = vpack.c.b16 %v371, %v369
    %v402 = vpack.c.b16 %v374, %v372
    %v403 = vpack.c.b16 %v375, %v373
    %v404 = vpack.c.b16 %v378, %v376
    %v405 = vpack.c.b16 %v379, %v377
    %v406 = vpack.c.b16 %v382, %v380
    %v407 = vpack.c.b16 %v383, %v381
    %v408 = vpack.c.b16 %v386, %v384
    %v409 = vpack.c.b16 %v387, %v385
    %v410 = vpack.c.b16 %v390, %v388
    %v411 = vpack.c.b16 %v391, %v389
    %v412 = vpack.c.b16 %v394, %v392
    %v413 = vpack.c.b16 %v395, %v393
    %v414 = vpack.c.b16 %v398, %v396
    %v415 = vpack.c.b16 %v399, %v397
    %432 = vmatprep.subr.bf16.mxu0 %v415
    %433 = vmatpush1.bf16.msra.mxu0 %v414
    %434 = vmatprep.subr.bf16.mxu0 %v413
    %435 = vmatpush1.bf16.msra.mxu0 %v412
    %436 = vmatprep.subr.bf16.mxu0 %v411
    %437 = vmatpush1.bf16.msra.mxu0 %v410
    %438 = vmatprep.subr.bf16.mxu0 %v409
    %439 = vmatpush1.bf16.msra.mxu0 %v408
    %440 = vmatprep.subr.bf16.mxu0 %v407
    %441 = vmatpush1.bf16.msra.mxu0 %v406
    %442 = vmatprep.subr.bf16.mxu0 %v405
    %443 = vmatpush1.bf16.msra.mxu0 %v404
    %444 = vmatprep.subr.bf16.mxu0 %v403
    %445 = vmatpush1.bf16.msra.mxu0 %v402
    %446 = vmatprep.subr.bf16.mxu0 %v401
    %447 = vmatpush1.bf16.msra.mxu0 %v400
    %448 = vmatprep.subr.bf16.mxu0 0
    %449 = vmatpush2.bf16.msra.mxu0 0
    %450 = vmatprep.subr.bf16.mxu0 0
    %451 = vmatpush2.bf16.msra.mxu0 0
    %452 = vmatprep.subr.bf16.mxu0 0
    %453 = vmatpush2.bf16.msra.mxu0 0
    %454 = vmatprep.subr.bf16.mxu0 0
    %455 = vmatpush2.bf16.msra.mxu0 0
    %456 = vmatprep.subr.bf16.mxu0 0
    %457 = vmatpush2.bf16.msra.mxu0 0
    %458 = vmatprep.subr.bf16.mxu0 0
    %459 = vmatpush2.bf16.msra.mxu0 0
    %460 = vmatprep.subr.bf16.mxu0 0
    %461 = vmatpush2.bf16.msra.mxu0 0
    %462 = vmatprep.subr.bf16.mxu0 0
    %463 = vmatpush2.bf16.msra.mxu0 0
    %464 = vmatprep.mubr.bf16.mxu0 0
    %465 = vmatmul.mubr.bf16.gmra.mxu0 %v288
    %v466 = vpop.f32.mrf.mxu0
    %v467 = vadd.f32 0.0, %v466
    %v468 = vpop.f32.mrf.mxu0
    %v469 = vadd.f32 0.0, %v468
    %v470 = vpop.f32.mrf.mxu0
    %v471 = vadd.f32 0.0, %v470
    %v472 = vpop.f32.mrf.mxu0
    %v473 = vadd.f32 0.0, %v472
    %474 = vmatprep.mubr.bf16.mxu0 0
    %475 = vmatmul.mubr.bf16.gmra.mxu0 %v289
    %v476 = vpop.f32.mrf.mxu0
    %v477 = vadd.f32 0.0, %v476
    %v478 = vpop.f32.mrf.mxu0
    %v479 = vadd.f32 0.0, %v478
    %v480 = vpop.f32.mrf.mxu0
    %v481 = vadd.f32 0.0, %v480
    %v482 = vpop.f32.mrf.mxu0
    %v483 = vadd.f32 0.0, %v482
    %484 = vmatprep.mubr.bf16.mxu0 0
    %485 = vmatmul.mubr.bf16.gmra.mxu0 %v290
    %v486 = vpop.f32.mrf.mxu0
    %v487 = vadd.f32 0.0, %v486
    %v488 = vpop.f32.mrf.mxu0
    %v489 = vadd.f32 0.0, %v488
    %v490 = vpop.f32.mrf.mxu0
    %v491 = vadd.f32 0.0, %v490
    %v492 = vpop.f32.mrf.mxu0
    %v493 = vadd.f32 0.0, %v492
    %494 = vmatprep.mubr.bf16.mxu0 0
    %495 = vmatmul.mubr.bf16.gmra.mxu0 %v291
    %v496 = vpop.f32.mrf.mxu0
    %v497 = vadd.f32 0.0, %v496
    %v498 = vpop.f32.mrf.mxu0
    %v499 = vadd.f32 0.0, %v498
    %v500 = vpop.f32.mrf.mxu0
    %v501 = vadd.f32 0.0, %v500
    %v502 = vpop.f32.mrf.mxu0
    %v503 = vadd.f32 0.0, %v502
    %504 = vmatprep.mubr.bf16.mxu0 0
    %505 = vmatmul.mubr.bf16.gmra.mxu0 %v292
    %v506 = vpop.f32.mrf.mxu0
    %v507 = vadd.f32 0.0, %v506
    %v508 = vpop.f32.mrf.mxu0
    %v509 = vadd.f32 0.0, %v508
    %v510 = vpop.f32.mrf.mxu0
    %v511 = vadd.f32 0.0, %v510
    %v512 = vpop.f32.mrf.mxu0
    %v513 = vadd.f32 0.0, %v512
    %514 = vmatprep.mubr.bf16.mxu0 0
    %515 = vmatmul.mubr.bf16.gmra.mxu0 %v293
    %v516 = vpop.f32.mrf.mxu0
    %v517 = vadd.f32 0.0, %v516
    %v518 = vpop.f32.mrf.mxu0
    %v519 = vadd.f32 0.0, %v518
    %v520 = vpop.f32.mrf.mxu0
    %v521 = vadd.f32 0.0, %v520
    %v522 = vpop.f32.mrf.mxu0
    %v523 = vadd.f32 0.0, %v522
    %524 = vmatprep.mubr.bf16.mxu0 0
    %525 = vmatmul.mubr.bf16.gmra.mxu0 %v294
    %v526 = vpop.f32.mrf.mxu0
    %v527 = vadd.f32 0.0, %v526
    %v528 = vpop.f32.mrf.mxu0
    %v529 = vadd.f32 0.0, %v528
    %v530 = vpop.f32.mrf.mxu0
    %v531 = vadd.f32 0.0, %v530
    %v532 = vpop.f32.mrf.mxu0
    %v533 = vadd.f32 0.0, %v532
    %534 = vmatprep.mubr.bf16.mxu0 0
    %535 = vmatmul.mubr.bf16.gmra.mxu0 %v295
    %v536 = vpop.f32.mrf.mxu0
    %v537 = vadd.f32 0.0, %v536
    %v538 = vpop.f32.mrf.mxu0
    %v539 = vadd.f32 0.0, %v538
    %v540 = vpop.f32.mrf.mxu0
    %v541 = vadd.f32 0.0, %v540
    %v542 = vpop.f32.mrf.mxu0
    %v543 = vadd.f32 0.0, %v542
    %544 = vmatprep.mubr.bf16.mxu0 0
    %545 = vmatmul.mubr.bf16.gmra.mxu0 %v296
    %v546 = vpop.f32.mrf.mxu0
    %v547 = vadd.f32 0.0, %v546
    %v548 = vpop.f32.mrf.mxu0
    %v549 = vadd.f32 0.0, %v548
    %v550 = vpop.f32.mrf.mxu0
    %v551 = vadd.f32 0.0, %v550
    %v552 = vpop.f32.mrf.mxu0
    %v553 = vadd.f32 0.0, %v552
    %554 = vmatprep.mubr.bf16.mxu0 0
    %555 = vmatmul.mubr.bf16.gmra.mxu0 %v297
    %v556 = vpop.f32.mrf.mxu0
    %v557 = vadd.f32 0.0, %v556
    %v558 = vpop.f32.mrf.mxu0
    %v559 = vadd.f32 0.0, %v558
    %v560 = vpop.f32.mrf.mxu0
    %v561 = vadd.f32 0.0, %v560
    %v562 = vpop.f32.mrf.mxu0
    %v563 = vadd.f32 0.0, %v562
    %564 = vmatprep.mubr.bf16.mxu0 0
    %565 = vmatmul.mubr.bf16.gmra.mxu0 %v298
    %v566 = vpop.f32.mrf.mxu0
    %v567 = vadd.f32 0.0, %v566
    %v568 = vpop.f32.mrf.mxu0
    %v569 = vadd.f32 0.0, %v568
    %v570 = vpop.f32.mrf.mxu0
    %v571 = vadd.f32 0.0, %v570
    %v572 = vpop.f32.mrf.mxu0
    %v573 = vadd.f32 0.0, %v572
    %574 = vmatprep.mubr.bf16.mxu0 0
    %575 = vmatmul.mubr.bf16.gmra.mxu0 %v299
    %v576 = vpop.f32.mrf.mxu0
    %v577 = vadd.f32 0.0, %v576
    %v578 = vpop.f32.mrf.mxu0
    %v579 = vadd.f32 0.0, %v578
    %v580 = vpop.f32.mrf.mxu0
    %v581 = vadd.f32 0.0, %v580
    %v582 = vpop.f32.mrf.mxu0
    %v583 = vadd.f32 0.0, %v582
    %584 = vmatprep.mubr.bf16.mxu0 0
    %585 = vmatmul.mubr.bf16.gmra.mxu0 %v300
    %v586 = vpop.f32.mrf.mxu0
    %v587 = vadd.f32 0.0, %v586
    %v588 = vpop.f32.mrf.mxu0
    %v589 = vadd.f32 0.0, %v588
    %v590 = vpop.f32.mrf.mxu0
    %v591 = vadd.f32 0.0, %v590
    %v592 = vpop.f32.mrf.mxu0
    %v593 = vadd.f32 0.0, %v592
    %594 = vmatprep.mubr.bf16.mxu0 0
    %595 = vmatmul.mubr.bf16.gmra.mxu0 %v301
    %v596 = vpop.f32.mrf.mxu0
    %v597 = vadd.f32 0.0, %v596
    %v598 = vpop.f32.mrf.mxu0
    %v599 = vadd.f32 0.0, %v598
    %v600 = vpop.f32.mrf.mxu0
    %v601 = vadd.f32 0.0, %v600
    %v602 = vpop.f32.mrf.mxu0
    %v603 = vadd.f32 0.0, %v602
    %604 = vmatprep.mubr.bf16.mxu0 0
    %605 = vmatmul.mubr.bf16.gmra.mxu0 %v302
    %v606 = vpop.f32.mrf.mxu0
    %v607 = vadd.f32 0.0, %v606
    %v608 = vpop.f32.mrf.mxu0
    %v609 = vadd.f32 0.0, %v608
    %v610 = vpop.f32.mrf.mxu0
    %v611 = vadd.f32 0.0, %v610
    %v612 = vpop.f32.mrf.mxu0
    %v613 = vadd.f32 0.0, %v612
    %614 = vmatprep.mubr.bf16.mxu0 0
    %615 = vmatmul.mubr.bf16.gmra.mxu0 %v303
    %v616 = vpop.f32.mrf.mxu0
    %v617 = vadd.f32 0.0, %v616
    %v618 = vpop.f32.mrf.mxu0
    %v619 = vadd.f32 0.0, %v618
    %v620 = vpop.f32.mrf.mxu0
    %v621 = vadd.f32 0.0, %v620
    %v622 = vpop.f32.mrf.mxu0
    %v623 = vadd.f32 0.0, %v622
    %624 = vmatprep.mubr.bf16.mxu0 0
    %625 = vmatmul.mubr.bf16.gmra.mxu0 %v304
    %v626 = vpop.f32.mrf.mxu0
    %v627 = vadd.f32 0.0, %v626
    %v628 = vpop.f32.mrf.mxu0
    %v629 = vadd.f32 0.0, %v628
    %v630 = vpop.f32.mrf.mxu0
    %v631 = vadd.f32 0.0, %v630
    %v632 = vpop.f32.mrf.mxu0
    %v633 = vadd.f32 0.0, %v632
    %634 = vmatprep.mubr.bf16.mxu0 0
    %635 = vmatmul.mubr.bf16.gmra.mxu0 %v305
    %v636 = vpop.f32.mrf.mxu0
    %v637 = vadd.f32 0.0, %v636
    %v638 = vpop.f32.mrf.mxu0
    %v639 = vadd.f32 0.0, %v638
    %v640 = vpop.f32.mrf.mxu0
    %v641 = vadd.f32 0.0, %v640
    %v642 = vpop.f32.mrf.mxu0
    %v643 = vadd.f32 0.0, %v642
    %644 = vmatprep.mubr.bf16.mxu0 0
    %645 = vmatmul.mubr.bf16.gmra.mxu0 %v306
    %v646 = vpop.f32.mrf.mxu0
    %v647 = vadd.f32 0.0, %v646
    %v648 = vpop.f32.mrf.mxu0
    %v649 = vadd.f32 0.0, %v648
    %v650 = vpop.f32.mrf.mxu0
    %v651 = vadd.f32 0.0, %v650
    %v652 = vpop.f32.mrf.mxu0
    %v653 = vadd.f32 0.0, %v652
    %654 = vmatprep.mubr.bf16.mxu0 0
    %655 = vmatmul.mubr.bf16.gmra.mxu0 %v307
    %v656 = vpop.f32.mrf.mxu0
    %v657 = vadd.f32 0.0, %v656
    %v658 = vpop.f32.mrf.mxu0
    %v659 = vadd.f32 0.0, %v658
    %v660 = vpop.f32.mrf.mxu0
    %v661 = vadd.f32 0.0, %v660
    %v662 = vpop.f32.mrf.mxu0
    %v663 = vadd.f32 0.0, %v662
    %664 = vmatprep.mubr.bf16.mxu0 0
    %665 = vmatmul.mubr.bf16.gmra.mxu0 %v308
    %v666 = vpop.f32.mrf.mxu0
    %v667 = vadd.f32 0.0, %v666
    %v668 = vpop.f32.mrf.mxu0
    %v669 = vadd.f32 0.0, %v668
    %v670 = vpop.f32.mrf.mxu0
    %v671 = vadd.f32 0.0, %v670
    %v672 = vpop.f32.mrf.mxu0
    %v673 = vadd.f32 0.0, %v672
    %674 = vmatprep.mubr.bf16.mxu0 0
    %675 = vmatmul.mubr.bf16.gmra.mxu0 %v309
    %v676 = vpop.f32.mrf.mxu0
    %v677 = vadd.f32 0.0, %v676
    %v678 = vpop.f32.mrf.mxu0
    %v679 = vadd.f32 0.0, %v678
    %v680 = vpop.f32.mrf.mxu0
    %v681 = vadd.f32 0.0, %v680
    %v682 = vpop.f32.mrf.mxu0
    %v683 = vadd.f32 0.0, %v682
    %684 = vmatprep.mubr.bf16.mxu0 0
    %685 = vmatmul.mubr.bf16.gmra.mxu0 %v310
    %v686 = vpop.f32.mrf.mxu0
    %v687 = vadd.f32 0.0, %v686
    %v688 = vpop.f32.mrf.mxu0
    %v689 = vadd.f32 0.0, %v688
    %v690 = vpop.f32.mrf.mxu0
    %v691 = vadd.f32 0.0, %v690
    %v692 = vpop.f32.mrf.mxu0
    %v693 = vadd.f32 0.0, %v692
    %694 = vmatprep.mubr.bf16.mxu0 0
    %695 = vmatmul.mubr.bf16.gmra.mxu0 %v311
    %v696 = vpop.f32.mrf.mxu0
    %v697 = vadd.f32 0.0, %v696
    %v698 = vpop.f32.mrf.mxu0
    %v699 = vadd.f32 0.0, %v698
    %v700 = vpop.f32.mrf.mxu0
    %v701 = vadd.f32 0.0, %v700
    %v702 = vpop.f32.mrf.mxu0
    %v703 = vadd.f32 0.0, %v702
    %704 = vmatprep.mubr.bf16.mxu0 0
    %705 = vmatmul.mubr.bf16.gmra.mxu0 %v312
    %v706 = vpop.f32.mrf.mxu0
    %v707 = vadd.f32 0.0, %v706
    %v708 = vpop.f32.mrf.mxu0
    %v709 = vadd.f32 0.0, %v708
    %v710 = vpop.f32.mrf.mxu0
    %v711 = vadd.f32 0.0, %v710
    %v712 = vpop.f32.mrf.mxu0
    %v713 = vadd.f32 0.0, %v712
    %714 = vmatprep.mubr.bf16.mxu0 0
    %715 = vmatmul.mubr.bf16.gmra.mxu0 %v313
    %v716 = vpop.f32.mrf.mxu0
    %v717 = vadd.f32 0.0, %v716
    %v718 = vpop.f32.mrf.mxu0
    %v719 = vadd.f32 0.0, %v718
    %v720 = vpop.f32.mrf.mxu0
    %v721 = vadd.f32 0.0, %v720
    %v722 = vpop.f32.mrf.mxu0
    %v723 = vadd.f32 0.0, %v722
    %724 = vmatprep.mubr.bf16.mxu0 0
    %725 = vmatmul.mubr.bf16.gmra.mxu0 %v314
    %v726 = vpop.f32.mrf.mxu0
    %v727 = vadd.f32 0.0, %v726
    %v728 = vpop.f32.mrf.mxu0
    %v729 = vadd.f32 0.0, %v728
    %v730 = vpop.f32.mrf.mxu0
    %v731 = vadd.f32 0.0, %v730
    %v732 = vpop.f32.mrf.mxu0
    %v733 = vadd.f32 0.0, %v732
    %734 = vmatprep.mubr.bf16.mxu0 0
    %735 = vmatmul.mubr.bf16.gmra.mxu0 %v315
    %v736 = vpop.f32.mrf.mxu0
    %v737 = vadd.f32 0.0, %v736
    %v738 = vpop.f32.mrf.mxu0
    %v739 = vadd.f32 0.0, %v738
    %v740 = vpop.f32.mrf.mxu0
    %v741 = vadd.f32 0.0, %v740
    %v742 = vpop.f32.mrf.mxu0
    %v743 = vadd.f32 0.0, %v742
    %744 = vmatprep.mubr.bf16.mxu0 0
    %745 = vmatmul.mubr.bf16.gmra.mxu0 %v316
    %v746 = vpop.f32.mrf.mxu0
    %v747 = vadd.f32 0.0, %v746
    %v748 = vpop.f32.mrf.mxu0
    %v749 = vadd.f32 0.0, %v748
    %v750 = vpop.f32.mrf.mxu0
    %v751 = vadd.f32 0.0, %v750
    %v752 = vpop.f32.mrf.mxu0
    %v753 = vadd.f32 0.0, %v752
    %754 = vmatprep.mubr.bf16.mxu0 0
    %755 = vmatmul.mubr.bf16.gmra.mxu0 %v317
    %v756 = vpop.f32.mrf.mxu0
    %v757 = vadd.f32 0.0, %v756
    %v758 = vpop.f32.mrf.mxu0
    %v759 = vadd.f32 0.0, %v758
    %v760 = vpop.f32.mrf.mxu0
    %v761 = vadd.f32 0.0, %v760
    %v762 = vpop.f32.mrf.mxu0
    %v763 = vadd.f32 0.0, %v762
    %764 = vmatprep.mubr.bf16.mxu0 0
    %765 = vmatmul.mubr.bf16.gmra.mxu0 %v318
    %v766 = vpop.f32.mrf.mxu0
    %v767 = vadd.f32 0.0, %v766
    %v768 = vpop.f32.mrf.mxu0
    %v769 = vadd.f32 0.0, %v768
    %v770 = vpop.f32.mrf.mxu0
    %v771 = vadd.f32 0.0, %v770
    %v772 = vpop.f32.mrf.mxu0
    %v773 = vadd.f32 0.0, %v772
    %774 = vmatprep.mubr.bf16.mxu0 0
    %775 = vmatmul.mubr.bf16.gmra.mxu0 %v319
    %v776 = vpop.f32.mrf.mxu0
    %v777 = vadd.f32 0.0, %v776
    %v778 = vpop.f32.mrf.mxu0
    %v779 = vadd.f32 0.0, %v778
    %v780 = vpop.f32.mrf.mxu0
    %v781 = vadd.f32 0.0, %v780
    %v782 = vpop.f32.mrf.mxu0
    %v783 = vadd.f32 0.0, %v782
    %784 = vdwg.mxu0
    %v785 = vld [vmem:[#allocation2] sm:$0xff]
    %v786 = vld [vmem:[#allocation2 + $0x8] sm:$0xff]
    %v787 = vld [vmem:[#allocation2 + $0x10] sm:$0xff]
    %v788 = vld [vmem:[#allocation2 + $0x18] sm:$0xff]
    %v789 = vld [vmem:[#allocation2 + $0x20] sm:$0xff]
    %v790 = vld [vmem:[#allocation2 + $0x28] sm:$0xff]
    %v791 = vld [vmem:[#allocation2 + $0x30] sm:$0xff]
    %v792 = vld [vmem:[#allocation2 + $0x38] sm:$0xff]
    %v793 = vld [vmem:[#allocation2 + $0x40] sm:$0xff]
    %v794 = vld [vmem:[#allocation2 + $0x48] sm:$0xff]
    %v795 = vld [vmem:[#allocation2 + $0x50] sm:$0xff]
    %v796 = vld [vmem:[#allocation2 + $0x58] sm:$0xff]
    %v797 = vld [vmem:[#allocation2 + $0x60] sm:$0xff]
    %v798 = vld [vmem:[#allocation2 + $0x68] sm:$0xff]
    %v799 = vld [vmem:[#allocation2 + $0x70] sm:$0xff]
    %v800 = vld [vmem:[#allocation2 + $0x78] sm:$0xff]
    %v801 = vld [vmem:[#allocation2 + $0x80] sm:$0xff]
    %v802 = vld [vmem:[#allocation2 + $0x88] sm:$0xff]
    %v803 = vld [vmem:[#allocation2 + $0x90] sm:$0xff]
    %v804 = vld [vmem:[#allocation2 + $0x98] sm:$0xff]
    %v805 = vld [vmem:[#allocation2 + $0xa0] sm:$0xff]
    %v806 = vld [vmem:[#allocation2 + $0xa8] sm:$0xff]
    %v807 = vld [vmem:[#allocation2 + $0xb0] sm:$0xff]
    %v808 = vld [vmem:[#allocation2 + $0xb8] sm:$0xff]
    %v809 = vld [vmem:[#allocation2 + $0xc0] sm:$0xff]
    %v810 = vld [vmem:[#allocation2 + $0xc8] sm:$0xff]
    %v811 = vld [vmem:[#allocation2 + $0xd0] sm:$0xff]
    %v812 = vld [vmem:[#allocation2 + $0xd8] sm:$0xff]
    %v813 = vld [vmem:[#allocation2 + $0xe0] sm:$0xff]
    %v814 = vld [vmem:[#allocation2 + $0xe8] sm:$0xff]
    %v815 = vld [vmem:[#allocation2 + $0xf0] sm:$0xff]
    %v816 = vld [vmem:[#allocation2 + $0xf8] sm:$0xff]
    %v817 = vld [vmem:[#allocation2 + $0x100] sm:$0xff]
    %v818 = vld [vmem:[#allocation2 + $0x108] sm:$0xff]
    %v819 = vld [vmem:[#allocation2 + $0x110] sm:$0xff]
    %v820 = vld [vmem:[#allocation2 + $0x118] sm:$0xff]
    %v821 = vld [vmem:[#allocation2 + $0x120] sm:$0xff]
    %v822 = vld [vmem:[#allocation2 + $0x128] sm:$0xff]
    %v823 = vld [vmem:[#allocation2 + $0x130] sm:$0xff]
    %v824 = vld [vmem:[#allocation2 + $0x138] sm:$0xff]
    %v825 = vld [vmem:[#allocation2 + $0x140] sm:$0xff]
    %v826 = vld [vmem:[#allocation2 + $0x148] sm:$0xff]
    %v827 = vld [vmem:[#allocation2 + $0x150] sm:$0xff]
    %v828 = vld [vmem:[#allocation2 + $0x158] sm:$0xff]
    %v829 = vld [vmem:[#allocation2 + $0x160] sm:$0xff]
    %v830 = vld [vmem:[#allocation2 + $0x168] sm:$0xff]
    %v831 = vld [vmem:[#allocation2 + $0x170] sm:$0xff]
    %v832 = vld [vmem:[#allocation2 + $0x178] sm:$0xff]
    %v833 = vld [vmem:[#allocation2 + $0x180] sm:$0xff]
    %v834 = vld [vmem:[#allocation2 + $0x188] sm:$0xff]
    %v835 = vld [vmem:[#allocation2 + $0x190] sm:$0xff]
    %v836 = vld [vmem:[#allocation2 + $0x198] sm:$0xff]
    %v837 = vld [vmem:[#allocation2 + $0x1a0] sm:$0xff]
    %v838 = vld [vmem:[#allocation2 + $0x1a8] sm:$0xff]
    %v839 = vld [vmem:[#allocation2 + $0x1b0] sm:$0xff]
    %v840 = vld [vmem:[#allocation2 + $0x1b8] sm:$0xff]
    %v841 = vld [vmem:[#allocation2 + $0x1c0] sm:$0xff]
    %v842 = vld [vmem:[#allocation2 + $0x1c8] sm:$0xff]
    %v843 = vld [vmem:[#allocation2 + $0x1d0] sm:$0xff]
    %v844 = vld [vmem:[#allocation2 + $0x1d8] sm:$0xff]
    %v845 = vld [vmem:[#allocation2 + $0x1e0] sm:$0xff]
    %v846 = vld [vmem:[#allocation2 + $0x1e8] sm:$0xff]
    %v847 = vld [vmem:[#allocation2 + $0x1f0] sm:$0xff]
    %v848 = vld [vmem:[#allocation2 + $0x1f8] sm:$0xff]
    %v849 = vld [vmem:[#allocation2 + $0x200] sm:$0xff]
    %v850 = vld [vmem:[#allocation2 + $0x208] sm:$0xff]
    %v851 = vld [vmem:[#allocation2 + $0x210] sm:$0xff]
    %v852 = vld [vmem:[#allocation2 + $0x218] sm:$0xff]
    %v853 = vld [vmem:[#allocation2 + $0x220] sm:$0xff]
    %v854 = vld [vmem:[#allocation2 + $0x228] sm:$0xff]
    %v855 = vld [vmem:[#allocation2 + $0x230] sm:$0xff]
    %v856 = vld [vmem:[#allocation2 + $0x238] sm:$0xff]
    %v857 = vld [vmem:[#allocation2 + $0x240] sm:$0xff]
    %v858 = vld [vmem:[#allocation2 + $0x248] sm:$0xff]
    %v859 = vld [vmem:[#allocation2 + $0x250] sm:$0xff]
    %v860 = vld [vmem:[#allocation2 + $0x258] sm:$0xff]
    %v861 = vld [vmem:[#allocation2 + $0x260] sm:$0xff]
    %v862 = vld [vmem:[#allocation2 + $0x268] sm:$0xff]
    %v863 = vld [vmem:[#allocation2 + $0x270] sm:$0xff]
    %v864 = vld [vmem:[#allocation2 + $0x278] sm:$0xff]
    %v865 = vld [vmem:[#allocation2 + $0x280] sm:$0xff]
    %v866 = vld [vmem:[#allocation2 + $0x288] sm:$0xff]
    %v867 = vld [vmem:[#allocation2 + $0x290] sm:$0xff]
    %v868 = vld [vmem:[#allocation2 + $0x298] sm:$0xff]
    %v869 = vld [vmem:[#allocation2 + $0x2a0] sm:$0xff]
    %v870 = vld [vmem:[#allocation2 + $0x2a8] sm:$0xff]
    %v871 = vld [vmem:[#allocation2 + $0x2b0] sm:$0xff]
    %v872 = vld [vmem:[#allocation2 + $0x2b8] sm:$0xff]
    %v873 = vld [vmem:[#allocation2 + $0x2c0] sm:$0xff]
    %v874 = vld [vmem:[#allocation2 + $0x2c8] sm:$0xff]
    %v875 = vld [vmem:[#allocation2 + $0x2d0] sm:$0xff]
    %v876 = vld [vmem:[#allocation2 + $0x2d8] sm:$0xff]
    %v877 = vld [vmem:[#allocation2 + $0x2e0] sm:$0xff]
    %v878 = vld [vmem:[#allocation2 + $0x2e8] sm:$0xff]
    %v879 = vld [vmem:[#allocation2 + $0x2f0] sm:$0xff]
    %v880 = vld [vmem:[#allocation2 + $0x2f8] sm:$0xff]
    %v881 = vld [vmem:[#allocation2 + $0x300] sm:$0xff]
    %v882 = vld [vmem:[#allocation2 + $0x308] sm:$0xff]
    %v883 = vld [vmem:[#allocation2 + $0x310] sm:$0xff]
    %v884 = vld [vmem:[#allocation2 + $0x318] sm:$0xff]
    %v885 = vld [vmem:[#allocation2 + $0x320] sm:$0xff]
    %v886 = vld [vmem:[#allocation2 + $0x328] sm:$0xff]
    %v887 = vld [vmem:[#allocation2 + $0x330] sm:$0xff]
    %v888 = vld [vmem:[#allocation2 + $0x338] sm:$0xff]
    %v889 = vld [vmem:[#allocation2 + $0x340] sm:$0xff]
    %v890 = vld [vmem:[#allocation2 + $0x348] sm:$0xff]
    %v891 = vld [vmem:[#allocation2 + $0x350] sm:$0xff]
    %v892 = vld [vmem:[#allocation2 + $0x358] sm:$0xff]
    %v893 = vld [vmem:[#allocation2 + $0x360] sm:$0xff]
    %v894 = vld [vmem:[#allocation2 + $0x368] sm:$0xff]
    %v895 = vld [vmem:[#allocation2 + $0x370] sm:$0xff]
    %v896 = vld [vmem:[#allocation2 + $0x378] sm:$0xff]
    %v897 = vld [vmem:[#allocation2 + $0x380] sm:$0xff]
    %v898 = vld [vmem:[#allocation2 + $0x388] sm:$0xff]
    %v899 = vld [vmem:[#allocation2 + $0x390] sm:$0xff]
    %v900 = vld [vmem:[#allocation2 + $0x398] sm:$0xff]
    %v901 = vld [vmem:[#allocation2 + $0x3a0] sm:$0xff]
    %v902 = vld [vmem:[#allocation2 + $0x3a8] sm:$0xff]
    %v903 = vld [vmem:[#allocation2 + $0x3b0] sm:$0xff]
    %v904 = vld [vmem:[#allocation2 + $0x3b8] sm:$0xff]
    %v905 = vld [vmem:[#allocation2 + $0x3c0] sm:$0xff]
    %v906 = vld [vmem:[#allocation2 + $0x3c8] sm:$0xff]
    %v907 = vld [vmem:[#allocation2 + $0x3d0] sm:$0xff]
    %v908 = vld [vmem:[#allocation2 + $0x3d8] sm:$0xff]
    %v909 = vld [vmem:[#allocation2 + $0x3e0] sm:$0xff]
    %v910 = vld [vmem:[#allocation2 + $0x3e8] sm:$0xff]
    %v911 = vld [vmem:[#allocation2 + $0x3f0] sm:$0xff]
    %v912 = vld [vmem:[#allocation2 + $0x3f8] sm:$0xff]
    %v913 = vpack.c.bf16 %v471, %v467
    %v914 = vpack.c.bf16 %v473, %v469
    %v915 = vpack.c.bf16 %v481, %v477
    %v916 = vpack.c.bf16 %v483, %v479
    %v917 = vpack.c.bf16 %v491, %v487
    %v918 = vpack.c.bf16 %v493, %v489
    %v919 = vpack.c.bf16 %v501, %v497
    %v920 = vpack.c.bf16 %v503, %v499
    %v921 = vpack.c.bf16 %v511, %v507
    %v922 = vpack.c.bf16 %v513, %v509
    %v923 = vpack.c.bf16 %v521, %v517
    %v924 = vpack.c.bf16 %v523, %v519
    %v925 = vpack.c.bf16 %v531, %v527
    %v926 = vpack.c.bf16 %v533, %v529
    %v927 = vpack.c.bf16 %v541, %v537
    %v928 = vpack.c.bf16 %v543, %v539
    %v929 = vpack.c.bf16 %v551, %v547
    %v930 = vpack.c.bf16 %v553, %v549
    %v931 = vpack.c.bf16 %v561, %v557
    %v932 = vpack.c.bf16 %v563, %v559
    %v933 = vpack.c.bf16 %v571, %v567
    %v934 = vpack.c.bf16 %v573, %v569
    %v935 = vpack.c.bf16 %v581, %v577
    %v936 = vpack.c.bf16 %v583, %v579
    %v937 = vpack.c.bf16 %v591, %v587
    %v938 = vpack.c.bf16 %v593, %v589
    %v939 = vpack.c.bf16 %v601, %v597
    %v940 = vpack.c.bf16 %v603, %v599
    %v941 = vpack.c.bf16 %v611, %v607
    %v942 = vpack.c.bf16 %v613, %v609
    %v943 = vpack.c.bf16 %v621, %v617
    %v944 = vpack.c.bf16 %v623, %v619
    %v945 = vpack.c.bf16 %v631, %v627
    %v946 = vpack.c.bf16 %v633, %v629
    %v947 = vpack.c.bf16 %v641, %v637
    %v948 = vpack.c.bf16 %v643, %v639
    %v949 = vpack.c.bf16 %v651, %v647
    %v950 = vpack.c.bf16 %v653, %v649
    %v951 = vpack.c.bf16 %v661, %v657
    %v952 = vpack.c.bf16 %v663, %v659
    %v953 = vpack.c.bf16 %v671, %v667
    %v954 = vpack.c.bf16 %v673, %v669
    %v955 = vpack.c.bf16 %v681, %v677
    %v956 = vpack.c.bf16 %v683, %v679
    %v957 = vpack.c.bf16 %v691, %v687
    %v958 = vpack.c.bf16 %v693, %v689
    %v959 = vpack.c.bf16 %v701, %v697
    %v960 = vpack.c.bf16 %v703, %v699
    %v961 = vpack.c.bf16 %v711, %v707
    %v962 = vpack.c.bf16 %v713, %v709
    %v963 = vpack.c.bf16 %v721, %v717
    %v964 = vpack.c.bf16 %v723, %v719
    %v965 = vpack.c.bf16 %v731, %v727
    %v966 = vpack.c.bf16 %v733, %v729
    %v967 = vpack.c.bf16 %v741, %v737
    %v968 = vpack.c.bf16 %v743, %v739
    %v969 = vpack.c.bf16 %v751, %v747
    %v970 = vpack.c.bf16 %v753, %v749
    %v971 = vpack.c.bf16 %v761, %v757
    %v972 = vpack.c.bf16 %v763, %v759
    %v973 = vpack.c.bf16 %v771, %v767
    %v974 = vpack.c.bf16 %v773, %v769
    %v975 = vpack.c.bf16 %v781, %v777
    %v976 = vpack.c.bf16 %v783, %v779
    %v977 = vld [vmem:[%s3] sm:$0x3]
    %v979 = vlaneseq
    %v980 = vshrl.u32 %v979, 7
    %v981 = vsub.s32 0, %v980
    %v982 = vrot.slane %v977, %v981
    %v983 = vlaneseq
    %v984 = vshrl.u32 %v983, 7
    %v985 = vsub.s32 1, %v984
    %v986 = vrot.slane %v977, %v985
    %v1117 = vunpack.c.l.b16 %v785
    %v1118 = vunpack.c.h.b16 %v785
    %v1119 = vunpack.c.l.b16 %v786
    %v1120 = vunpack.c.h.b16 %v786
    %v1121 = vunpack.c.l.b16 %v787
    %v1122 = vunpack.c.h.b16 %v787
    %v1123 = vunpack.c.l.b16 %v788
    %v1124 = vunpack.c.h.b16 %v788
    %v1125 = vunpack.c.l.b16 %v789
    %v1126 = vunpack.c.h.b16 %v789
    %v1127 = vunpack.c.l.b16 %v790
    %v1128 = vunpack.c.h.b16 %v790
    %v1129 = vunpack.c.l.b16 %v791
    %v1130 = vunpack.c.h.b16 %v791
    %v1131 = vunpack.c.l.b16 %v792
    %v1132 = vunpack.c.h.b16 %v792
    %v1133 = vunpack.c.l.b16 %v793
    %v1134 = vunpack.c.h.b16 %v793
    %v1135 = vunpack.c.l.b16 %v794
    %v1136 = vunpack.c.h.b16 %v794
    %v1137 = vunpack.c.l.b16 %v795
    %v1138 = vunpack.c.h.b16 %v795
    %v1139 = vunpack.c.l.b16 %v796
    %v1140 = vunpack.c.h.b16 %v796
    %v1141 = vunpack.c.l.b16 %v797
    %v1142 = vunpack.c.h.b16 %v797
    %v1143 = vunpack.c.l.b16 %v798
    %v1144 = vunpack.c.h.b16 %v798
    %v1145 = vunpack.c.l.b16 %v799
    %v1146 = vunpack.c.h.b16 %v799
    %v1147 = vunpack.c.l.b16 %v800
    %v1148 = vunpack.c.h.b16 %v800
    %v1149 = vunpack.c.l.b16 %v801
    %v1150 = vunpack.c.h.b16 %v801
    %v1151 = vunpack.c.l.b16 %v802
    %v1152 = vunpack.c.h.b16 %v802
    %v1153 = vunpack.c.l.b16 %v803
    %v1154 = vunpack.c.h.b16 %v803
    %v1155 = vunpack.c.l.b16 %v804
    %v1156 = vunpack.c.h.b16 %v804
    %v1157 = vunpack.c.l.b16 %v805
    %v1158 = vunpack.c.h.b16 %v805
    %v1159 = vunpack.c.l.b16 %v806
    %v1160 = vunpack.c.h.b16 %v806
    %v1161 = vunpack.c.l.b16 %v807
    %v1162 = vunpack.c.h.b16 %v807
    %v1163 = vunpack.c.l.b16 %v808
    %v1164 = vunpack.c.h.b16 %v808
    %v1165 = vunpack.c.l.b16 %v809
    %v1166 = vunpack.c.h.b16 %v809
    %v1167 = vunpack.c.l.b16 %v810
    %v1168 = vunpack.c.h.b16 %v810
    %v1169 = vunpack.c.l.b16 %v811
    %v1170 = vunpack.c.h.b16 %v811
    %v1171 = vunpack.c.l.b16 %v812
    %v1172 = vunpack.c.h.b16 %v812
    %v1173 = vunpack.c.l.b16 %v813
    %v1174 = vunpack.c.h.b16 %v813
    %v1175 = vunpack.c.l.b16 %v814
    %v1176 = vunpack.c.h.b16 %v814
    %v1177 = vunpack.c.l.b16 %v815
    %v1178 = vunpack.c.h.b16 %v815
    %v1179 = vunpack.c.l.b16 %v816
    %v1180 = vunpack.c.h.b16 %v816
    %v1181 = vunpack.c.l.b16 %v817
    %v1182 = vunpack.c.h.b16 %v817
    %v1183 = vunpack.c.l.b16 %v818
    %v1184 = vunpack.c.h.b16 %v818
    %v1185 = vunpack.c.l.b16 %v819
    %v1186 = vunpack.c.h.b16 %v819
    %v1187 = vunpack.c.l.b16 %v820
    %v1188 = vunpack.c.h.b16 %v820
    %v1189 = vunpack.c.l.b16 %v821
    %v1190 = vunpack.c.h.b16 %v821
    %v1191 = vunpack.c.l.b16 %v822
    %v1192 = vunpack.c.h.b16 %v822
    %v1193 = vunpack.c.l.b16 %v823
    %v1194 = vunpack.c.h.b16 %v823
    %v1195 = vunpack.c.l.b16 %v824
    %v1196 = vunpack.c.h.b16 %v824
    %v1197 = vunpack.c.l.b16 %v825
    %v1198 = vunpack.c.h.b16 %v825
    %v1199 = vunpack.c.l.b16 %v826
    %v1200 = vunpack.c.h.b16 %v826
    %v1201 = vunpack.c.l.b16 %v827
    %v1202 = vunpack.c.h.b16 %v827
    %v1203 = vunpack.c.l.b16 %v828
    %v1204 = vunpack.c.h.b16 %v828
    %v1205 = vunpack.c.l.b16 %v829
    %v1206 = vunpack.c.h.b16 %v829
    %v1207 = vunpack.c.l.b16 %v830
    %v1208 = vunpack.c.h.b16 %v830
    %v1209 = vunpack.c.l.b16 %v831
    %v1210 = vunpack.c.h.b16 %v831
    %v1211 = vunpack.c.l.b16 %v832
    %v1212 = vunpack.c.h.b16 %v832
    %v1213 = vunpack.c.l.b16 %v833
    %v1214 = vunpack.c.h.b16 %v833
    %v1215 = vunpack.c.l.b16 %v834
    %v1216 = vunpack.c.h.b16 %v834
    %v1217 = vunpack.c.l.b16 %v835
    %v1218 = vunpack.c.h.b16 %v835
    %v1219 = vunpack.c.l.b16 %v836
    %v1220 = vunpack.c.h.b16 %v836
    %v1221 = vunpack.c.l.b16 %v837
    %v1222 = vunpack.c.h.b16 %v837
    %v1223 = vunpack.c.l.b16 %v838
    %v1224 = vunpack.c.h.b16 %v838
    %v1225 = vunpack.c.l.b16 %v839
    %v1226 = vunpack.c.h.b16 %v839
    %v1227 = vunpack.c.l.b16 %v840
    %v1228 = vunpack.c.h.b16 %v840
    %v1229 = vunpack.c.l.b16 %v841
    %v1230 = vunpack.c.h.b16 %v841
    %v1231 = vunpack.c.l.b16 %v842
    %v1232 = vunpack.c.h.b16 %v842
    %v1233 = vunpack.c.l.b16 %v843
    %v1234 = vunpack.c.h.b16 %v843
    %v1235 = vunpack.c.l.b16 %v844
    %v1236 = vunpack.c.h.b16 %v844
    %v1237 = vunpack.c.l.b16 %v845
    %v1238 = vunpack.c.h.b16 %v845
    %v1239 = vunpack.c.l.b16 %v846
    %v1240 = vunpack.c.h.b16 %v846
    %v1241 = vunpack.c.l.b16 %v847
    %v1242 = vunpack.c.h.b16 %v847
    %v1243 = vunpack.c.l.b16 %v848
    %v1244 = vunpack.c.h.b16 %v848
    %v1245 = vunpack.c.l.b16 %v849
    %v1246 = vunpack.c.h.b16 %v849
    %v1247 = vunpack.c.l.b16 %v850
    %v1248 = vunpack.c.h.b16 %v850
    %v1249 = vunpack.c.l.b16 %v851
    %v1250 = vunpack.c.h.b16 %v851
    %v1251 = vunpack.c.l.b16 %v852
    %v1252 = vunpack.c.h.b16 %v852
    %v1253 = vunpack.c.l.b16 %v853
    %v1254 = vunpack.c.h.b16 %v853
    %v1255 = vunpack.c.l.b16 %v854
    %v1256 = vunpack.c.h.b16 %v854
    %v1257 = vunpack.c.l.b16 %v855
    %v1258 = vunpack.c.h.b16 %v855
    %v1259 = vunpack.c.l.b16 %v856
    %v1260 = vunpack.c.h.b16 %v856
    %v1261 = vunpack.c.l.b16 %v857
    %v1262 = vunpack.c.h.b16 %v857
    %v1263 = vunpack.c.l.b16 %v858
    %v1264 = vunpack.c.h.b16 %v858
    %v1265 = vunpack.c.l.b16 %v859
    %v1266 = vunpack.c.h.b16 %v859
    %v1267 = vunpack.c.l.b16 %v860
    %v1268 = vunpack.c.h.b16 %v860
    %v1269 = vunpack.c.l.b16 %v861
    %v1270 = vunpack.c.h.b16 %v861
    %v1271 = vunpack.c.l.b16 %v862
    %v1272 = vunpack.c.h.b16 %v862
    %v1273 = vunpack.c.l.b16 %v863
    %v1274 = vunpack.c.h.b16 %v863
    %v1275 = vunpack.c.l.b16 %v864
    %v1276 = vunpack.c.h.b16 %v864
    %v1277 = vunpack.c.l.b16 %v865
    %v1278 = vunpack.c.h.b16 %v865
    %v1279 = vunpack.c.l.b16 %v866
    %v1280 = vunpack.c.h.b16 %v866
    %v1281 = vunpack.c.l.b16 %v867
    %v1282 = vunpack.c.h.b16 %v867
    %v1283 = vunpack.c.l.b16 %v868
    %v1284 = vunpack.c.h.b16 %v868
    %v1285 = vunpack.c.l.b16 %v869
    %v1286 = vunpack.c.h.b16 %v869
    %v1287 = vunpack.c.l.b16 %v870
    %v1288 = vunpack.c.h.b16 %v870
    %v1289 = vunpack.c.l.b16 %v871
    %v1290 = vunpack.c.h.b16 %v871
    %v1291 = vunpack.c.l.b16 %v872
    %v1292 = vunpack.c.h.b16 %v872
    %v1293 = vunpack.c.l.b16 %v873
    %v1294 = vunpack.c.h.b16 %v873
    %v1295 = vunpack.c.l.b16 %v874
    %v1296 = vunpack.c.h.b16 %v874
    %v1297 = vunpack.c.l.b16 %v875
    %v1298 = vunpack.c.h.b16 %v875
    %v1299 = vunpack.c.l.b16 %v876
    %v1300 = vunpack.c.h.b16 %v876
    %v1301 = vunpack.c.l.b16 %v877
    %v1302 = vunpack.c.h.b16 %v877
    %v1303 = vunpack.c.l.b16 %v878
    %v1304 = vunpack.c.h.b16 %v878
    %v1305 = vunpack.c.l.b16 %v879
    %v1306 = vunpack.c.h.b16 %v879
    %v1307 = vunpack.c.l.b16 %v880
    %v1308 = vunpack.c.h.b16 %v880
    %v1309 = vunpack.c.l.b16 %v881
    %v1310 = vunpack.c.h.b16 %v881
    %v1311 = vunpack.c.l.b16 %v882
    %v1312 = vunpack.c.h.b16 %v882
    %v1313 = vunpack.c.l.b16 %v883
    %v1314 = vunpack.c.h.b16 %v883
    %v1315 = vunpack.c.l.b16 %v884
    %v1316 = vunpack.c.h.b16 %v884
    %v1317 = vunpack.c.l.b16 %v885
    %v1318 = vunpack.c.h.b16 %v885
    %v1319 = vunpack.c.l.b16 %v886
    %v1320 = vunpack.c.h.b16 %v886
    %v1321 = vunpack.c.l.b16 %v887
    %v1322 = vunpack.c.h.b16 %v887
    %v1323 = vunpack.c.l.b16 %v888
    %v1324 = vunpack.c.h.b16 %v888
    %v1325 = vunpack.c.l.b16 %v889
    %v1326 = vunpack.c.h.b16 %v889
    %v1327 = vunpack.c.l.b16 %v890
    %v1328 = vunpack.c.h.b16 %v890
    %v1329 = vunpack.c.l.b16 %v891
    %v1330 = vunpack.c.h.b16 %v891
    %v1331 = vunpack.c.l.b16 %v892
    %v1332 = vunpack.c.h.b16 %v892
    %v1333 = vunpack.c.l.b16 %v893
    %v1334 = vunpack.c.h.b16 %v893
    %v1335 = vunpack.c.l.b16 %v894
    %v1336 = vunpack.c.h.b16 %v894
    %v1337 = vunpack.c.l.b16 %v895
    %v1338 = vunpack.c.h.b16 %v895
    %v1339 = vunpack.c.l.b16 %v896
    %v1340 = vunpack.c.h.b16 %v896
    %v1341 = vunpack.c.l.b16 %v897
    %v1342 = vunpack.c.h.b16 %v897
    %v1343 = vunpack.c.l.b16 %v898
    %v1344 = vunpack.c.h.b16 %v898
    %v1345 = vunpack.c.l.b16 %v899
    %v1346 = vunpack.c.h.b16 %v899
    %v1347 = vunpack.c.l.b16 %v900
    %v1348 = vunpack.c.h.b16 %v900
    %v1349 = vunpack.c.l.b16 %v901
    %v1350 = vunpack.c.h.b16 %v901
    %v1351 = vunpack.c.l.b16 %v902
    %v1352 = vunpack.c.h.b16 %v902
    %v1353 = vunpack.c.l.b16 %v903
    %v1354 = vunpack.c.h.b16 %v903
    %v1355 = vunpack.c.l.b16 %v904
    %v1356 = vunpack.c.h.b16 %v904
    %v1357 = vunpack.c.l.b16 %v905
    %v1358 = vunpack.c.h.b16 %v905
    %v1359 = vunpack.c.l.b16 %v906
    %v1360 = vunpack.c.h.b16 %v906
    %v1361 = vunpack.c.l.b16 %v907
    %v1362 = vunpack.c.h.b16 %v907
    %v1363 = vunpack.c.l.b16 %v908
    %v1364 = vunpack.c.h.b16 %v908
    %v1365 = vunpack.c.l.b16 %v909
    %v1366 = vunpack.c.h.b16 %v909
    %v1367 = vunpack.c.l.b16 %v910
    %v1368 = vunpack.c.h.b16 %v910
    %v1369 = vunpack.c.l.b16 %v911
    %v1370 = vunpack.c.h.b16 %v911
    %v1371 = vunpack.c.l.b16 %v912
    %v1372 = vunpack.c.h.b16 %v912
    %v1373 = vpack.c.b16 %v1121, %v1117
    %v1374 = vpack.c.b16 %v1122, %v1118
    %v1375 = vpack.c.b16 %v1123, %v1119
    %v1376 = vpack.c.b16 %v1124, %v1120
    %v1377 = vpack.c.b16 %v1129, %v1125
    %v1378 = vpack.c.b16 %v1130, %v1126
    %v1379 = vpack.c.b16 %v1131, %v1127
    %v1380 = vpack.c.b16 %v1132, %v1128
    %v1381 = vpack.c.b16 %v1137, %v1133
    %v1382 = vpack.c.b16 %v1138, %v1134
    %v1383 = vpack.c.b16 %v1139, %v1135
    %v1384 = vpack.c.b16 %v1140, %v1136
    %v1385 = vpack.c.b16 %v1145, %v1141
    %v1386 = vpack.c.b16 %v1146, %v1142
    %v1387 = vpack.c.b16 %v1147, %v1143
    %v1388 = vpack.c.b16 %v1148, %v1144
    %v1389 = vpack.c.b16 %v1153, %v1149
    %v1390 = vpack.c.b16 %v1154, %v1150
    %v1391 = vpack.c.b16 %v1155, %v1151
    %v1392 = vpack.c.b16 %v1156, %v1152
    %v1393 = vpack.c.b16 %v1161, %v1157
    %v1394 = vpack.c.b16 %v1162, %v1158
    %v1395 = vpack.c.b16 %v1163, %v1159
    %v1396 = vpack.c.b16 %v1164, %v1160
    %v1397 = vpack.c.b16 %v1169, %v1165
    %v1398 = vpack.c.b16 %v1170, %v1166
    %v1399 = vpack.c.b16 %v1171, %v1167
    %v1400 = vpack.c.b16 %v1172, %v1168
    %v1401 = vpack.c.b16 %v1177, %v1173
    %v1402 = vpack.c.b16 %v1178, %v1174
    %v1403 = vpack.c.b16 %v1179, %v1175
    %v1404 = vpack.c.b16 %v1180, %v1176
    %v1405 = vpack.c.b16 %v1185, %v1181
    %v1406 = vpack.c.b16 %v1186, %v1182
    %v1407 = vpack.c.b16 %v1187, %v1183
    %v1408 = vpack.c.b16 %v1188, %v1184
    %v1409 = vpack.c.b16 %v1193, %v1189
    %v1410 = vpack.c.b16 %v1194, %v1190
    %v1411 = vpack.c.b16 %v1195, %v1191
    %v1412 = vpack.c.b16 %v1196, %v1192
    %v1413 = vpack.c.b16 %v1201, %v1197
    %v1414 = vpack.c.b16 %v1202, %v1198
    %v1415 = vpack.c.b16 %v1203, %v1199
    %v1416 = vpack.c.b16 %v1204, %v1200
    %v1417 = vpack.c.b16 %v1209, %v1205
    %v1418 = vpack.c.b16 %v1210, %v1206
    %v1419 = vpack.c.b16 %v1211, %v1207
    %v1420 = vpack.c.b16 %v1212, %v1208
    %v1421 = vpack.c.b16 %v1217, %v1213
    %v1422 = vpack.c.b16 %v1218, %v1214
    %v1423 = vpack.c.b16 %v1219, %v1215
    %v1424 = vpack.c.b16 %v1220, %v1216
    %v1425 = vpack.c.b16 %v1225, %v1221
    %v1426 = vpack.c.b16 %v1226, %v1222
    %v1427 = vpack.c.b16 %v1227, %v1223
    %v1428 = vpack.c.b16 %v1228, %v1224
    %v1429 = vpack.c.b16 %v1233, %v1229
    %v1430 = vpack.c.b16 %v1234, %v1230
    %v1431 = vpack.c.b16 %v1235, %v1231
    %v1432 = vpack.c.b16 %v1236, %v1232
    %v1433 = vpack.c.b16 %v1241, %v1237
    %v1434 = vpack.c.b16 %v1242, %v1238
    %v1435 = vpack.c.b16 %v1243, %v1239
    %v1436 = vpack.c.b16 %v1244, %v1240
    %v1437 = vpack.c.b16 %v1249, %v1245
    %v1438 = vpack.c.b16 %v1250, %v1246
    %v1439 = vpack.c.b16 %v1251, %v1247
    %v1440 = vpack.c.b16 %v1252, %v1248
    %v1441 = vpack.c.b16 %v1257, %v1253
    %v1442 = vpack.c.b16 %v1258, %v1254
    %v1443 = vpack.c.b16 %v1259, %v1255
    %v1444 = vpack.c.b16 %v1260, %v1256
    %v1445 = vpack.c.b16 %v1265, %v1261
    %v1446 = vpack.c.b16 %v1266, %v1262
    %v1447 = vpack.c.b16 %v1267, %v1263
    %v1448 = vpack.c.b16 %v1268, %v1264
    %v1449 = vpack.c.b16 %v1273, %v1269
    %v1450 = vpack.c.b16 %v1274, %v1270
    %v1451 = vpack.c.b16 %v1275, %v1271
    %v1452 = vpack.c.b16 %v1276, %v1272
    %v1453 = vpack.c.b16 %v1281, %v1277
    %v1454 = vpack.c.b16 %v1282, %v1278
    %v1455 = vpack.c.b16 %v1283, %v1279
    %v1456 = vpack.c.b16 %v1284, %v1280
    %v1457 = vpack.c.b16 %v1289, %v1285
    %v1458 = vpack.c.b16 %v1290, %v1286
    %v1459 = vpack.c.b16 %v1291, %v1287
    %v1460 = vpack.c.b16 %v1292, %v1288
    %v1461 = vpack.c.b16 %v1297, %v1293
    %v1462 = vpack.c.b16 %v1298, %v1294
    %v1463 = vpack.c.b16 %v1299, %v1295
    %v1464 = vpack.c.b16 %v1300, %v1296
    %v1465 = vpack.c.b16 %v1305, %v1301
    %v1466 = vpack.c.b16 %v1306, %v1302
    %v1467 = vpack.c.b16 %v1307, %v1303
    %v1468 = vpack.c.b16 %v1308, %v1304
    %v1469 = vpack.c.b16 %v1313, %v1309
    %v1470 = vpack.c.b16 %v1314, %v1310
    %v1471 = vpack.c.b16 %v1315, %v1311
    %v1472 = vpack.c.b16 %v1316, %v1312
    %v1473 = vpack.c.b16 %v1321, %v1317
    %v1474 = vpack.c.b16 %v1322, %v1318
    %v1475 = vpack.c.b16 %v1323, %v1319
    %v1476 = vpack.c.b16 %v1324, %v1320
    %v1477 = vpack.c.b16 %v1329, %v1325
    %v1478 = vpack.c.b16 %v1330, %v1326
    %v1479 = vpack.c.b16 %v1331, %v1327
    %v1480 = vpack.c.b16 %v1332, %v1328
    %v1481 = vpack.c.b16 %v1337, %v1333
    %v1482 = vpack.c.b16 %v1338, %v1334
    %v1483 = vpack.c.b16 %v1339, %v1335
    %v1484 = vpack.c.b16 %v1340, %v1336
    %v1485 = vpack.c.b16 %v1345, %v1341
    %v1486 = vpack.c.b16 %v1346, %v1342
    %v1487 = vpack.c.b16 %v1347, %v1343
    %v1488 = vpack.c.b16 %v1348, %v1344
    %v1489 = vpack.c.b16 %v1353, %v1349
    %v1490 = vpack.c.b16 %v1354, %v1350
    %v1491 = vpack.c.b16 %v1355, %v1351
    %v1492 = vpack.c.b16 %v1356, %v1352
    %v1493 = vpack.c.b16 %v1361, %v1357
    %v1494 = vpack.c.b16 %v1362, %v1358
    %v1495 = vpack.c.b16 %v1363, %v1359
    %v1496 = vpack.c.b16 %v1364, %v1360
    %v1497 = vpack.c.b16 %v1369, %v1365
    %v1498 = vpack.c.b16 %v1370, %v1366
    %v1499 = vpack.c.b16 %v1371, %v1367
    %v1500 = vpack.c.b16 %v1372, %v1368
    %1629 = vmatprep.subr.bf16.mxu0 %v928
    %1630 = vmatpush1.bf16.msra.mxu0 %v927
    %1631 = vmatprep.subr.bf16.mxu0 %v926
    %1632 = vmatpush1.bf16.msra.mxu0 %v925
    %1633 = vmatprep.subr.bf16.mxu0 %v924
    %1634 = vmatpush1.bf16.msra.mxu0 %v923
    %1635 = vmatprep.subr.bf16.mxu0 %v922
    %1636 = vmatpush1.bf16.msra.mxu0 %v921
    %1637 = vmatprep.subr.bf16.mxu0 %v920
    %1638 = vmatpush1.bf16.msra.mxu0 %v919
    %1639 = vmatprep.subr.bf16.mxu0 %v918
    %1640 = vmatpush1.bf16.msra.mxu0 %v917
    %1641 = vmatprep.subr.bf16.mxu0 %v916
    %1642 = vmatpush1.bf16.msra.mxu0 %v915
    %1643 = vmatprep.subr.bf16.mxu0 %v914
    %1644 = vmatpush1.bf16.msra.mxu0 %v913
    %1645 = vmatprep.subr.bf16.mxu0 %v944
    %1646 = vmatpush2.bf16.msra.mxu0 %v943
    %1647 = vmatprep.subr.bf16.mxu0 %v942
    %1648 = vmatpush2.bf16.msra.mxu0 %v941
    %1649 = vmatprep.subr.bf16.mxu0 %v940
    %1650 = vmatpush2.bf16.msra.mxu0 %v939
    %1651 = vmatprep.subr.bf16.mxu0 %v938
    %1652 = vmatpush2.bf16.msra.mxu0 %v937
    %1653 = vmatprep.subr.bf16.mxu0 %v936
    %1654 = vmatpush2.bf16.msra.mxu0 %v935
    %1655 = vmatprep.subr.bf16.mxu0 %v934
    %1656 = vmatpush2.bf16.msra.mxu0 %v933
    %1657 = vmatprep.subr.bf16.mxu0 %v932
    %1658 = vmatpush2.bf16.msra.mxu0 %v931
    %1659 = vmatprep.subr.bf16.mxu0 %v930
    %1660 = vmatpush2.bf16.msra.mxu0 %v929
    %1661 = vmatprep.mubr.bf16.mxu0 %v1374
    %1662 = vmatmul.mubr.bf16.gmra.mxu0 %v1373
    %v1663 = vpop.f32.mrf.mxu0
    %v1664 = vadd.f32 %v982, %v1663
    %v1665 = vpop.f32.mrf.mxu0
    %v1666 = vadd.f32 %v986, %v1665
    %v1667 = vpop.f32.mrf.mxu0
    %v1668 = vadd.f32 %v982, %v1667
    %v1669 = vpop.f32.mrf.mxu0
    %v1670 = vadd.f32 %v986, %v1669
    %1671 = vmatprep.mubr.bf16.mxu0 %v1378
    %1672 = vmatmul.mubr.bf16.gmra.mxu0 %v1377
    %v1673 = vpop.f32.mrf.mxu0
    %v1674 = vadd.f32 %v982, %v1673
    %v1675 = vpop.f32.mrf.mxu0
    %v1676 = vadd.f32 %v986, %v1675
    %v1677 = vpop.f32.mrf.mxu0
    %v1678 = vadd.f32 %v982, %v1677
    %v1679 = vpop.f32.mrf.mxu0
    %v1680 = vadd.f32 %v986, %v1679
    %1681 = vmatprep.mubr.bf16.mxu0 %v1382
    %1682 = vmatmul.mubr.bf16.gmra.mxu0 %v1381
    %v1683 = vpop.f32.mrf.mxu0
    %v1684 = vadd.f32 %v982, %v1683
    %v1685 = vpop.f32.mrf.mxu0
    %v1686 = vadd.f32 %v986, %v1685
    %v1687 = vpop.f32.mrf.mxu0
    %v1688 = vadd.f32 %v982, %v1687
    %v1689 = vpop.f32.mrf.mxu0
    %v1690 = vadd.f32 %v986, %v1689
    %1691 = vmatprep.mubr.bf16.mxu0 %v1386
    %1692 = vmatmul.mubr.bf16.gmra.mxu0 %v1385
    %v1693 = vpop.f32.mrf.mxu0
    %v1694 = vadd.f32 %v982, %v1693
    %v1695 = vpop.f32.mrf.mxu0
    %v1696 = vadd.f32 %v986, %v1695
    %v1697 = vpop.f32.mrf.mxu0
    %v1698 = vadd.f32 %v982, %v1697
    %v1699 = vpop.f32.mrf.mxu0
    %v1700 = vadd.f32 %v986, %v1699
    %1701 = vmatprep.mubr.bf16.mxu0 %v1390
    %1702 = vmatmul.mubr.bf16.gmra.mxu0 %v1389
    %v1703 = vpop.f32.mrf.mxu0
    %v1704 = vadd.f32 %v982, %v1703
    %v1705 = vpop.f32.mrf.mxu0
    %v1706 = vadd.f32 %v986, %v1705
    %v1707 = vpop.f32.mrf.mxu0
    %v1708 = vadd.f32 %v982, %v1707
    %v1709 = vpop.f32.mrf.mxu0
    %v1710 = vadd.f32 %v986, %v1709
    %1711 = vmatprep.mubr.bf16.mxu0 %v1394
    %1712 = vmatmul.mubr.bf16.gmra.mxu0 %v1393
    %v1713 = vpop.f32.mrf.mxu0
    %v1714 = vadd.f32 %v982, %v1713
    %v1715 = vpop.f32.mrf.mxu0
    %v1716 = vadd.f32 %v986, %v1715
    %v1717 = vpop.f32.mrf.mxu0
    %v1718 = vadd.f32 %v982, %v1717
    %v1719 = vpop.f32.mrf.mxu0
    %v1720 = vadd.f32 %v986, %v1719
    %1721 = vmatprep.mubr.bf16.mxu0 %v1398
    %1722 = vmatmul.mubr.bf16.gmra.mxu0 %v1397
    %v1723 = vpop.f32.mrf.mxu0
    %v1724 = vadd.f32 %v982, %v1723
    %v1725 = vpop.f32.mrf.mxu0
    %v1726 = vadd.f32 %v986, %v1725
    %v1727 = vpop.f32.mrf.mxu0
    %v1728 = vadd.f32 %v982, %v1727
    %v1729 = vpop.f32.mrf.mxu0
    %v1730 = vadd.f32 %v986, %v1729
    %1731 = vmatprep.mubr.bf16.mxu0 %v1402
    %1732 = vmatmul.mubr.bf16.gmra.mxu0 %v1401
    %v1733 = vpop.f32.mrf.mxu0
    %v1734 = vadd.f32 %v982, %v1733
    %v1735 = vpop.f32.mrf.mxu0
    %v1736 = vadd.f32 %v986, %v1735
    %v1737 = vpop.f32.mrf.mxu0
    %v1738 = vadd.f32 %v982, %v1737
    %v1739 = vpop.f32.mrf.mxu0
    %v1740 = vadd.f32 %v986, %v1739
    %1741 = vmatprep.mubr.bf16.mxu0 %v1406
    %1742 = vmatmul.mubr.bf16.gmra.mxu0 %v1405
    %v1743 = vpop.f32.mrf.mxu0
    %v1744 = vadd.f32 %v982, %v1743
    %v1745 = vpop.f32.mrf.mxu0
    %v1746 = vadd.f32 %v986, %v1745
    %v1747 = vpop.f32.mrf.mxu0
    %v1748 = vadd.f32 %v982, %v1747
    %v1749 = vpop.f32.mrf.mxu0
    %v1750 = vadd.f32 %v986, %v1749
    %1751 = vmatprep.mubr.bf16.mxu0 %v1410
    %1752 = vmatmul.mubr.bf16.gmra.mxu0 %v1409
    %v1753 = vpop.f32.mrf.mxu0
    %v1754 = vadd.f32 %v982, %v1753
    %v1755 = vpop.f32.mrf.mxu0
    %v1756 = vadd.f32 %v986, %v1755
    %v1757 = vpop.f32.mrf.mxu0
    %v1758 = vadd.f32 %v982, %v1757
    %v1759 = vpop.f32.mrf.mxu0
    %v1760 = vadd.f32 %v986, %v1759
    %1761 = vmatprep.mubr.bf16.mxu0 %v1414
    %1762 = vmatmul.mubr.bf16.gmra.mxu0 %v1413
    %v1763 = vpop.f32.mrf.mxu0
    %v1764 = vadd.f32 %v982, %v1763
    %v1765 = vpop.f32.mrf.mxu0
    %v1766 = vadd.f32 %v986, %v1765
    %v1767 = vpop.f32.mrf.mxu0
    %v1768 = vadd.f32 %v982, %v1767
    %v1769 = vpop.f32.mrf.mxu0
    %v1770 = vadd.f32 %v986, %v1769
    %1771 = vmatprep.mubr.bf16.mxu0 %v1418
    %1772 = vmatmul.mubr.bf16.gmra.mxu0 %v1417
    %v1773 = vpop.f32.mrf.mxu0
    %v1774 = vadd.f32 %v982, %v1773
    %v1775 = vpop.f32.mrf.mxu0
    %v1776 = vadd.f32 %v986, %v1775
    %v1777 = vpop.f32.mrf.mxu0
    %v1778 = vadd.f32 %v982, %v1777
    %v1779 = vpop.f32.mrf.mxu0
    %v1780 = vadd.f32 %v986, %v1779
    %1781 = vmatprep.mubr.bf16.mxu0 %v1422
    %1782 = vmatmul.mubr.bf16.gmra.mxu0 %v1421
    %v1783 = vpop.f32.mrf.mxu0
    %v1784 = vadd.f32 %v982, %v1783
    %v1785 = vpop.f32.mrf.mxu0
    %v1786 = vadd.f32 %v986, %v1785
    %v1787 = vpop.f32.mrf.mxu0
    %v1788 = vadd.f32 %v982, %v1787
    %v1789 = vpop.f32.mrf.mxu0
    %v1790 = vadd.f32 %v986, %v1789
    %1791 = vmatprep.mubr.bf16.mxu0 %v1426
    %1792 = vmatmul.mubr.bf16.gmra.mxu0 %v1425
    %v1793 = vpop.f32.mrf.mxu0
    %v1794 = vadd.f32 %v982, %v1793
    %v1795 = vpop.f32.mrf.mxu0
    %v1796 = vadd.f32 %v986, %v1795
    %v1797 = vpop.f32.mrf.mxu0
    %v1798 = vadd.f32 %v982, %v1797
    %v1799 = vpop.f32.mrf.mxu0
    %v1800 = vadd.f32 %v986, %v1799
    %1801 = vmatprep.mubr.bf16.mxu0 %v1430
    %1802 = vmatmul.mubr.bf16.gmra.mxu0 %v1429
    %v1803 = vpop.f32.mrf.mxu0
    %v1804 = vadd.f32 %v982, %v1803
    %v1805 = vpop.f32.mrf.mxu0
    %v1806 = vadd.f32 %v986, %v1805
    %v1807 = vpop.f32.mrf.mxu0
    %v1808 = vadd.f32 %v982, %v1807
    %v1809 = vpop.f32.mrf.mxu0
    %v1810 = vadd.f32 %v986, %v1809
    %1811 = vmatprep.mubr.bf16.mxu0 %v1434
    %1812 = vmatmul.mubr.bf16.gmra.mxu0 %v1433
    %v1813 = vpop.f32.mrf.mxu0
    %v1814 = vadd.f32 %v982, %v1813
    %v1815 = vpop.f32.mrf.mxu0
    %v1816 = vadd.f32 %v986, %v1815
    %v1817 = vpop.f32.mrf.mxu0
    %v1818 = vadd.f32 %v982, %v1817
    %v1819 = vpop.f32.mrf.mxu0
    %v1820 = vadd.f32 %v986, %v1819
    %1821 = vmatprep.mubr.bf16.mxu0 %v1438
    %1822 = vmatmul.mubr.bf16.gmra.mxu0 %v1437
    %v1823 = vpop.f32.mrf.mxu0
    %v1824 = vadd.f32 %v982, %v1823
    %v1825 = vpop.f32.mrf.mxu0
    %v1826 = vadd.f32 %v986, %v1825
    %v1827 = vpop.f32.mrf.mxu0
    %v1828 = vadd.f32 %v982, %v1827
    %v1829 = vpop.f32.mrf.mxu0
    %v1830 = vadd.f32 %v986, %v1829
    %1831 = vmatprep.mubr.bf16.mxu0 %v1442
    %1832 = vmatmul.mubr.bf16.gmra.mxu0 %v1441
    %v1833 = vpop.f32.mrf.mxu0
    %v1834 = vadd.f32 %v982, %v1833
    %v1835 = vpop.f32.mrf.mxu0
    %v1836 = vadd.f32 %v986, %v1835
    %v1837 = vpop.f32.mrf.mxu0
    %v1838 = vadd.f32 %v982, %v1837
    %v1839 = vpop.f32.mrf.mxu0
    %v1840 = vadd.f32 %v986, %v1839
    %1841 = vmatprep.mubr.bf16.mxu0 %v1446
    %1842 = vmatmul.mubr.bf16.gmra.mxu0 %v1445
    %v1843 = vpop.f32.mrf.mxu0
    %v1844 = vadd.f32 %v982, %v1843
    %v1845 = vpop.f32.mrf.mxu0
    %v1846 = vadd.f32 %v986, %v1845
    %v1847 = vpop.f32.mrf.mxu0
    %v1848 = vadd.f32 %v982, %v1847
    %v1849 = vpop.f32.mrf.mxu0
    %v1850 = vadd.f32 %v986, %v1849
    %1851 = vmatprep.mubr.bf16.mxu0 %v1450
    %1852 = vmatmul.mubr.bf16.gmra.mxu0 %v1449
    %v1853 = vpop.f32.mrf.mxu0
    %v1854 = vadd.f32 %v982, %v1853
    %v1855 = vpop.f32.mrf.mxu0
    %v1856 = vadd.f32 %v986, %v1855
    %v1857 = vpop.f32.mrf.mxu0
    %v1858 = vadd.f32 %v982, %v1857
    %v1859 = vpop.f32.mrf.mxu0
    %v1860 = vadd.f32 %v986, %v1859
    %1861 = vmatprep.mubr.bf16.mxu0 %v1454
    %1862 = vmatmul.mubr.bf16.gmra.mxu0 %v1453
    %v1863 = vpop.f32.mrf.mxu0
    %v1864 = vadd.f32 %v982, %v1863
    %v1865 = vpop.f32.mrf.mxu0
    %v1866 = vadd.f32 %v986, %v1865
    %v1867 = vpop.f32.mrf.mxu0
    %v1868 = vadd.f32 %v982, %v1867
    %v1869 = vpop.f32.mrf.mxu0
    %v1870 = vadd.f32 %v986, %v1869
    %1871 = vmatprep.mubr.bf16.mxu0 %v1458
    %1872 = vmatmul.mubr.bf16.gmra.mxu0 %v1457
    %v1873 = vpop.f32.mrf.mxu0
    %v1874 = vadd.f32 %v982, %v1873
    %v1875 = vpop.f32.mrf.mxu0
    %v1876 = vadd.f32 %v986, %v1875
    %v1877 = vpop.f32.mrf.mxu0
    %v1878 = vadd.f32 %v982, %v1877
    %v1879 = vpop.f32.mrf.mxu0
    %v1880 = vadd.f32 %v986, %v1879
    %1881 = vmatprep.mubr.bf16.mxu0 %v1462
    %1882 = vmatmul.mubr.bf16.gmra.mxu0 %v1461
    %v1883 = vpop.f32.mrf.mxu0
    %v1884 = vadd.f32 %v982, %v1883
    %v1885 = vpop.f32.mrf.mxu0
    %v1886 = vadd.f32 %v986, %v1885
    %v1887 = vpop.f32.mrf.mxu0
    %v1888 = vadd.f32 %v982, %v1887
    %v1889 = vpop.f32.mrf.mxu0
    %v1890 = vadd.f32 %v986, %v1889
    %1891 = vmatprep.mubr.bf16.mxu0 %v1466
    %1892 = vmatmul.mubr.bf16.gmra.mxu0 %v1465
    %v1893 = vpop.f32.mrf.mxu0
    %v1894 = vadd.f32 %v982, %v1893
    %v1895 = vpop.f32.mrf.mxu0
    %v1896 = vadd.f32 %v986, %v1895
    %v1897 = vpop.f32.mrf.mxu0
    %v1898 = vadd.f32 %v982, %v1897
    %v1899 = vpop.f32.mrf.mxu0
    %v1900 = vadd.f32 %v986, %v1899
    %1901 = vmatprep.mubr.bf16.mxu0 %v1470
    %1902 = vmatmul.mubr.bf16.gmra.mxu0 %v1469
    %v1903 = vpop.f32.mrf.mxu0
    %v1904 = vadd.f32 %v982, %v1903
    %v1905 = vpop.f32.mrf.mxu0
    %v1906 = vadd.f32 %v986, %v1905
    %v1907 = vpop.f32.mrf.mxu0
    %v1908 = vadd.f32 %v982, %v1907
    %v1909 = vpop.f32.mrf.mxu0
    %v1910 = vadd.f32 %v986, %v1909
    %1911 = vmatprep.mubr.bf16.mxu0 %v1474
    %1912 = vmatmul.mubr.bf16.gmra.mxu0 %v1473
    %v1913 = vpop.f32.mrf.mxu0
    %v1914 = vadd.f32 %v982, %v1913
    %v1915 = vpop.f32.mrf.mxu0
    %v1916 = vadd.f32 %v986, %v1915
    %v1917 = vpop.f32.mrf.mxu0
    %v1918 = vadd.f32 %v982, %v1917
    %v1919 = vpop.f32.mrf.mxu0
    %v1920 = vadd.f32 %v986, %v1919
    %1921 = vmatprep.mubr.bf16.mxu0 %v1478
    %1922 = vmatmul.mubr.bf16.gmra.mxu0 %v1477
    %v1923 = vpop.f32.mrf.mxu0
    %v1924 = vadd.f32 %v982, %v1923
    %v1925 = vpop.f32.mrf.mxu0
    %v1926 = vadd.f32 %v986, %v1925
    %v1927 = vpop.f32.mrf.mxu0
    %v1928 = vadd.f32 %v982, %v1927
    %v1929 = vpop.f32.mrf.mxu0
    %v1930 = vadd.f32 %v986, %v1929
    %1931 = vmatprep.mubr.bf16.mxu0 %v1482
    %1932 = vmatmul.mubr.bf16.gmra.mxu0 %v1481
    %v1933 = vpop.f32.mrf.mxu0
    %v1934 = vadd.f32 %v982, %v1933
    %v1935 = vpop.f32.mrf.mxu0
    %v1936 = vadd.f32 %v986, %v1935
    %v1937 = vpop.f32.mrf.mxu0
    %v1938 = vadd.f32 %v982, %v1937
    %v1939 = vpop.f32.mrf.mxu0
    %v1940 = vadd.f32 %v986, %v1939
    %1941 = vmatprep.mubr.bf16.mxu0 %v1486
    %1942 = vmatmul.mubr.bf16.gmra.mxu0 %v1485
    %v1943 = vpop.f32.mrf.mxu0
    %v1944 = vadd.f32 %v982, %v1943
    %v1945 = vpop.f32.mrf.mxu0
    %v1946 = vadd.f32 %v986, %v1945
    %v1947 = vpop.f32.mrf.mxu0
    %v1948 = vadd.f32 %v982, %v1947
    %v1949 = vpop.f32.mrf.mxu0
    %v1950 = vadd.f32 %v986, %v1949
    %1951 = vmatprep.mubr.bf16.mxu0 %v1490
    %1952 = vmatmul.mubr.bf16.gmra.mxu0 %v1489
    %v1953 = vpop.f32.mrf.mxu0
    %v1954 = vadd.f32 %v982, %v1953
    %v1955 = vpop.f32.mrf.mxu0
    %v1956 = vadd.f32 %v986, %v1955
    %v1957 = vpop.f32.mrf.mxu0
    %v1958 = vadd.f32 %v982, %v1957
    %v1959 = vpop.f32.mrf.mxu0
    %v1960 = vadd.f32 %v986, %v1959
    %1961 = vmatprep.mubr.bf16.mxu0 %v1494
    %1962 = vmatmul.mubr.bf16.gmra.mxu0 %v1493
    %v1963 = vpop.f32.mrf.mxu0
    %v1964 = vadd.f32 %v982, %v1963
    %v1965 = vpop.f32.mrf.mxu0
    %v1966 = vadd.f32 %v986, %v1965
    %v1967 = vpop.f32.mrf.mxu0
    %v1968 = vadd.f32 %v982, %v1967
    %v1969 = vpop.f32.mrf.mxu0
    %v1970 = vadd.f32 %v986, %v1969
    %1971 = vmatprep.mubr.bf16.mxu0 %v1498
    %1972 = vmatmul.mubr.bf16.gmra.mxu0 %v1497
    %v1973 = vpop.f32.mrf.mxu0
    %v1974 = vadd.f32 %v982, %v1973
    %v1975 = vpop.f32.mrf.mxu0
    %v1976 = vadd.f32 %v986, %v1975
    %v1977 = vpop.f32.mrf.mxu0
    %v1978 = vadd.f32 %v982, %v1977
    %v1979 = vpop.f32.mrf.mxu0
    %v1980 = vadd.f32 %v986, %v1979
    %1981 = vdwg.mxu0
    %1982 = vmatprep.subr.bf16.mxu0 %v960
    %1983 = vmatpush1.bf16.msra.mxu0 %v959
    %1984 = vmatprep.subr.bf16.mxu0 %v958
    %1985 = vmatpush1.bf16.msra.mxu0 %v957
    %1986 = vmatprep.subr.bf16.mxu0 %v956
    %1987 = vmatpush1.bf16.msra.mxu0 %v955
    %1988 = vmatprep.subr.bf16.mxu0 %v954
    %1989 = vmatpush1.bf16.msra.mxu0 %v953
    %1990 = vmatprep.subr.bf16.mxu0 %v952
    %1991 = vmatpush1.bf16.msra.mxu0 %v951
    %1992 = vmatprep.subr.bf16.mxu0 %v950
    %1993 = vmatpush1.bf16.msra.mxu0 %v949
    %1994 = vmatprep.subr.bf16.mxu0 %v948
    %1995 = vmatpush1.bf16.msra.mxu0 %v947
    %1996 = vmatprep.subr.bf16.mxu0 %v946
    %1997 = vmatpush1.bf16.msra.mxu0 %v945
    %1998 = vmatprep.subr.bf16.mxu0 %v976
    %1999 = vmatpush2.bf16.msra.mxu0 %v975
    %2000 = vmatprep.subr.bf16.mxu0 %v974
    %2001 = vmatpush2.bf16.msra.mxu0 %v973
    %2002 = vmatprep.subr.bf16.mxu0 %v972
    %2003 = vmatpush2.bf16.msra.mxu0 %v971
    %2004 = vmatprep.subr.bf16.mxu0 %v970
    %2005 = vmatpush2.bf16.msra.mxu0 %v969
    %2006 = vmatprep.subr.bf16.mxu0 %v968
    %2007 = vmatpush2.bf16.msra.mxu0 %v967
    %2008 = vmatprep.subr.bf16.mxu0 %v966
    %2009 = vmatpush2.bf16.msra.mxu0 %v965
    %2010 = vmatprep.subr.bf16.mxu0 %v964
    %2011 = vmatpush2.bf16.msra.mxu0 %v963
    %2012 = vmatprep.subr.bf16.mxu0 %v962
    %2013 = vmatpush2.bf16.msra.mxu0 %v961
    %2014 = vmatprep.mubr.bf16.mxu0 %v1376
    %2015 = vmatmul.mubr.bf16.gmra.mxu0 %v1375
    %v2016 = vpop.f32.mrf.mxu0
    %v2017 = vadd.f32 %v1664, %v2016
    %v2018 = vpop.f32.mrf.mxu0
    %v2019 = vadd.f32 %v1666, %v2018
    %v2020 = vpop.f32.mrf.mxu0
    %v2021 = vadd.f32 %v1668, %v2020
    %v2022 = vpop.f32.mrf.mxu0
    %v2023 = vadd.f32 %v1670, %v2022
    %2024 = vmatprep.mubr.bf16.mxu0 %v1380
    %2025 = vmatmul.mubr.bf16.gmra.mxu0 %v1379
    %v2026 = vpop.f32.mrf.mxu0
    %v2027 = vadd.f32 %v1674, %v2026
    %v2028 = vpop.f32.mrf.mxu0
    %v2029 = vadd.f32 %v1676, %v2028
    %v2030 = vpop.f32.mrf.mxu0
    %v2031 = vadd.f32 %v1678, %v2030
    %v2032 = vpop.f32.mrf.mxu0
    %v2033 = vadd.f32 %v1680, %v2032
    %2034 = vmatprep.mubr.bf16.mxu0 %v1384
    %2035 = vmatmul.mubr.bf16.gmra.mxu0 %v1383
    %v2036 = vpop.f32.mrf.mxu0
    %v2037 = vadd.f32 %v1684, %v2036
    %v2038 = vpop.f32.mrf.mxu0
    %v2039 = vadd.f32 %v1686, %v2038
    %v2040 = vpop.f32.mrf.mxu0
    %v2041 = vadd.f32 %v1688, %v2040
    %v2042 = vpop.f32.mrf.mxu0
    %v2043 = vadd.f32 %v1690, %v2042
    %2044 = vmatprep.mubr.bf16.mxu0 %v1388
    %2045 = vmatmul.mubr.bf16.gmra.mxu0 %v1387
    %v2046 = vpop.f32.mrf.mxu0
    %v2047 = vadd.f32 %v1694, %v2046
    %v2048 = vpop.f32.mrf.mxu0
    %v2049 = vadd.f32 %v1696, %v2048
    %v2050 = vpop.f32.mrf.mxu0
    %v2051 = vadd.f32 %v1698, %v2050
    %v2052 = vpop.f32.mrf.mxu0
    %v2053 = vadd.f32 %v1700, %v2052
    %2054 = vmatprep.mubr.bf16.mxu0 %v1392
    %2055 = vmatmul.mubr.bf16.gmra.mxu0 %v1391
    %v2056 = vpop.f32.mrf.mxu0
    %v2057 = vadd.f32 %v1704, %v2056
    %v2058 = vpop.f32.mrf.mxu0
    %v2059 = vadd.f32 %v1706, %v2058
    %v2060 = vpop.f32.mrf.mxu0
    %v2061 = vadd.f32 %v1708, %v2060
    %v2062 = vpop.f32.mrf.mxu0
    %v2063 = vadd.f32 %v1710, %v2062
    %2064 = vmatprep.mubr.bf16.mxu0 %v1396
    %2065 = vmatmul.mubr.bf16.gmra.mxu0 %v1395
    %v2066 = vpop.f32.mrf.mxu0
    %v2067 = vadd.f32 %v1714, %v2066
    %v2068 = vpop.f32.mrf.mxu0
    %v2069 = vadd.f32 %v1716, %v2068
    %v2070 = vpop.f32.mrf.mxu0
    %v2071 = vadd.f32 %v1718, %v2070
    %v2072 = vpop.f32.mrf.mxu0
    %v2073 = vadd.f32 %v1720, %v2072
    %2074 = vmatprep.mubr.bf16.mxu0 %v1400
    %2075 = vmatmul.mubr.bf16.gmra.mxu0 %v1399
    %v2076 = vpop.f32.mrf.mxu0
    %v2077 = vadd.f32 %v1724, %v2076
    %v2078 = vpop.f32.mrf.mxu0
    %v2079 = vadd.f32 %v1726, %v2078
    %v2080 = vpop.f32.mrf.mxu0
    %v2081 = vadd.f32 %v1728, %v2080
    %v2082 = vpop.f32.mrf.mxu0
    %v2083 = vadd.f32 %v1730, %v2082
    %2084 = vmatprep.mubr.bf16.mxu0 %v1404
    %2085 = vmatmul.mubr.bf16.gmra.mxu0 %v1403
    %v2086 = vpop.f32.mrf.mxu0
    %v2087 = vadd.f32 %v1734, %v2086
    %v2088 = vpop.f32.mrf.mxu0
    %v2089 = vadd.f32 %v1736, %v2088
    %v2090 = vpop.f32.mrf.mxu0
    %v2091 = vadd.f32 %v1738, %v2090
    %v2092 = vpop.f32.mrf.mxu0
    %v2093 = vadd.f32 %v1740, %v2092
    %2094 = vmatprep.mubr.bf16.mxu0 %v1408
    %2095 = vmatmul.mubr.bf16.gmra.mxu0 %v1407
    %v2096 = vpop.f32.mrf.mxu0
    %v2097 = vadd.f32 %v1744, %v2096
    %v2098 = vpop.f32.mrf.mxu0
    %v2099 = vadd.f32 %v1746, %v2098
    %v2100 = vpop.f32.mrf.mxu0
    %v2101 = vadd.f32 %v1748, %v2100
    %v2102 = vpop.f32.mrf.mxu0
    %v2103 = vadd.f32 %v1750, %v2102
    %2104 = vmatprep.mubr.bf16.mxu0 %v1412
    %2105 = vmatmul.mubr.bf16.gmra.mxu0 %v1411
    %v2106 = vpop.f32.mrf.mxu0
    %v2107 = vadd.f32 %v1754, %v2106
    %v2108 = vpop.f32.mrf.mxu0
    %v2109 = vadd.f32 %v1756, %v2108
    %v2110 = vpop.f32.mrf.mxu0
    %v2111 = vadd.f32 %v1758, %v2110
    %v2112 = vpop.f32.mrf.mxu0
    %v2113 = vadd.f32 %v1760, %v2112
    %2114 = vmatprep.mubr.bf16.mxu0 %v1416
    %2115 = vmatmul.mubr.bf16.gmra.mxu0 %v1415
    %v2116 = vpop.f32.mrf.mxu0
    %v2117 = vadd.f32 %v1764, %v2116
    %v2118 = vpop.f32.mrf.mxu0
    %v2119 = vadd.f32 %v1766, %v2118
    %v2120 = vpop.f32.mrf.mxu0
    %v2121 = vadd.f32 %v1768, %v2120
    %v2122 = vpop.f32.mrf.mxu0
    %v2123 = vadd.f32 %v1770, %v2122
    %2124 = vmatprep.mubr.bf16.mxu0 %v1420
    %2125 = vmatmul.mubr.bf16.gmra.mxu0 %v1419
    %v2126 = vpop.f32.mrf.mxu0
    %v2127 = vadd.f32 %v1774, %v2126
    %v2128 = vpop.f32.mrf.mxu0
    %v2129 = vadd.f32 %v1776, %v2128
    %v2130 = vpop.f32.mrf.mxu0
    %v2131 = vadd.f32 %v1778, %v2130
    %v2132 = vpop.f32.mrf.mxu0
    %v2133 = vadd.f32 %v1780, %v2132
    %2134 = vmatprep.mubr.bf16.mxu0 %v1424
    %2135 = vmatmul.mubr.bf16.gmra.mxu0 %v1423
    %v2136 = vpop.f32.mrf.mxu0
    %v2137 = vadd.f32 %v1784, %v2136
    %v2138 = vpop.f32.mrf.mxu0
    %v2139 = vadd.f32 %v1786, %v2138
    %v2140 = vpop.f32.mrf.mxu0
    %v2141 = vadd.f32 %v1788, %v2140
    %v2142 = vpop.f32.mrf.mxu0
    %v2143 = vadd.f32 %v1790, %v2142
    %2144 = vmatprep.mubr.bf16.mxu0 %v1428
    %2145 = vmatmul.mubr.bf16.gmra.mxu0 %v1427
    %v2146 = vpop.f32.mrf.mxu0
    %v2147 = vadd.f32 %v1794, %v2146
    %v2148 = vpop.f32.mrf.mxu0
    %v2149 = vadd.f32 %v1796, %v2148
    %v2150 = vpop.f32.mrf.mxu0
    %v2151 = vadd.f32 %v1798, %v2150
    %v2152 = vpop.f32.mrf.mxu0
    %v2153 = vadd.f32 %v1800, %v2152
    %2154 = vmatprep.mubr.bf16.mxu0 %v1432
    %2155 = vmatmul.mubr.bf16.gmra.mxu0 %v1431
    %v2156 = vpop.f32.mrf.mxu0
    %v2157 = vadd.f32 %v1804, %v2156
    %v2158 = vpop.f32.mrf.mxu0
    %v2159 = vadd.f32 %v1806, %v2158
    %v2160 = vpop.f32.mrf.mxu0
    %v2161 = vadd.f32 %v1808, %v2160
    %v2162 = vpop.f32.mrf.mxu0
    %v2163 = vadd.f32 %v1810, %v2162
    %2164 = vmatprep.mubr.bf16.mxu0 %v1436
    %2165 = vmatmul.mubr.bf16.gmra.mxu0 %v1435
    %v2166 = vpop.f32.mrf.mxu0
    %v2167 = vadd.f32 %v1814, %v2166
    %v2168 = vpop.f32.mrf.mxu0
    %v2169 = vadd.f32 %v1816, %v2168
    %v2170 = vpop.f32.mrf.mxu0
    %v2171 = vadd.f32 %v1818, %v2170
    %v2172 = vpop.f32.mrf.mxu0
    %v2173 = vadd.f32 %v1820, %v2172
    %2174 = vmatprep.mubr.bf16.mxu0 %v1440
    %2175 = vmatmul.mubr.bf16.gmra.mxu0 %v1439
    %v2176 = vpop.f32.mrf.mxu0
    %v2177 = vadd.f32 %v1824, %v2176
    %v2178 = vpop.f32.mrf.mxu0
    %v2179 = vadd.f32 %v1826, %v2178
    %v2180 = vpop.f32.mrf.mxu0
    %v2181 = vadd.f32 %v1828, %v2180
    %v2182 = vpop.f32.mrf.mxu0
    %v2183 = vadd.f32 %v1830, %v2182
    %2184 = vmatprep.mubr.bf16.mxu0 %v1444
    %2185 = vmatmul.mubr.bf16.gmra.mxu0 %v1443
    %v2186 = vpop.f32.mrf.mxu0
    %v2187 = vadd.f32 %v1834, %v2186
    %v2188 = vpop.f32.mrf.mxu0
    %v2189 = vadd.f32 %v1836, %v2188
    %v2190 = vpop.f32.mrf.mxu0
    %v2191 = vadd.f32 %v1838, %v2190
    %v2192 = vpop.f32.mrf.mxu0
    %v2193 = vadd.f32 %v1840, %v2192
    %2194 = vmatprep.mubr.bf16.mxu0 %v1448
    %2195 = vmatmul.mubr.bf16.gmra.mxu0 %v1447
    %v2196 = vpop.f32.mrf.mxu0
    %v2197 = vadd.f32 %v1844, %v2196
    %v2198 = vpop.f32.mrf.mxu0
    %v2199 = vadd.f32 %v1846, %v2198
    %v2200 = vpop.f32.mrf.mxu0
    %v2201 = vadd.f32 %v1848, %v2200
    %v2202 = vpop.f32.mrf.mxu0
    %v2203 = vadd.f32 %v1850, %v2202
    %2204 = vmatprep.mubr.bf16.mxu0 %v1452
    %2205 = vmatmul.mubr.bf16.gmra.mxu0 %v1451
    %v2206 = vpop.f32.mrf.mxu0
    %v2207 = vadd.f32 %v1854, %v2206
    %v2208 = vpop.f32.mrf.mxu0
    %v2209 = vadd.f32 %v1856, %v2208
    %v2210 = vpop.f32.mrf.mxu0
    %v2211 = vadd.f32 %v1858, %v2210
    %v2212 = vpop.f32.mrf.mxu0
    %v2213 = vadd.f32 %v1860, %v2212
    %2214 = vmatprep.mubr.bf16.mxu0 %v1456
    %2215 = vmatmul.mubr.bf16.gmra.mxu0 %v1455
    %v2216 = vpop.f32.mrf.mxu0
    %v2217 = vadd.f32 %v1864, %v2216
    %v2218 = vpop.f32.mrf.mxu0
    %v2219 = vadd.f32 %v1866, %v2218
    %v2220 = vpop.f32.mrf.mxu0
    %v2221 = vadd.f32 %v1868, %v2220
    %v2222 = vpop.f32.mrf.mxu0
    %v2223 = vadd.f32 %v1870, %v2222
    %2224 = vmatprep.mubr.bf16.mxu0 %v1460
    %2225 = vmatmul.mubr.bf16.gmra.mxu0 %v1459
    %v2226 = vpop.f32.mrf.mxu0
    %v2227 = vadd.f32 %v1874, %v2226
    %v2228 = vpop.f32.mrf.mxu0
    %v2229 = vadd.f32 %v1876, %v2228
    %v2230 = vpop.f32.mrf.mxu0
    %v2231 = vadd.f32 %v1878, %v2230
    %v2232 = vpop.f32.mrf.mxu0
    %v2233 = vadd.f32 %v1880, %v2232
    %2234 = vmatprep.mubr.bf16.mxu0 %v1464
    %2235 = vmatmul.mubr.bf16.gmra.mxu0 %v1463
    %v2236 = vpop.f32.mrf.mxu0
    %v2237 = vadd.f32 %v1884, %v2236
    %v2238 = vpop.f32.mrf.mxu0
    %v2239 = vadd.f32 %v1886, %v2238
    %v2240 = vpop.f32.mrf.mxu0
    %v2241 = vadd.f32 %v1888, %v2240
    %v2242 = vpop.f32.mrf.mxu0
    %v2243 = vadd.f32 %v1890, %v2242
    %2244 = vmatprep.mubr.bf16.mxu0 %v1468
    %2245 = vmatmul.mubr.bf16.gmra.mxu0 %v1467
    %v2246 = vpop.f32.mrf.mxu0
    %v2247 = vadd.f32 %v1894, %v2246
    %v2248 = vpop.f32.mrf.mxu0
    %v2249 = vadd.f32 %v1896, %v2248
    %v2250 = vpop.f32.mrf.mxu0
    %v2251 = vadd.f32 %v1898, %v2250
    %v2252 = vpop.f32.mrf.mxu0
    %v2253 = vadd.f32 %v1900, %v2252
    %2254 = vmatprep.mubr.bf16.mxu0 %v1472
    %2255 = vmatmul.mubr.bf16.gmra.mxu0 %v1471
    %v2256 = vpop.f32.mrf.mxu0
    %v2257 = vadd.f32 %v1904, %v2256
    %v2258 = vpop.f32.mrf.mxu0
    %v2259 = vadd.f32 %v1906, %v2258
    %v2260 = vpop.f32.mrf.mxu0
    %v2261 = vadd.f32 %v1908, %v2260
    %v2262 = vpop.f32.mrf.mxu0
    %v2263 = vadd.f32 %v1910, %v2262
    %2264 = vmatprep.mubr.bf16.mxu0 %v1476
    %2265 = vmatmul.mubr.bf16.gmra.mxu0 %v1475
    %v2266 = vpop.f32.mrf.mxu0
    %v2267 = vadd.f32 %v1914, %v2266
    %v2268 = vpop.f32.mrf.mxu0
    %v2269 = vadd.f32 %v1916, %v2268
    %v2270 = vpop.f32.mrf.mxu0
    %v2271 = vadd.f32 %v1918, %v2270
    %v2272 = vpop.f32.mrf.mxu0
    %v2273 = vadd.f32 %v1920, %v2272
    %2274 = vmatprep.mubr.bf16.mxu0 %v1480
    %2275 = vmatmul.mubr.bf16.gmra.mxu0 %v1479
    %v2276 = vpop.f32.mrf.mxu0
    %v2277 = vadd.f32 %v1924, %v2276
    %v2278 = vpop.f32.mrf.mxu0
    %v2279 = vadd.f32 %v1926, %v2278
    %v2280 = vpop.f32.mrf.mxu0
    %v2281 = vadd.f32 %v1928, %v2280
    %v2282 = vpop.f32.mrf.mxu0
    %v2283 = vadd.f32 %v1930, %v2282
    %2284 = vmatprep.mubr.bf16.mxu0 %v1484
    %2285 = vmatmul.mubr.bf16.gmra.mxu0 %v1483
    %v2286 = vpop.f32.mrf.mxu0
    %v2287 = vadd.f32 %v1934, %v2286
    %v2288 = vpop.f32.mrf.mxu0
    %v2289 = vadd.f32 %v1936, %v2288
    %v2290 = vpop.f32.mrf.mxu0
    %v2291 = vadd.f32 %v1938, %v2290
    %v2292 = vpop.f32.mrf.mxu0
    %v2293 = vadd.f32 %v1940, %v2292
    %2294 = vmatprep.mubr.bf16.mxu0 %v1488
    %2295 = vmatmul.mubr.bf16.gmra.mxu0 %v1487
    %v2296 = vpop.f32.mrf.mxu0
    %v2297 = vadd.f32 %v1944, %v2296
    %v2298 = vpop.f32.mrf.mxu0
    %v2299 = vadd.f32 %v1946, %v2298
    %v2300 = vpop.f32.mrf.mxu0
    %v2301 = vadd.f32 %v1948, %v2300
    %v2302 = vpop.f32.mrf.mxu0
    %v2303 = vadd.f32 %v1950, %v2302
    %2304 = vmatprep.mubr.bf16.mxu0 %v1492
    %2305 = vmatmul.mubr.bf16.gmra.mxu0 %v1491
    %v2306 = vpop.f32.mrf.mxu0
    %v2307 = vadd.f32 %v1954, %v2306
    %v2308 = vpop.f32.mrf.mxu0
    %v2309 = vadd.f32 %v1956, %v2308
    %v2310 = vpop.f32.mrf.mxu0
    %v2311 = vadd.f32 %v1958, %v2310
    %v2312 = vpop.f32.mrf.mxu0
    %v2313 = vadd.f32 %v1960, %v2312
    %2314 = vmatprep.mubr.bf16.mxu0 %v1496
    %2315 = vmatmul.mubr.bf16.gmra.mxu0 %v1495
    %v2316 = vpop.f32.mrf.mxu0
    %v2317 = vadd.f32 %v1964, %v2316
    %v2318 = vpop.f32.mrf.mxu0
    %v2319 = vadd.f32 %v1966, %v2318
    %v2320 = vpop.f32.mrf.mxu0
    %v2321 = vadd.f32 %v1968, %v2320
    %v2322 = vpop.f32.mrf.mxu0
    %v2323 = vadd.f32 %v1970, %v2322
    %2324 = vmatprep.mubr.bf16.mxu0 %v1500
    %2325 = vmatmul.mubr.bf16.gmra.mxu0 %v1499
    %v2326 = vpop.f32.mrf.mxu0
    %v2327 = vadd.f32 %v1974, %v2326
    %v2328 = vpop.f32.mrf.mxu0
    %v2329 = vadd.f32 %v1976, %v2328
    %v2330 = vpop.f32.mrf.mxu0
    %v2331 = vadd.f32 %v1978, %v2330
    %v2332 = vpop.f32.mrf.mxu0
    %v2333 = vadd.f32 %v1980, %v2332
    %2334 = vdwg.mxu0
    %v2335 = vmax.f32 %v2017, 0.0
    %v2336 = vmax.f32 %v2019, 0.0
    %v2337 = vmax.f32 %v2021, 0.0
    %v2338 = vmax.f32 %v2023, 0.0
    %v2339 = vmax.f32 %v2027, 0.0
    %v2340 = vmax.f32 %v2029, 0.0
    %v2341 = vmax.f32 %v2031, 0.0
    %v2342 = vmax.f32 %v2033, 0.0
    %v2343 = vmax.f32 %v2037, 0.0
    %v2344 = vmax.f32 %v2039, 0.0
    %v2345 = vmax.f32 %v2041, 0.0
    %v2346 = vmax.f32 %v2043, 0.0
    %v2347 = vmax.f32 %v2047, 0.0
    %v2348 = vmax.f32 %v2049, 0.0
    %v2349 = vmax.f32 %v2051, 0.0
    %v2350 = vmax.f32 %v2053, 0.0
    %v2351 = vmax.f32 %v2057, 0.0
    %v2352 = vmax.f32 %v2059, 0.0
    %v2353 = vmax.f32 %v2061, 0.0
    %v2354 = vmax.f32 %v2063, 0.0
    %v2355 = vmax.f32 %v2067, 0.0
    %v2356 = vmax.f32 %v2069, 0.0
    %v2357 = vmax.f32 %v2071, 0.0
    %v2358 = vmax.f32 %v2073, 0.0
    %v2359 = vmax.f32 %v2077, 0.0
    %v2360 = vmax.f32 %v2079, 0.0
    %v2361 = vmax.f32 %v2081, 0.0
    %v2362 = vmax.f32 %v2083, 0.0
    %v2363 = vmax.f32 %v2087, 0.0
    %v2364 = vmax.f32 %v2089, 0.0
    %v2365 = vmax.f32 %v2091, 0.0
    %v2366 = vmax.f32 %v2093, 0.0
    %v2367 = vmax.f32 %v2097, 0.0
    %v2368 = vmax.f32 %v2099, 0.0
    %v2369 = vmax.f32 %v2101, 0.0
    %v2370 = vmax.f32 %v2103, 0.0
    %v2371 = vmax.f32 %v2107, 0.0
    %v2372 = vmax.f32 %v2109, 0.0
    %v2373 = vmax.f32 %v2111, 0.0
    %v2374 = vmax.f32 %v2113, 0.0
    %v2375 = vmax.f32 %v2117, 0.0
    %v2376 = vmax.f32 %v2119, 0.0
    %v2377 = vmax.f32 %v2121, 0.0
    %v2378 = vmax.f32 %v2123, 0.0
    %v2379 = vmax.f32 %v2127, 0.0
    %v2380 = vmax.f32 %v2129, 0.0
    %v2381 = vmax.f32 %v2131, 0.0
    %v2382 = vmax.f32 %v2133, 0.0
    %v2383 = vmax.f32 %v2137, 0.0
    %v2384 = vmax.f32 %v2139, 0.0
    %v2385 = vmax.f32 %v2141, 0.0
    %v2386 = vmax.f32 %v2143, 0.0
    %v2387 = vmax.f32 %v2147, 0.0
    %v2388 = vmax.f32 %v2149, 0.0
    %v2389 = vmax.f32 %v2151, 0.0
    %v2390 = vmax.f32 %v2153, 0.0
    %v2391 = vmax.f32 %v2157, 0.0
    %v2392 = vmax.f32 %v2159, 0.0
    %v2393 = vmax.f32 %v2161, 0.0
    %v2394 = vmax.f32 %v2163, 0.0
    %v2395 = vmax.f32 %v2167, 0.0
    %v2396 = vmax.f32 %v2169, 0.0
    %v2397 = vmax.f32 %v2171, 0.0
    %v2398 = vmax.f32 %v2173, 0.0
    %v2399 = vmax.f32 %v2177, 0.0
    %v2400 = vmax.f32 %v2179, 0.0
    %v2401 = vmax.f32 %v2181, 0.0
    %v2402 = vmax.f32 %v2183, 0.0
    %v2403 = vmax.f32 %v2187, 0.0
    %v2404 = vmax.f32 %v2189, 0.0
    %v2405 = vmax.f32 %v2191, 0.0
    %v2406 = vmax.f32 %v2193, 0.0
    %v2407 = vmax.f32 %v2197, 0.0
    %v2408 = vmax.f32 %v2199, 0.0
    %v2409 = vmax.f32 %v2201, 0.0
    %v2410 = vmax.f32 %v2203, 0.0
    %v2411 = vmax.f32 %v2207, 0.0
    %v2412 = vmax.f32 %v2209, 0.0
    %v2413 = vmax.f32 %v2211, 0.0
    %v2414 = vmax.f32 %v2213, 0.0
    %v2415 = vmax.f32 %v2217, 0.0
    %v2416 = vmax.f32 %v2219, 0.0
    %v2417 = vmax.f32 %v2221, 0.0
    %v2418 = vmax.f32 %v2223, 0.0
    %v2419 = vmax.f32 %v2227, 0.0
    %v2420 = vmax.f32 %v2229, 0.0
    %v2421 = vmax.f32 %v2231, 0.0
    %v2422 = vmax.f32 %v2233, 0.0
    %v2423 = vmax.f32 %v2237, 0.0
    %v2424 = vmax.f32 %v2239, 0.0
    %v2425 = vmax.f32 %v2241, 0.0
    %v2426 = vmax.f32 %v2243, 0.0
    %v2427 = vmax.f32 %v2247, 0.0
    %v2428 = vmax.f32 %v2249, 0.0
    %v2429 = vmax.f32 %v2251, 0.0
    %v2430 = vmax.f32 %v2253, 0.0
    %v2431 = vmax.f32 %v2257, 0.0
    %v2432 = vmax.f32 %v2259, 0.0
    %v2433 = vmax.f32 %v2261, 0.0
    %v2434 = vmax.f32 %v2263, 0.0
    %v2435 = vmax.f32 %v2267, 0.0
    %v2436 = vmax.f32 %v2269, 0.0
    %v2437 = vmax.f32 %v2271, 0.0
    %v2438 = vmax.f32 %v2273, 0.0
    %v2439 = vmax.f32 %v2277, 0.0
    %v2440 = vmax.f32 %v2279, 0.0
    %v2441 = vmax.f32 %v2281, 0.0
    %v2442 = vmax.f32 %v2283, 0.0
    %v2443 = vmax.f32 %v2287, 0.0
    %v2444 = vmax.f32 %v2289, 0.0
    %v2445 = vmax.f32 %v2291, 0.0
    %v2446 = vmax.f32 %v2293, 0.0
    %v2447 = vmax.f32 %v2297, 0.0
    %v2448 = vmax.f32 %v2299, 0.0
    %v2449 = vmax.f32 %v2301, 0.0
    %v2450 = vmax.f32 %v2303, 0.0
    %v2451 = vmax.f32 %v2307, 0.0
    %v2452 = vmax.f32 %v2309, 0.0
    %v2453 = vmax.f32 %v2311, 0.0
    %v2454 = vmax.f32 %v2313, 0.0
    %v2455 = vmax.f32 %v2317, 0.0
    %v2456 = vmax.f32 %v2319, 0.0
    %v2457 = vmax.f32 %v2321, 0.0
    %v2458 = vmax.f32 %v2323, 0.0
    %v2459 = vmax.f32 %v2327, 0.0
    %v2460 = vmax.f32 %v2329, 0.0
    %v2461 = vmax.f32 %v2331, 0.0
    %v2462 = vmax.f32 %v2333, 0.0
    %v2463 = vpack.c.bf16 %v2337, %v2335
    %v2464 = vpack.c.bf16 %v2338, %v2336
    %v2465 = vpack.c.bf16 %v2341, %v2339
    %v2466 = vpack.c.bf16 %v2342, %v2340
    %v2467 = vpack.c.bf16 %v2345, %v2343
    %v2468 = vpack.c.bf16 %v2346, %v2344
    %v2469 = vpack.c.bf16 %v2349, %v2347
    %v2470 = vpack.c.bf16 %v2350, %v2348
    %v2471 = vpack.c.bf16 %v2353, %v2351
    %v2472 = vpack.c.bf16 %v2354, %v2352
    %v2473 = vpack.c.bf16 %v2357, %v2355
    %v2474 = vpack.c.bf16 %v2358, %v2356
    %v2475 = vpack.c.bf16 %v2361, %v2359
    %v2476 = vpack.c.bf16 %v2362, %v2360
    %v2477 = vpack.c.bf16 %v2365, %v2363
    %v2478 = vpack.c.bf16 %v2366, %v2364
    %v2479 = vpack.c.bf16 %v2369, %v2367
    %v2480 = vpack.c.bf16 %v2370, %v2368
    %v2481 = vpack.c.bf16 %v2373, %v2371
    %v2482 = vpack.c.bf16 %v2374, %v2372
    %v2483 = vpack.c.bf16 %v2377, %v2375
    %v2484 = vpack.c.bf16 %v2378, %v2376
    %v2485 = vpack.c.bf16 %v2381, %v2379
    %v2486 = vpack.c.bf16 %v2382, %v2380
    %v2487 = vpack.c.bf16 %v2385, %v2383
    %v2488 = vpack.c.bf16 %v2386, %v2384
    %v2489 = vpack.c.bf16 %v2389, %v2387
    %v2490 = vpack.c.bf16 %v2390, %v2388
    %v2491 = vpack.c.bf16 %v2393, %v2391
    %v2492 = vpack.c.bf16 %v2394, %v2392
    %v2493 = vpack.c.bf16 %v2397, %v2395
    %v2494 = vpack.c.bf16 %v2398, %v2396
    %v2495 = vpack.c.bf16 %v2401, %v2399
    %v2496 = vpack.c.bf16 %v2402, %v2400
    %v2497 = vpack.c.bf16 %v2405, %v2403
    %v2498 = vpack.c.bf16 %v2406, %v2404
    %v2499 = vpack.c.bf16 %v2409, %v2407
    %v2500 = vpack.c.bf16 %v2410, %v2408
    %v2501 = vpack.c.bf16 %v2413, %v2411
    %v2502 = vpack.c.bf16 %v2414, %v2412
    %v2503 = vpack.c.bf16 %v2417, %v2415
    %v2504 = vpack.c.bf16 %v2418, %v2416
    %v2505 = vpack.c.bf16 %v2421, %v2419
    %v2506 = vpack.c.bf16 %v2422, %v2420
    %v2507 = vpack.c.bf16 %v2425, %v2423
    %v2508 = vpack.c.bf16 %v2426, %v2424
    %v2509 = vpack.c.bf16 %v2429, %v2427
    %v2510 = vpack.c.bf16 %v2430, %v2428
    %v2511 = vpack.c.bf16 %v2433, %v2431
    %v2512 = vpack.c.bf16 %v2434, %v2432
    %v2513 = vpack.c.bf16 %v2437, %v2435
    %v2514 = vpack.c.bf16 %v2438, %v2436
    %v2515 = vpack.c.bf16 %v2441, %v2439
    %v2516 = vpack.c.bf16 %v2442, %v2440
    %v2517 = vpack.c.bf16 %v2445, %v2443
    %v2518 = vpack.c.bf16 %v2446, %v2444
    %v2519 = vpack.c.bf16 %v2449, %v2447
    %v2520 = vpack.c.bf16 %v2450, %v2448
    %v2521 = vpack.c.bf16 %v2453, %v2451
    %v2522 = vpack.c.bf16 %v2454, %v2452
    %v2523 = vpack.c.bf16 %v2457, %v2455
    %v2524 = vpack.c.bf16 %v2458, %v2456
    %v2525 = vpack.c.bf16 %v2461, %v2459
    %v2526 = vpack.c.bf16 %v2462, %v2460
    %v2527 = vld [vmem:[#allocation8] sm:$0xf]
    %v2528 = vld [vmem:[#allocation8 + $0x4] sm:$0xf]
    %v2529 = vld [vmem:[#allocation8 + $0x8] sm:$0xf]
    %v2530 = vld [vmem:[#allocation8 + $0xc] sm:$0xf]
    %v2531 = vld [vmem:[#allocation8 + $0x10] sm:$0xf]
    %v2532 = vld [vmem:[#allocation8 + $0x14] sm:$0xf]
    %v2533 = vld [vmem:[#allocation8 + $0x18] sm:$0xf]
    %v2534 = vld [vmem:[#allocation8 + $0x1c] sm:$0xf]
    %v2535 = vld [vmem:[#allocation8 + $0x20] sm:$0xf]
    %v2536 = vld [vmem:[#allocation8 + $0x24] sm:$0xf]
    %v2537 = vld [vmem:[#allocation8 + $0x28] sm:$0xf]
    %v2538 = vld [vmem:[#allocation8 + $0x2c] sm:$0xf]
    %v2539 = vld [vmem:[#allocation8 + $0x30] sm:$0xf]
    %v2540 = vld [vmem:[#allocation8 + $0x34] sm:$0xf]
    %v2541 = vld [vmem:[#allocation8 + $0x38] sm:$0xf]
    %v2542 = vld [vmem:[#allocation8 + $0x3c] sm:$0xf]
    %v2543 = vld [vmem:[#allocation8 + $0x40] sm:$0xf]
    %v2544 = vld [vmem:[#allocation8 + $0x44] sm:$0xf]
    %v2545 = vld [vmem:[#allocation8 + $0x48] sm:$0xf]
    %v2546 = vld [vmem:[#allocation8 + $0x4c] sm:$0xf]
    %v2547 = vld [vmem:[#allocation8 + $0x50] sm:$0xf]
    %v2548 = vld [vmem:[#allocation8 + $0x54] sm:$0xf]
    %v2549 = vld [vmem:[#allocation8 + $0x58] sm:$0xf]
    %v2550 = vld [vmem:[#allocation8 + $0x5c] sm:$0xf]
    %v2551 = vld [vmem:[#allocation8 + $0x60] sm:$0xf]
    %v2552 = vld [vmem:[#allocation8 + $0x64] sm:$0xf]
    %v2553 = vld [vmem:[#allocation8 + $0x68] sm:$0xf]
    %v2554 = vld [vmem:[#allocation8 + $0x6c] sm:$0xf]
    %v2555 = vld [vmem:[#allocation8 + $0x70] sm:$0xf]
    %v2556 = vld [vmem:[#allocation8 + $0x74] sm:$0xf]
    %v2557 = vld [vmem:[#allocation8 + $0x78] sm:$0xf]
    %v2558 = vld [vmem:[#allocation8 + $0x7c] sm:$0xf]
    %v2591 = vunpack.c.l.b16 %v2527
    %v2592 = vunpack.c.l.b16 %v2528
    %v2593 = vunpack.c.l.b16 %v2529
    %v2594 = vunpack.c.l.b16 %v2530
    %v2595 = vunpack.c.l.b16 %v2531
    %v2596 = vunpack.c.l.b16 %v2532
    %v2597 = vunpack.c.l.b16 %v2533
    %v2598 = vunpack.c.l.b16 %v2534
    %v2599 = vunpack.c.l.b16 %v2535
    %v2600 = vunpack.c.l.b16 %v2536
    %v2601 = vunpack.c.l.b16 %v2537
    %v2602 = vunpack.c.l.b16 %v2538
    %v2603 = vunpack.c.l.b16 %v2539
    %v2604 = vunpack.c.l.b16 %v2540
    %v2605 = vunpack.c.l.b16 %v2541
    %v2606 = vunpack.c.l.b16 %v2542
    %v2607 = vunpack.c.l.b16 %v2543
    %v2608 = vunpack.c.l.b16 %v2544
    %v2609 = vunpack.c.l.b16 %v2545
    %v2610 = vunpack.c.l.b16 %v2546
    %v2611 = vunpack.c.l.b16 %v2547
    %v2612 = vunpack.c.l.b16 %v2548
    %v2613 = vunpack.c.l.b16 %v2549
    %v2614 = vunpack.c.l.b16 %v2550
    %v2615 = vunpack.c.l.b16 %v2551
    %v2616 = vunpack.c.l.b16 %v2552
    %v2617 = vunpack.c.l.b16 %v2553
    %v2618 = vunpack.c.l.b16 %v2554
    %v2619 = vunpack.c.l.b16 %v2555
    %v2620 = vunpack.c.l.b16 %v2556
    %v2621 = vunpack.c.l.b16 %v2557
    %v2622 = vunpack.c.l.b16 %v2558
    %v2623 = vpack.c.b16 %v2592, %v2591
    %v2624 = vpack.c.b16 %v2594, %v2593
    %v2625 = vpack.c.b16 %v2596, %v2595
    %v2626 = vpack.c.b16 %v2598, %v2597
    %v2627 = vpack.c.b16 %v2600, %v2599
    %v2628 = vpack.c.b16 %v2602, %v2601
    %v2629 = vpack.c.b16 %v2604, %v2603
    %v2630 = vpack.c.b16 %v2606, %v2605
    %v2631 = vpack.c.b16 %v2608, %v2607
    %v2632 = vpack.c.b16 %v2610, %v2609
    %v2633 = vpack.c.b16 %v2612, %v2611
    %v2634 = vpack.c.b16 %v2614, %v2613
    %v2635 = vpack.c.b16 %v2616, %v2615
    %v2636 = vpack.c.b16 %v2618, %v2617
    %v2637 = vpack.c.b16 %v2620, %v2619
    %v2638 = vpack.c.b16 %v2622, %v2621
    %2655 = vmatprep.subr.bf16.mxu0 0
    %2656 = vmatpush1.bf16.msra.mxu0 %v2630
    %2657 = vmatprep.subr.bf16.mxu0 0
    %2658 = vmatpush1.bf16.msra.mxu0 %v2629
    %2659 = vmatprep.subr.bf16.mxu0 0
    %2660 = vmatpush1.bf16.msra.mxu0 %v2628
    %2661 = vmatprep.subr.bf16.mxu0 0
    %2662 = vmatpush1.bf16.msra.mxu0 %v2627
    %2663 = vmatprep.subr.bf16.mxu0 0
    %2664 = vmatpush1.bf16.msra.mxu0 %v2626
    %2665 = vmatprep.subr.bf16.mxu0 0
    %2666 = vmatpush1.bf16.msra.mxu0 %v2625
    %2667 = vmatprep.subr.bf16.mxu0 0
    %2668 = vmatpush1.bf16.msra.mxu0 %v2624
    %2669 = vmatprep.subr.bf16.mxu0 0
    %2670 = vmatpush1.bf16.msra.mxu0 %v2623
    %2671 = vmatprep.subr.bf16.mxu0 0
    %2672 = vmatpush2.bf16.msra.mxu0 %v2638
    %2673 = vmatprep.subr.bf16.mxu0 0
    %2674 = vmatpush2.bf16.msra.mxu0 %v2637
    %2675 = vmatprep.subr.bf16.mxu0 0
    %2676 = vmatpush2.bf16.msra.mxu0 %v2636
    %2677 = vmatprep.subr.bf16.mxu0 0
    %2678 = vmatpush2.bf16.msra.mxu0 %v2635
    %2679 = vmatprep.subr.bf16.mxu0 0
    %2680 = vmatpush2.bf16.msra.mxu0 %v2634
    %2681 = vmatprep.subr.bf16.mxu0 0
    %2682 = vmatpush2.bf16.msra.mxu0 %v2633
    %2683 = vmatprep.subr.bf16.mxu0 0
    %2684 = vmatpush2.bf16.msra.mxu0 %v2632
    %2685 = vmatprep.subr.bf16.mxu0 0
    %2686 = vmatpush2.bf16.msra.mxu0 %v2631
    %2687 = vmatprep.mubr.bf16.mxu0 %v2464
    %2688 = vmatmul.mubr.bf16.gmra.mxu0 %v2463
    %v2689 = vpop.f32.mrf.mxu0
    %v2690 = vadd.f32 0.0, %v2689
    %v2691 = vpop.f32.mrf.mxu0
    %v2692 = vpop.f32.mrf.mxu0
    %v2693 = vadd.f32 0.0, %v2692
    %v2694 = vpop.f32.mrf.mxu0
    %2695 = vmatprep.mubr.bf16.mxu0 %v2466
    %2696 = vmatmul.mubr.bf16.gmra.mxu0 %v2465
    %v2697 = vpop.f32.mrf.mxu0
    %v2698 = vadd.f32 0.0, %v2697
    %v2699 = vpop.f32.mrf.mxu0
    %v2700 = vpop.f32.mrf.mxu0
    %v2701 = vadd.f32 0.0, %v2700
    %v2702 = vpop.f32.mrf.mxu0
    %2703 = vmatprep.mubr.bf16.mxu0 %v2468
    %2704 = vmatmul.mubr.bf16.gmra.mxu0 %v2467
    %v2705 = vpop.f32.mrf.mxu0
    %v2706 = vadd.f32 0.0, %v2705
    %v2707 = vpop.f32.mrf.mxu0
    %v2708 = vpop.f32.mrf.mxu0
    %v2709 = vadd.f32 0.0, %v2708
    %v2710 = vpop.f32.mrf.mxu0
    %2711 = vmatprep.mubr.bf16.mxu0 %v2470
    %2712 = vmatmul.mubr.bf16.gmra.mxu0 %v2469
    %v2713 = vpop.f32.mrf.mxu0
    %v2714 = vadd.f32 0.0, %v2713
    %v2715 = vpop.f32.mrf.mxu0
    %v2716 = vpop.f32.mrf.mxu0
    %v2717 = vadd.f32 0.0, %v2716
    %v2718 = vpop.f32.mrf.mxu0
    %2719 = vmatprep.mubr.bf16.mxu0 %v2472
    %2720 = vmatmul.mubr.bf16.gmra.mxu0 %v2471
    %v2721 = vpop.f32.mrf.mxu0
    %v2722 = vadd.f32 0.0, %v2721
    %v2723 = vpop.f32.mrf.mxu0
    %v2724 = vpop.f32.mrf.mxu0
    %v2725 = vadd.f32 0.0, %v2724
    %v2726 = vpop.f32.mrf.mxu0
    %2727 = vmatprep.mubr.bf16.mxu0 %v2474
    %2728 = vmatmul.mubr.bf16.gmra.mxu0 %v2473
    %v2729 = vpop.f32.mrf.mxu0
    %v2730 = vadd.f32 0.0, %v2729
    %v2731 = vpop.f32.mrf.mxu0
    %v2732 = vpop.f32.mrf.mxu0
    %v2733 = vadd.f32 0.0, %v2732
    %v2734 = vpop.f32.mrf.mxu0
    %2735 = vmatprep.mubr.bf16.mxu0 %v2476
    %2736 = vmatmul.mubr.bf16.gmra.mxu0 %v2475
    %v2737 = vpop.f32.mrf.mxu0
    %v2738 = vadd.f32 0.0, %v2737
    %v2739 = vpop.f32.mrf.mxu0
    %v2740 = vpop.f32.mrf.mxu0
    %v2741 = vadd.f32 0.0, %v2740
    %v2742 = vpop.f32.mrf.mxu0
    %2743 = vmatprep.mubr.bf16.mxu0 %v2478
    %2744 = vmatmul.mubr.bf16.gmra.mxu0 %v2477
    %v2745 = vpop.f32.mrf.mxu0
    %v2746 = vadd.f32 0.0, %v2745
    %v2747 = vpop.f32.mrf.mxu0
    %v2748 = vpop.f32.mrf.mxu0
    %v2749 = vadd.f32 0.0, %v2748
    %v2750 = vpop.f32.mrf.mxu0
    %2751 = vmatprep.mubr.bf16.mxu0 %v2480
    %2752 = vmatmul.mubr.bf16.gmra.mxu0 %v2479
    %v2753 = vpop.f32.mrf.mxu0
    %v2754 = vadd.f32 0.0, %v2753
    %v2755 = vpop.f32.mrf.mxu0
    %v2756 = vpop.f32.mrf.mxu0
    %v2757 = vadd.f32 0.0, %v2756
    %v2758 = vpop.f32.mrf.mxu0
    %2759 = vmatprep.mubr.bf16.mxu0 %v2482
    %2760 = vmatmul.mubr.bf16.gmra.mxu0 %v2481
    %v2761 = vpop.f32.mrf.mxu0
    %v2762 = vadd.f32 0.0, %v2761
    %v2763 = vpop.f32.mrf.mxu0
    %v2764 = vpop.f32.mrf.mxu0
    %v2765 = vadd.f32 0.0, %v2764
    %v2766 = vpop.f32.mrf.mxu0
    %2767 = vmatprep.mubr.bf16.mxu0 %v2484
    %2768 = vmatmul.mubr.bf16.gmra.mxu0 %v2483
    %v2769 = vpop.f32.mrf.mxu0
    %v2770 = vadd.f32 0.0, %v2769
    %v2771 = vpop.f32.mrf.mxu0
    %v2772 = vpop.f32.mrf.mxu0
    %v2773 = vadd.f32 0.0, %v2772
    %v2774 = vpop.f32.mrf.mxu0
    %2775 = vmatprep.mubr.bf16.mxu0 %v2486
    %2776 = vmatmul.mubr.bf16.gmra.mxu0 %v2485
    %v2777 = vpop.f32.mrf.mxu0
    %v2778 = vadd.f32 0.0, %v2777
    %v2779 = vpop.f32.mrf.mxu0
    %v2780 = vpop.f32.mrf.mxu0
    %v2781 = vadd.f32 0.0, %v2780
    %v2782 = vpop.f32.mrf.mxu0
    %2783 = vmatprep.mubr.bf16.mxu0 %v2488
    %2784 = vmatmul.mubr.bf16.gmra.mxu0 %v2487
    %v2785 = vpop.f32.mrf.mxu0
    %v2786 = vadd.f32 0.0, %v2785
    %v2787 = vpop.f32.mrf.mxu0
    %v2788 = vpop.f32.mrf.mxu0
    %v2789 = vadd.f32 0.0, %v2788
    %v2790 = vpop.f32.mrf.mxu0
    %2791 = vmatprep.mubr.bf16.mxu0 %v2490
    %2792 = vmatmul.mubr.bf16.gmra.mxu0 %v2489
    %v2793 = vpop.f32.mrf.mxu0
    %v2794 = vadd.f32 0.0, %v2793
    %v2795 = vpop.f32.mrf.mxu0
    %v2796 = vpop.f32.mrf.mxu0
    %v2797 = vadd.f32 0.0, %v2796
    %v2798 = vpop.f32.mrf.mxu0
    %2799 = vmatprep.mubr.bf16.mxu0 %v2492
    %2800 = vmatmul.mubr.bf16.gmra.mxu0 %v2491
    %v2801 = vpop.f32.mrf.mxu0
    %v2802 = vadd.f32 0.0, %v2801
    %v2803 = vpop.f32.mrf.mxu0
    %v2804 = vpop.f32.mrf.mxu0
    %v2805 = vadd.f32 0.0, %v2804
    %v2806 = vpop.f32.mrf.mxu0
    %2807 = vmatprep.mubr.bf16.mxu0 %v2494
    %2808 = vmatmul.mubr.bf16.gmra.mxu0 %v2493
    %v2809 = vpop.f32.mrf.mxu0
    %v2810 = vadd.f32 0.0, %v2809
    %v2811 = vpop.f32.mrf.mxu0
    %v2812 = vpop.f32.mrf.mxu0
    %v2813 = vadd.f32 0.0, %v2812
    %v2814 = vpop.f32.mrf.mxu0
    %2815 = vmatprep.mubr.bf16.mxu0 %v2496
    %2816 = vmatmul.mubr.bf16.gmra.mxu0 %v2495
    %v2817 = vpop.f32.mrf.mxu0
    %v2818 = vadd.f32 0.0, %v2817
    %v2819 = vpop.f32.mrf.mxu0
    %v2820 = vpop.f32.mrf.mxu0
    %v2821 = vadd.f32 0.0, %v2820
    %v2822 = vpop.f32.mrf.mxu0
    %2823 = vmatprep.mubr.bf16.mxu0 %v2498
    %2824 = vmatmul.mubr.bf16.gmra.mxu0 %v2497
    %v2825 = vpop.f32.mrf.mxu0
    %v2826 = vadd.f32 0.0, %v2825
    %v2827 = vpop.f32.mrf.mxu0
    %v2828 = vpop.f32.mrf.mxu0
    %v2829 = vadd.f32 0.0, %v2828
    %v2830 = vpop.f32.mrf.mxu0
    %2831 = vmatprep.mubr.bf16.mxu0 %v2500
    %2832 = vmatmul.mubr.bf16.gmra.mxu0 %v2499
    %v2833 = vpop.f32.mrf.mxu0
    %v2834 = vadd.f32 0.0, %v2833
    %v2835 = vpop.f32.mrf.mxu0
    %v2836 = vpop.f32.mrf.mxu0
    %v2837 = vadd.f32 0.0, %v2836
    %v2838 = vpop.f32.mrf.mxu0
    %2839 = vmatprep.mubr.bf16.mxu0 %v2502
    %2840 = vmatmul.mubr.bf16.gmra.mxu0 %v2501
    %v2841 = vpop.f32.mrf.mxu0
    %v2842 = vadd.f32 0.0, %v2841
    %v2843 = vpop.f32.mrf.mxu0
    %v2844 = vpop.f32.mrf.mxu0
    %v2845 = vadd.f32 0.0, %v2844
    %v2846 = vpop.f32.mrf.mxu0
    %2847 = vmatprep.mubr.bf16.mxu0 %v2504
    %2848 = vmatmul.mubr.bf16.gmra.mxu0 %v2503
    %v2849 = vpop.f32.mrf.mxu0
    %v2850 = vadd.f32 0.0, %v2849
    %v2851 = vpop.f32.mrf.mxu0
    %v2852 = vpop.f32.mrf.mxu0
    %v2853 = vadd.f32 0.0, %v2852
    %v2854 = vpop.f32.mrf.mxu0
    %2855 = vmatprep.mubr.bf16.mxu0 %v2506
    %2856 = vmatmul.mubr.bf16.gmra.mxu0 %v2505
    %v2857 = vpop.f32.mrf.mxu0
    %v2858 = vadd.f32 0.0, %v2857
    %v2859 = vpop.f32.mrf.mxu0
    %v2860 = vpop.f32.mrf.mxu0
    %v2861 = vadd.f32 0.0, %v2860
    %v2862 = vpop.f32.mrf.mxu0
    %2863 = vmatprep.mubr.bf16.mxu0 %v2508
    %2864 = vmatmul.mubr.bf16.gmra.mxu0 %v2507
    %v2865 = vpop.f32.mrf.mxu0
    %v2866 = vadd.f32 0.0, %v2865
    %v2867 = vpop.f32.mrf.mxu0
    %v2868 = vpop.f32.mrf.mxu0
    %v2869 = vadd.f32 0.0, %v2868
    %v2870 = vpop.f32.mrf.mxu0
    %2871 = vmatprep.mubr.bf16.mxu0 %v2510
    %2872 = vmatmul.mubr.bf16.gmra.mxu0 %v2509
    %v2873 = vpop.f32.mrf.mxu0
    %v2874 = vadd.f32 0.0, %v2873
    %v2875 = vpop.f32.mrf.mxu0
    %v2876 = vpop.f32.mrf.mxu0
    %v2877 = vadd.f32 0.0, %v2876
    %v2878 = vpop.f32.mrf.mxu0
    %2879 = vmatprep.mubr.bf16.mxu0 %v2512
    %2880 = vmatmul.mubr.bf16.gmra.mxu0 %v2511
    %v2881 = vpop.f32.mrf.mxu0
    %v2882 = vadd.f32 0.0, %v2881
    %v2883 = vpop.f32.mrf.mxu0
    %v2884 = vpop.f32.mrf.mxu0
    %v2885 = vadd.f32 0.0, %v2884
    %v2886 = vpop.f32.mrf.mxu0
    %2887 = vmatprep.mubr.bf16.mxu0 %v2514
    %2888 = vmatmul.mubr.bf16.gmra.mxu0 %v2513
    %v2889 = vpop.f32.mrf.mxu0
    %v2890 = vadd.f32 0.0, %v2889
    %v2891 = vpop.f32.mrf.mxu0
    %v2892 = vpop.f32.mrf.mxu0
    %v2893 = vadd.f32 0.0, %v2892
    %v2894 = vpop.f32.mrf.mxu0
    %2895 = vmatprep.mubr.bf16.mxu0 %v2516
    %2896 = vmatmul.mubr.bf16.gmra.mxu0 %v2515
    %v2897 = vpop.f32.mrf.mxu0
    %v2898 = vadd.f32 0.0, %v2897
    %v2899 = vpop.f32.mrf.mxu0
    %v2900 = vpop.f32.mrf.mxu0
    %v2901 = vadd.f32 0.0, %v2900
    %v2902 = vpop.f32.mrf.mxu0
    %2903 = vmatprep.mubr.bf16.mxu0 %v2518
    %2904 = vmatmul.mubr.bf16.gmra.mxu0 %v2517
    %v2905 = vpop.f32.mrf.mxu0
    %v2906 = vadd.f32 0.0, %v2905
    %v2907 = vpop.f32.mrf.mxu0
    %v2908 = vpop.f32.mrf.mxu0
    %v2909 = vadd.f32 0.0, %v2908
    %v2910 = vpop.f32.mrf.mxu0
    %2911 = vmatprep.mubr.bf16.mxu0 %v2520
    %2912 = vmatmul.mubr.bf16.gmra.mxu0 %v2519
    %v2913 = vpop.f32.mrf.mxu0
    %v2914 = vadd.f32 0.0, %v2913
    %v2915 = vpop.f32.mrf.mxu0
    %v2916 = vpop.f32.mrf.mxu0
    %v2917 = vadd.f32 0.0, %v2916
    %v2918 = vpop.f32.mrf.mxu0
    %2919 = vmatprep.mubr.bf16.mxu0 %v2522
    %2920 = vmatmul.mubr.bf16.gmra.mxu0 %v2521
    %v2921 = vpop.f32.mrf.mxu0
    %v2922 = vadd.f32 0.0, %v2921
    %v2923 = vpop.f32.mrf.mxu0
    %v2924 = vpop.f32.mrf.mxu0
    %v2925 = vadd.f32 0.0, %v2924
    %v2926 = vpop.f32.mrf.mxu0
    %2927 = vmatprep.mubr.bf16.mxu0 %v2524
    %2928 = vmatmul.mubr.bf16.gmra.mxu0 %v2523
    %v2929 = vpop.f32.mrf.mxu0
    %v2930 = vadd.f32 0.0, %v2929
    %v2931 = vpop.f32.mrf.mxu0
    %v2932 = vpop.f32.mrf.mxu0
    %v2933 = vadd.f32 0.0, %v2932
    %v2934 = vpop.f32.mrf.mxu0
    %2935 = vmatprep.mubr.bf16.mxu0 %v2526
    %2936 = vmatmul.mubr.bf16.gmra.mxu0 %v2525
    %v2937 = vpop.f32.mrf.mxu0
    %v2938 = vadd.f32 0.0, %v2937
    %v2939 = vpop.f32.mrf.mxu0
    %v2940 = vpop.f32.mrf.mxu0
    %v2941 = vadd.f32 0.0, %v2940
    %v2942 = vpop.f32.mrf.mxu0
    %2943 = vdwg.mxu0
    %v2944 = vpack.c.bf16 %v2693, %v2690
    %v2945 = vpack.c.bf16 %v2701, %v2698
    %v2946 = vpack.c.bf16 %v2709, %v2706
    %v2947 = vpack.c.bf16 %v2717, %v2714
    %v2948 = vpack.c.bf16 %v2725, %v2722
    %v2949 = vpack.c.bf16 %v2733, %v2730
    %v2950 = vpack.c.bf16 %v2741, %v2738
    %v2951 = vpack.c.bf16 %v2749, %v2746
    %v2952 = vpack.c.bf16 %v2757, %v2754
    %v2953 = vpack.c.bf16 %v2765, %v2762
    %v2954 = vpack.c.bf16 %v2773, %v2770
    %v2955 = vpack.c.bf16 %v2781, %v2778
    %v2956 = vpack.c.bf16 %v2789, %v2786
    %v2957 = vpack.c.bf16 %v2797, %v2794
    %v2958 = vpack.c.bf16 %v2805, %v2802
    %v2959 = vpack.c.bf16 %v2813, %v2810
    %v2960 = vpack.c.bf16 %v2821, %v2818
    %v2961 = vpack.c.bf16 %v2829, %v2826
    %v2962 = vpack.c.bf16 %v2837, %v2834
    %v2963 = vpack.c.bf16 %v2845, %v2842
    %v2964 = vpack.c.bf16 %v2853, %v2850
    %v2965 = vpack.c.bf16 %v2861, %v2858
    %v2966 = vpack.c.bf16 %v2869, %v2866
    %v2967 = vpack.c.bf16 %v2877, %v2874
    %v2968 = vpack.c.bf16 %v2885, %v2882
    %v2969 = vpack.c.bf16 %v2893, %v2890
    %v2970 = vpack.c.bf16 %v2901, %v2898
    %v2971 = vpack.c.bf16 %v2909, %v2906
    %v2972 = vpack.c.bf16 %v2917, %v2914
    %v2973 = vpack.c.bf16 %v2925, %v2922
    %v2974 = vpack.c.bf16 %v2933, %v2930
    %v2975 = vpack.c.bf16 %v2941, %v2938
    %v2976 = vld [vmem:[%s5] sm:$0x1]
    %v2978 = vlaneseq
    %v2979 = vshrl.u32 %v2978, 7
    %v2980 = vsub.s32 0, %v2979
    %v2981 = vrot.slane %v2976, %v2980
    %2983 = vmatprep.subr.bf16.mxu0 0
    %2984 = vmatpush1.bf16.msra.mxu0 %v2951
    %2985 = vmatprep.subr.bf16.mxu0 0
    %2986 = vmatpush1.bf16.msra.mxu0 %v2950
    %2987 = vmatprep.subr.bf16.mxu0 0
    %2988 = vmatpush1.bf16.msra.mxu0 %v2949
    %2989 = vmatprep.subr.bf16.mxu0 0
    %2990 = vmatpush1.bf16.msra.mxu0 %v2948
    %2991 = vmatprep.subr.bf16.mxu0 0
    %2992 = vmatpush1.bf16.msra.mxu0 %v2947
    %2993 = vmatprep.subr.bf16.mxu0 0
    %2994 = vmatpush1.bf16.msra.mxu0 %v2946
    %2995 = vmatprep.subr.bf16.mxu0 0
    %2996 = vmatpush1.bf16.msra.mxu0 %v2945
    %2997 = vmatprep.subr.bf16.mxu0 0
    %2998 = vmatpush1.bf16.msra.mxu0 %v2944
    %2999 = vmatprep.subr.bf16.mxu0 0
    %3000 = vmatpush2.bf16.msra.mxu0 %v2959
    %3001 = vmatprep.subr.bf16.mxu0 0
    %3002 = vmatpush2.bf16.msra.mxu0 %v2958
    %3003 = vmatprep.subr.bf16.mxu0 0
    %3004 = vmatpush2.bf16.msra.mxu0 %v2957
    %3005 = vmatprep.subr.bf16.mxu0 0
    %3006 = vmatpush2.bf16.msra.mxu0 %v2956
    %3007 = vmatprep.subr.bf16.mxu0 0
    %3008 = vmatpush2.bf16.msra.mxu0 %v2955
    %3009 = vmatprep.subr.bf16.mxu0 0
    %3010 = vmatpush2.bf16.msra.mxu0 %v2954
    %3011 = vmatprep.subr.bf16.mxu0 0
    %3012 = vmatpush2.bf16.msra.mxu0 %v2953
    %3013 = vmatprep.subr.bf16.mxu0 0
    %3014 = vmatpush2.bf16.msra.mxu0 %v2952
    %3015 = vmatprep.mubr.bf16.mxu0 %v1374
    %3016 = vmatmul.mubr.bf16.gmra.mxu0 %v1373
    %v3017 = vpop.f32.mrf.mxu0
    %v3018 = vadd.f32 %v2981, %v3017
    %v3019 = vpop.f32.mrf.mxu0
    %v3020 = vpop.f32.mrf.mxu0
    %v3021 = vadd.f32 %v2981, %v3020
    %v3022 = vpop.f32.mrf.mxu0
    %3023 = vmatprep.mubr.bf16.mxu0 %v1378
    %3024 = vmatmul.mubr.bf16.gmra.mxu0 %v1377
    %v3025 = vpop.f32.mrf.mxu0
    %v3026 = vadd.f32 %v2981, %v3025
    %v3027 = vpop.f32.mrf.mxu0
    %v3028 = vpop.f32.mrf.mxu0
    %v3029 = vadd.f32 %v2981, %v3028
    %v3030 = vpop.f32.mrf.mxu0
    %3031 = vmatprep.mubr.bf16.mxu0 %v1382
    %3032 = vmatmul.mubr.bf16.gmra.mxu0 %v1381
    %v3033 = vpop.f32.mrf.mxu0
    %v3034 = vadd.f32 %v2981, %v3033
    %v3035 = vpop.f32.mrf.mxu0
    %v3036 = vpop.f32.mrf.mxu0
    %v3037 = vadd.f32 %v2981, %v3036
    %v3038 = vpop.f32.mrf.mxu0
    %3039 = vmatprep.mubr.bf16.mxu0 %v1386
    %3040 = vmatmul.mubr.bf16.gmra.mxu0 %v1385
    %v3041 = vpop.f32.mrf.mxu0
    %v3042 = vadd.f32 %v2981, %v3041
    %v3043 = vpop.f32.mrf.mxu0
    %v3044 = vpop.f32.mrf.mxu0
    %v3045 = vadd.f32 %v2981, %v3044
    %v3046 = vpop.f32.mrf.mxu0
    %3047 = vmatprep.mubr.bf16.mxu0 %v1390
    %3048 = vmatmul.mubr.bf16.gmra.mxu0 %v1389
    %v3049 = vpop.f32.mrf.mxu0
    %v3050 = vadd.f32 %v2981, %v3049
    %v3051 = vpop.f32.mrf.mxu0
    %v3052 = vpop.f32.mrf.mxu0
    %v3053 = vadd.f32 %v2981, %v3052
    %v3054 = vpop.f32.mrf.mxu0
    %3055 = vmatprep.mubr.bf16.mxu0 %v1394
    %3056 = vmatmul.mubr.bf16.gmra.mxu0 %v1393
    %v3057 = vpop.f32.mrf.mxu0
    %v3058 = vadd.f32 %v2981, %v3057
    %v3059 = vpop.f32.mrf.mxu0
    %v3060 = vpop.f32.mrf.mxu0
    %v3061 = vadd.f32 %v2981, %v3060
    %v3062 = vpop.f32.mrf.mxu0
    %3063 = vmatprep.mubr.bf16.mxu0 %v1398
    %3064 = vmatmul.mubr.bf16.gmra.mxu0 %v1397
    %v3065 = vpop.f32.mrf.mxu0
    %v3066 = vadd.f32 %v2981, %v3065
    %v3067 = vpop.f32.mrf.mxu0
    %v3068 = vpop.f32.mrf.mxu0
    %v3069 = vadd.f32 %v2981, %v3068
    %v3070 = vpop.f32.mrf.mxu0
    %3071 = vmatprep.mubr.bf16.mxu0 %v1402
    %3072 = vmatmul.mubr.bf16.gmra.mxu0 %v1401
    %v3073 = vpop.f32.mrf.mxu0
    %v3074 = vadd.f32 %v2981, %v3073
    %v3075 = vpop.f32.mrf.mxu0
    %v3076 = vpop.f32.mrf.mxu0
    %v3077 = vadd.f32 %v2981, %v3076
    %v3078 = vpop.f32.mrf.mxu0
    %3079 = vmatprep.mubr.bf16.mxu0 %v1406
    %3080 = vmatmul.mubr.bf16.gmra.mxu0 %v1405
    %v3081 = vpop.f32.mrf.mxu0
    %v3082 = vadd.f32 %v2981, %v3081
    %v3083 = vpop.f32.mrf.mxu0
    %v3084 = vpop.f32.mrf.mxu0
    %v3085 = vadd.f32 %v2981, %v3084
    %v3086 = vpop.f32.mrf.mxu0
    %3087 = vmatprep.mubr.bf16.mxu0 %v1410
    %3088 = vmatmul.mubr.bf16.gmra.mxu0 %v1409
    %v3089 = vpop.f32.mrf.mxu0
    %v3090 = vadd.f32 %v2981, %v3089
    %v3091 = vpop.f32.mrf.mxu0
    %v3092 = vpop.f32.mrf.mxu0
    %v3093 = vadd.f32 %v2981, %v3092
    %v3094 = vpop.f32.mrf.mxu0
    %3095 = vmatprep.mubr.bf16.mxu0 %v1414
    %3096 = vmatmul.mubr.bf16.gmra.mxu0 %v1413
    %v3097 = vpop.f32.mrf.mxu0
    %v3098 = vadd.f32 %v2981, %v3097
    %v3099 = vpop.f32.mrf.mxu0
    %v3100 = vpop.f32.mrf.mxu0
    %v3101 = vadd.f32 %v2981, %v3100
    %v3102 = vpop.f32.mrf.mxu0
    %3103 = vmatprep.mubr.bf16.mxu0 %v1418
    %3104 = vmatmul.mubr.bf16.gmra.mxu0 %v1417
    %v3105 = vpop.f32.mrf.mxu0
    %v3106 = vadd.f32 %v2981, %v3105
    %v3107 = vpop.f32.mrf.mxu0
    %v3108 = vpop.f32.mrf.mxu0
    %v3109 = vadd.f32 %v2981, %v3108
    %v3110 = vpop.f32.mrf.mxu0
    %3111 = vmatprep.mubr.bf16.mxu0 %v1422
    %3112 = vmatmul.mubr.bf16.gmra.mxu0 %v1421
    %v3113 = vpop.f32.mrf.mxu0
    %v3114 = vadd.f32 %v2981, %v3113
    %v3115 = vpop.f32.mrf.mxu0
    %v3116 = vpop.f32.mrf.mxu0
    %v3117 = vadd.f32 %v2981, %v3116
    %v3118 = vpop.f32.mrf.mxu0
    %3119 = vmatprep.mubr.bf16.mxu0 %v1426
    %3120 = vmatmul.mubr.bf16.gmra.mxu0 %v1425
    %v3121 = vpop.f32.mrf.mxu0
    %v3122 = vadd.f32 %v2981, %v3121
    %v3123 = vpop.f32.mrf.mxu0
    %v3124 = vpop.f32.mrf.mxu0
    %v3125 = vadd.f32 %v2981, %v3124
    %v3126 = vpop.f32.mrf.mxu0
    %3127 = vmatprep.mubr.bf16.mxu0 %v1430
    %3128 = vmatmul.mubr.bf16.gmra.mxu0 %v1429
    %v3129 = vpop.f32.mrf.mxu0
    %v3130 = vadd.f32 %v2981, %v3129
    %v3131 = vpop.f32.mrf.mxu0
    %v3132 = vpop.f32.mrf.mxu0
    %v3133 = vadd.f32 %v2981, %v3132
    %v3134 = vpop.f32.mrf.mxu0
    %3135 = vmatprep.mubr.bf16.mxu0 %v1434
    %3136 = vmatmul.mubr.bf16.gmra.mxu0 %v1433
    %v3137 = vpop.f32.mrf.mxu0
    %v3138 = vadd.f32 %v2981, %v3137
    %v3139 = vpop.f32.mrf.mxu0
    %v3140 = vpop.f32.mrf.mxu0
    %v3141 = vadd.f32 %v2981, %v3140
    %v3142 = vpop.f32.mrf.mxu0
    %3143 = vmatprep.mubr.bf16.mxu0 %v1438
    %3144 = vmatmul.mubr.bf16.gmra.mxu0 %v1437
    %v3145 = vpop.f32.mrf.mxu0
    %v3146 = vadd.f32 %v2981, %v3145
    %v3147 = vpop.f32.mrf.mxu0
    %v3148 = vpop.f32.mrf.mxu0
    %v3149 = vadd.f32 %v2981, %v3148
    %v3150 = vpop.f32.mrf.mxu0
    %3151 = vmatprep.mubr.bf16.mxu0 %v1442
    %3152 = vmatmul.mubr.bf16.gmra.mxu0 %v1441
    %v3153 = vpop.f32.mrf.mxu0
    %v3154 = vadd.f32 %v2981, %v3153
    %v3155 = vpop.f32.mrf.mxu0
    %v3156 = vpop.f32.mrf.mxu0
    %v3157 = vadd.f32 %v2981, %v3156
    %v3158 = vpop.f32.mrf.mxu0
    %3159 = vmatprep.mubr.bf16.mxu0 %v1446
    %3160 = vmatmul.mubr.bf16.gmra.mxu0 %v1445
    %v3161 = vpop.f32.mrf.mxu0
    %v3162 = vadd.f32 %v2981, %v3161
    %v3163 = vpop.f32.mrf.mxu0
    %v3164 = vpop.f32.mrf.mxu0
    %v3165 = vadd.f32 %v2981, %v3164
    %v3166 = vpop.f32.mrf.mxu0
    %3167 = vmatprep.mubr.bf16.mxu0 %v1450
    %3168 = vmatmul.mubr.bf16.gmra.mxu0 %v1449
    %v3169 = vpop.f32.mrf.mxu0
    %v3170 = vadd.f32 %v2981, %v3169
    %v3171 = vpop.f32.mrf.mxu0
    %v3172 = vpop.f32.mrf.mxu0
    %v3173 = vadd.f32 %v2981, %v3172
    %v3174 = vpop.f32.mrf.mxu0
    %3175 = vmatprep.mubr.bf16.mxu0 %v1454
    %3176 = vmatmul.mubr.bf16.gmra.mxu0 %v1453
    %v3177 = vpop.f32.mrf.mxu0
    %v3178 = vadd.f32 %v2981, %v3177
    %v3179 = vpop.f32.mrf.mxu0
    %v3180 = vpop.f32.mrf.mxu0
    %v3181 = vadd.f32 %v2981, %v3180
    %v3182 = vpop.f32.mrf.mxu0
    %3183 = vmatprep.mubr.bf16.mxu0 %v1458
    %3184 = vmatmul.mubr.bf16.gmra.mxu0 %v1457
    %v3185 = vpop.f32.mrf.mxu0
    %v3186 = vadd.f32 %v2981, %v3185
    %v3187 = vpop.f32.mrf.mxu0
    %v3188 = vpop.f32.mrf.mxu0
    %v3189 = vadd.f32 %v2981, %v3188
    %v3190 = vpop.f32.mrf.mxu0
    %3191 = vmatprep.mubr.bf16.mxu0 %v1462
    %3192 = vmatmul.mubr.bf16.gmra.mxu0 %v1461
    %v3193 = vpop.f32.mrf.mxu0
    %v3194 = vadd.f32 %v2981, %v3193
    %v3195 = vpop.f32.mrf.mxu0
    %v3196 = vpop.f32.mrf.mxu0
    %v3197 = vadd.f32 %v2981, %v3196
    %v3198 = vpop.f32.mrf.mxu0
    %3199 = vmatprep.mubr.bf16.mxu0 %v1466
    %3200 = vmatmul.mubr.bf16.gmra.mxu0 %v1465
    %v3201 = vpop.f32.mrf.mxu0
    %v3202 = vadd.f32 %v2981, %v3201
    %v3203 = vpop.f32.mrf.mxu0
    %v3204 = vpop.f32.mrf.mxu0
    %v3205 = vadd.f32 %v2981, %v3204
    %v3206 = vpop.f32.mrf.mxu0
    %3207 = vmatprep.mubr.bf16.mxu0 %v1470
    %3208 = vmatmul.mubr.bf16.gmra.mxu0 %v1469
    %v3209 = vpop.f32.mrf.mxu0
    %v3210 = vadd.f32 %v2981, %v3209
    %v3211 = vpop.f32.mrf.mxu0
    %v3212 = vpop.f32.mrf.mxu0
    %v3213 = vadd.f32 %v2981, %v3212
    %v3214 = vpop.f32.mrf.mxu0
    %3215 = vmatprep.mubr.bf16.mxu0 %v1474
    %3216 = vmatmul.mubr.bf16.gmra.mxu0 %v1473
    %v3217 = vpop.f32.mrf.mxu0
    %v3218 = vadd.f32 %v2981, %v3217
    %v3219 = vpop.f32.mrf.mxu0
    %v3220 = vpop.f32.mrf.mxu0
    %v3221 = vadd.f32 %v2981, %v3220
    %v3222 = vpop.f32.mrf.mxu0
    %3223 = vmatprep.mubr.bf16.mxu0 %v1478
    %3224 = vmatmul.mubr.bf16.gmra.mxu0 %v1477
    %v3225 = vpop.f32.mrf.mxu0
    %v3226 = vadd.f32 %v2981, %v3225
    %v3227 = vpop.f32.mrf.mxu0
    %v3228 = vpop.f32.mrf.mxu0
    %v3229 = vadd.f32 %v2981, %v3228
    %v3230 = vpop.f32.mrf.mxu0
    %3231 = vmatprep.mubr.bf16.mxu0 %v1482
    %3232 = vmatmul.mubr.bf16.gmra.mxu0 %v1481
    %v3233 = vpop.f32.mrf.mxu0
    %v3234 = vadd.f32 %v2981, %v3233
    %v3235 = vpop.f32.mrf.mxu0
    %v3236 = vpop.f32.mrf.mxu0
    %v3237 = vadd.f32 %v2981, %v3236
    %v3238 = vpop.f32.mrf.mxu0
    %3239 = vmatprep.mubr.bf16.mxu0 %v1486
    %3240 = vmatmul.mubr.bf16.gmra.mxu0 %v1485
    %v3241 = vpop.f32.mrf.mxu0
    %v3242 = vadd.f32 %v2981, %v3241
    %v3243 = vpop.f32.mrf.mxu0
    %v3244 = vpop.f32.mrf.mxu0
    %v3245 = vadd.f32 %v2981, %v3244
    %v3246 = vpop.f32.mrf.mxu0
    %3247 = vmatprep.mubr.bf16.mxu0 %v1490
    %3248 = vmatmul.mubr.bf16.gmra.mxu0 %v1489
    %v3249 = vpop.f32.mrf.mxu0
    %v3250 = vadd.f32 %v2981, %v3249
    %v3251 = vpop.f32.mrf.mxu0
    %v3252 = vpop.f32.mrf.mxu0
    %v3253 = vadd.f32 %v2981, %v3252
    %v3254 = vpop.f32.mrf.mxu0
    %3255 = vmatprep.mubr.bf16.mxu0 %v1494
    %3256 = vmatmul.mubr.bf16.gmra.mxu0 %v1493
    %v3257 = vpop.f32.mrf.mxu0
    %v3258 = vadd.f32 %v2981, %v3257
    %v3259 = vpop.f32.mrf.mxu0
    %v3260 = vpop.f32.mrf.mxu0
    %v3261 = vadd.f32 %v2981, %v3260
    %v3262 = vpop.f32.mrf.mxu0
    %3263 = vmatprep.mubr.bf16.mxu0 %v1498
    %3264 = vmatmul.mubr.bf16.gmra.mxu0 %v1497
    %v3265 = vpop.f32.mrf.mxu0
    %v3266 = vadd.f32 %v2981, %v3265
    %v3267 = vpop.f32.mrf.mxu0
    %v3268 = vpop.f32.mrf.mxu0
    %v3269 = vadd.f32 %v2981, %v3268
    %v3270 = vpop.f32.mrf.mxu0
    %3271 = vdwg.mxu0
    %3272 = vmatprep.subr.bf16.mxu0 0
    %3273 = vmatpush1.bf16.msra.mxu0 %v2967
    %3274 = vmatprep.subr.bf16.mxu0 0
    %3275 = vmatpush1.bf16.msra.mxu0 %v2966
    %3276 = vmatprep.subr.bf16.mxu0 0
    %3277 = vmatpush1.bf16.msra.mxu0 %v2965
    %3278 = vmatprep.subr.bf16.mxu0 0
    %3279 = vmatpush1.bf16.msra.mxu0 %v2964
    %3280 = vmatprep.subr.bf16.mxu0 0
    %3281 = vmatpush1.bf16.msra.mxu0 %v2963
    %3282 = vmatprep.subr.bf16.mxu0 0
    %3283 = vmatpush1.bf16.msra.mxu0 %v2962
    %3284 = vmatprep.subr.bf16.mxu0 0
    %3285 = vmatpush1.bf16.msra.mxu0 %v2961
    %3286 = vmatprep.subr.bf16.mxu0 0
    %3287 = vmatpush1.bf16.msra.mxu0 %v2960
    %3288 = vmatprep.subr.bf16.mxu0 0
    %3289 = vmatpush2.bf16.msra.mxu0 %v2975
    %3290 = vmatprep.subr.bf16.mxu0 0
    %3291 = vmatpush2.bf16.msra.mxu0 %v2974
    %3292 = vmatprep.subr.bf16.mxu0 0
    %3293 = vmatpush2.bf16.msra.mxu0 %v2973
    %3294 = vmatprep.subr.bf16.mxu0 0
    %3295 = vmatpush2.bf16.msra.mxu0 %v2972
    %3296 = vmatprep.subr.bf16.mxu0 0
    %3297 = vmatpush2.bf16.msra.mxu0 %v2971
    %3298 = vmatprep.subr.bf16.mxu0 0
    %3299 = vmatpush2.bf16.msra.mxu0 %v2970
    %3300 = vmatprep.subr.bf16.mxu0 0
    %3301 = vmatpush2.bf16.msra.mxu0 %v2969
    %3302 = vmatprep.subr.bf16.mxu0 0
    %3303 = vmatpush2.bf16.msra.mxu0 %v2968
    %3304 = vmatprep.mubr.bf16.mxu0 %v1376
    %3305 = vmatmul.mubr.bf16.gmra.mxu0 %v1375
    %v3306 = vpop.f32.mrf.mxu0
    %v3307 = vadd.f32 %v3018, %v3306
    %v3308 = vpop.f32.mrf.mxu0
    %v3309 = vpop.f32.mrf.mxu0
    %v3310 = vadd.f32 %v3021, %v3309
    %v3311 = vpop.f32.mrf.mxu0
    %3312 = vmatprep.mubr.bf16.mxu0 %v1380
    %3313 = vmatmul.mubr.bf16.gmra.mxu0 %v1379
    %v3314 = vpop.f32.mrf.mxu0
    %v3315 = vadd.f32 %v3026, %v3314
    %v3316 = vpop.f32.mrf.mxu0
    %v3317 = vpop.f32.mrf.mxu0
    %v3318 = vadd.f32 %v3029, %v3317
    %v3319 = vpop.f32.mrf.mxu0
    %3320 = vmatprep.mubr.bf16.mxu0 %v1384
    %3321 = vmatmul.mubr.bf16.gmra.mxu0 %v1383
    %v3322 = vpop.f32.mrf.mxu0
    %v3323 = vadd.f32 %v3034, %v3322
    %v3324 = vpop.f32.mrf.mxu0
    %v3325 = vpop.f32.mrf.mxu0
    %v3326 = vadd.f32 %v3037, %v3325
    %v3327 = vpop.f32.mrf.mxu0
    %3328 = vmatprep.mubr.bf16.mxu0 %v1388
    %3329 = vmatmul.mubr.bf16.gmra.mxu0 %v1387
    %v3330 = vpop.f32.mrf.mxu0
    %v3331 = vadd.f32 %v3042, %v3330
    %v3332 = vpop.f32.mrf.mxu0
    %v3333 = vpop.f32.mrf.mxu0
    %v3334 = vadd.f32 %v3045, %v3333
    %v3335 = vpop.f32.mrf.mxu0
    %3336 = vmatprep.mubr.bf16.mxu0 %v1392
    %3337 = vmatmul.mubr.bf16.gmra.mxu0 %v1391
    %v3338 = vpop.f32.mrf.mxu0
    %v3339 = vadd.f32 %v3050, %v3338
    %v3340 = vpop.f32.mrf.mxu0
    %v3341 = vpop.f32.mrf.mxu0
    %v3342 = vadd.f32 %v3053, %v3341
    %v3343 = vpop.f32.mrf.mxu0
    %3344 = vmatprep.mubr.bf16.mxu0 %v1396
    %3345 = vmatmul.mubr.bf16.gmra.mxu0 %v1395
    %v3346 = vpop.f32.mrf.mxu0
    %v3347 = vadd.f32 %v3058, %v3346
    %v3348 = vpop.f32.mrf.mxu0
    %v3349 = vpop.f32.mrf.mxu0
    %v3350 = vadd.f32 %v3061, %v3349
    %v3351 = vpop.f32.mrf.mxu0
    %3352 = vmatprep.mubr.bf16.mxu0 %v1400
    %3353 = vmatmul.mubr.bf16.gmra.mxu0 %v1399
    %v3354 = vpop.f32.mrf.mxu0
    %v3355 = vadd.f32 %v3066, %v3354
    %v3356 = vpop.f32.mrf.mxu0
    %v3357 = vpop.f32.mrf.mxu0
    %v3358 = vadd.f32 %v3069, %v3357
    %v3359 = vpop.f32.mrf.mxu0
    %3360 = vmatprep.mubr.bf16.mxu0 %v1404
    %3361 = vmatmul.mubr.bf16.gmra.mxu0 %v1403
    %v3362 = vpop.f32.mrf.mxu0
    %v3363 = vadd.f32 %v3074, %v3362
    %v3364 = vpop.f32.mrf.mxu0
    %v3365 = vpop.f32.mrf.mxu0
    %v3366 = vadd.f32 %v3077, %v3365
    %v3367 = vpop.f32.mrf.mxu0
    %3368 = vmatprep.mubr.bf16.mxu0 %v1408
    %3369 = vmatmul.mubr.bf16.gmra.mxu0 %v1407
    %v3370 = vpop.f32.mrf.mxu0
    %v3371 = vadd.f32 %v3082, %v3370
    %v3372 = vpop.f32.mrf.mxu0
    %v3373 = vpop.f32.mrf.mxu0
    %v3374 = vadd.f32 %v3085, %v3373
    %v3375 = vpop.f32.mrf.mxu0
    %3376 = vmatprep.mubr.bf16.mxu0 %v1412
    %3377 = vmatmul.mubr.bf16.gmra.mxu0 %v1411
    %v3378 = vpop.f32.mrf.mxu0
    %v3379 = vadd.f32 %v3090, %v3378
    %v3380 = vpop.f32.mrf.mxu0
    %v3381 = vpop.f32.mrf.mxu0
    %v3382 = vadd.f32 %v3093, %v3381
    %v3383 = vpop.f32.mrf.mxu0
    %3384 = vmatprep.mubr.bf16.mxu0 %v1416
    %3385 = vmatmul.mubr.bf16.gmra.mxu0 %v1415
    %v3386 = vpop.f32.mrf.mxu0
    %v3387 = vadd.f32 %v3098, %v3386
    %v3388 = vpop.f32.mrf.mxu0
    %v3389 = vpop.f32.mrf.mxu0
    %v3390 = vadd.f32 %v3101, %v3389
    %v3391 = vpop.f32.mrf.mxu0
    %3392 = vmatprep.mubr.bf16.mxu0 %v1420
    %3393 = vmatmul.mubr.bf16.gmra.mxu0 %v1419
    %v3394 = vpop.f32.mrf.mxu0
    %v3395 = vadd.f32 %v3106, %v3394
    %v3396 = vpop.f32.mrf.mxu0
    %v3397 = vpop.f32.mrf.mxu0
    %v3398 = vadd.f32 %v3109, %v3397
    %v3399 = vpop.f32.mrf.mxu0
    %3400 = vmatprep.mubr.bf16.mxu0 %v1424
    %3401 = vmatmul.mubr.bf16.gmra.mxu0 %v1423
    %v3402 = vpop.f32.mrf.mxu0
    %v3403 = vadd.f32 %v3114, %v3402
    %v3404 = vpop.f32.mrf.mxu0
    %v3405 = vpop.f32.mrf.mxu0
    %v3406 = vadd.f32 %v3117, %v3405
    %v3407 = vpop.f32.mrf.mxu0
    %3408 = vmatprep.mubr.bf16.mxu0 %v1428
    %3409 = vmatmul.mubr.bf16.gmra.mxu0 %v1427
    %v3410 = vpop.f32.mrf.mxu0
    %v3411 = vadd.f32 %v3122, %v3410
    %v3412 = vpop.f32.mrf.mxu0
    %v3413 = vpop.f32.mrf.mxu0
    %v3414 = vadd.f32 %v3125, %v3413
    %v3415 = vpop.f32.mrf.mxu0
    %3416 = vmatprep.mubr.bf16.mxu0 %v1432
    %3417 = vmatmul.mubr.bf16.gmra.mxu0 %v1431
    %v3418 = vpop.f32.mrf.mxu0
    %v3419 = vadd.f32 %v3130, %v3418
    %v3420 = vpop.f32.mrf.mxu0
    %v3421 = vpop.f32.mrf.mxu0
    %v3422 = vadd.f32 %v3133, %v3421
    %v3423 = vpop.f32.mrf.mxu0
    %3424 = vmatprep.mubr.bf16.mxu0 %v1436
    %3425 = vmatmul.mubr.bf16.gmra.mxu0 %v1435
    %v3426 = vpop.f32.mrf.mxu0
    %v3427 = vadd.f32 %v3138, %v3426
    %v3428 = vpop.f32.mrf.mxu0
    %v3429 = vpop.f32.mrf.mxu0
    %v3430 = vadd.f32 %v3141, %v3429
    %v3431 = vpop.f32.mrf.mxu0
    %3432 = vmatprep.mubr.bf16.mxu0 %v1440
    %3433 = vmatmul.mubr.bf16.gmra.mxu0 %v1439
    %v3434 = vpop.f32.mrf.mxu0
    %v3435 = vadd.f32 %v3146, %v3434
    %v3436 = vpop.f32.mrf.mxu0
    %v3437 = vpop.f32.mrf.mxu0
    %v3438 = vadd.f32 %v3149, %v3437
    %v3439 = vpop.f32.mrf.mxu0
    %3440 = vmatprep.mubr.bf16.mxu0 %v1444
    %3441 = vmatmul.mubr.bf16.gmra.mxu0 %v1443
    %v3442 = vpop.f32.mrf.mxu0
    %v3443 = vadd.f32 %v3154, %v3442
    %v3444 = vpop.f32.mrf.mxu0
    %v3445 = vpop.f32.mrf.mxu0
    %v3446 = vadd.f32 %v3157, %v3445
    %v3447 = vpop.f32.mrf.mxu0
    %3448 = vmatprep.mubr.bf16.mxu0 %v1448
    %3449 = vmatmul.mubr.bf16.gmra.mxu0 %v1447
    %v3450 = vpop.f32.mrf.mxu0
    %v3451 = vadd.f32 %v3162, %v3450
    %v3452 = vpop.f32.mrf.mxu0
    %v3453 = vpop.f32.mrf.mxu0
    %v3454 = vadd.f32 %v3165, %v3453
    %v3455 = vpop.f32.mrf.mxu0
    %3456 = vmatprep.mubr.bf16.mxu0 %v1452
    %3457 = vmatmul.mubr.bf16.gmra.mxu0 %v1451
    %v3458 = vpop.f32.mrf.mxu0
    %v3459 = vadd.f32 %v3170, %v3458
    %v3460 = vpop.f32.mrf.mxu0
    %v3461 = vpop.f32.mrf.mxu0
    %v3462 = vadd.f32 %v3173, %v3461
    %v3463 = vpop.f32.mrf.mxu0
    %3464 = vmatprep.mubr.bf16.mxu0 %v1456
    %3465 = vmatmul.mubr.bf16.gmra.mxu0 %v1455
    %v3466 = vpop.f32.mrf.mxu0
    %v3467 = vadd.f32 %v3178, %v3466
    %v3468 = vpop.f32.mrf.mxu0
    %v3469 = vpop.f32.mrf.mxu0
    %v3470 = vadd.f32 %v3181, %v3469
    %v3471 = vpop.f32.mrf.mxu0
    %3472 = vmatprep.mubr.bf16.mxu0 %v1460
    %3473 = vmatmul.mubr.bf16.gmra.mxu0 %v1459
    %v3474 = vpop.f32.mrf.mxu0
    %v3475 = vadd.f32 %v3186, %v3474
    %v3476 = vpop.f32.mrf.mxu0
    %v3477 = vpop.f32.mrf.mxu0
    %v3478 = vadd.f32 %v3189, %v3477
    %v3479 = vpop.f32.mrf.mxu0
    %3480 = vmatprep.mubr.bf16.mxu0 %v1464
    %3481 = vmatmul.mubr.bf16.gmra.mxu0 %v1463
    %v3482 = vpop.f32.mrf.mxu0
    %v3483 = vadd.f32 %v3194, %v3482
    %v3484 = vpop.f32.mrf.mxu0
    %v3485 = vpop.f32.mrf.mxu0
    %v3486 = vadd.f32 %v3197, %v3485
    %v3487 = vpop.f32.mrf.mxu0
    %3488 = vmatprep.mubr.bf16.mxu0 %v1468
    %3489 = vmatmul.mubr.bf16.gmra.mxu0 %v1467
    %v3490 = vpop.f32.mrf.mxu0
    %v3491 = vadd.f32 %v3202, %v3490
    %v3492 = vpop.f32.mrf.mxu0
    %v3493 = vpop.f32.mrf.mxu0
    %v3494 = vadd.f32 %v3205, %v3493
    %v3495 = vpop.f32.mrf.mxu0
    %3496 = vmatprep.mubr.bf16.mxu0 %v1472
    %3497 = vmatmul.mubr.bf16.gmra.mxu0 %v1471
    %v3498 = vpop.f32.mrf.mxu0
    %v3499 = vadd.f32 %v3210, %v3498
    %v3500 = vpop.f32.mrf.mxu0
    %v3501 = vpop.f32.mrf.mxu0
    %v3502 = vadd.f32 %v3213, %v3501
    %v3503 = vpop.f32.mrf.mxu0
    %3504 = vmatprep.mubr.bf16.mxu0 %v1476
    %3505 = vmatmul.mubr.bf16.gmra.mxu0 %v1475
    %v3506 = vpop.f32.mrf.mxu0
    %v3507 = vadd.f32 %v3218, %v3506
    %v3508 = vpop.f32.mrf.mxu0
    %v3509 = vpop.f32.mrf.mxu0
    %v3510 = vadd.f32 %v3221, %v3509
    %v3511 = vpop.f32.mrf.mxu0
    %3512 = vmatprep.mubr.bf16.mxu0 %v1480
    %3513 = vmatmul.mubr.bf16.gmra.mxu0 %v1479
    %v3514 = vpop.f32.mrf.mxu0
    %v3515 = vadd.f32 %v3226, %v3514
    %v3516 = vpop.f32.mrf.mxu0
    %v3517 = vpop.f32.mrf.mxu0
    %v3518 = vadd.f32 %v3229, %v3517
    %v3519 = vpop.f32.mrf.mxu0
    %3520 = vmatprep.mubr.bf16.mxu0 %v1484
    %3521 = vmatmul.mubr.bf16.gmra.mxu0 %v1483
    %v3522 = vpop.f32.mrf.mxu0
    %v3523 = vadd.f32 %v3234, %v3522
    %v3524 = vpop.f32.mrf.mxu0
    %v3525 = vpop.f32.mrf.mxu0
    %v3526 = vadd.f32 %v3237, %v3525
    %v3527 = vpop.f32.mrf.mxu0
    %3528 = vmatprep.mubr.bf16.mxu0 %v1488
    %3529 = vmatmul.mubr.bf16.gmra.mxu0 %v1487
    %v3530 = vpop.f32.mrf.mxu0
    %v3531 = vadd.f32 %v3242, %v3530
    %v3532 = vpop.f32.mrf.mxu0
    %v3533 = vpop.f32.mrf.mxu0
    %v3534 = vadd.f32 %v3245, %v3533
    %v3535 = vpop.f32.mrf.mxu0
    %3536 = vmatprep.mubr.bf16.mxu0 %v1492
    %3537 = vmatmul.mubr.bf16.gmra.mxu0 %v1491
    %v3538 = vpop.f32.mrf.mxu0
    %v3539 = vadd.f32 %v3250, %v3538
    %v3540 = vpop.f32.mrf.mxu0
    %v3541 = vpop.f32.mrf.mxu0
    %v3542 = vadd.f32 %v3253, %v3541
    %v3543 = vpop.f32.mrf.mxu0
    %3544 = vmatprep.mubr.bf16.mxu0 %v1496
    %3545 = vmatmul.mubr.bf16.gmra.mxu0 %v1495
    %v3546 = vpop.f32.mrf.mxu0
    %v3547 = vadd.f32 %v3258, %v3546
    %v3548 = vpop.f32.mrf.mxu0
    %v3549 = vpop.f32.mrf.mxu0
    %v3550 = vadd.f32 %v3261, %v3549
    %v3551 = vpop.f32.mrf.mxu0
    %3552 = vmatprep.mubr.bf16.mxu0 %v1500
    %3553 = vmatmul.mubr.bf16.gmra.mxu0 %v1499
    %v3554 = vpop.f32.mrf.mxu0
    %v3555 = vadd.f32 %v3266, %v3554
    %v3556 = vpop.f32.mrf.mxu0
    %v3557 = vpop.f32.mrf.mxu0
    %v3558 = vadd.f32 %v3269, %v3557
    %v3559 = vpop.f32.mrf.mxu0
    %3560 = vdwg.mxu0
    %3561 = vst [vmem:[#allocation10] sm:$0xff] %v3307
    %3562 = vst [vmem:[#allocation10 + $0x8] sm:$0xff] %v3310
    %3563 = vst [vmem:[#allocation10 + $0x10] sm:$0xff] %v3315
    %3564 = vst [vmem:[#allocation10 + $0x18] sm:$0xff] %v3318
    %3565 = vst [vmem:[#allocation10 + $0x20] sm:$0xff] %v3323
    %3566 = vst [vmem:[#allocation10 + $0x28] sm:$0xff] %v3326
    %3567 = vst [vmem:[#allocation10 + $0x30] sm:$0xff] %v3331
    %3568 = vst [vmem:[#allocation10 + $0x38] sm:$0xff] %v3334
    %3569 = vst [vmem:[#allocation10 + $0x40] sm:$0xff] %v3339
    %3570 = vst [vmem:[#allocation10 + $0x48] sm:$0xff] %v3342
    %3571 = vst [vmem:[#allocation10 + $0x50] sm:$0xff] %v3347
    %3572 = vst [vmem:[#allocation10 + $0x58] sm:$0xff] %v3350
    %3573 = vst [vmem:[#allocation10 + $0x60] sm:$0xff] %v3355
    %3574 = vst [vmem:[#allocation10 + $0x68] sm:$0xff] %v3358
    %3575 = vst [vmem:[#allocation10 + $0x70] sm:$0xff] %v3363
    %3576 = vst [vmem:[#allocation10 + $0x78] sm:$0xff] %v3366
    %3577 = vst [vmem:[#allocation10 + $0x80] sm:$0xff] %v3371
    %3578 = vst [vmem:[#allocation10 + $0x88] sm:$0xff] %v3374
    %3579 = vst [vmem:[#allocation10 + $0x90] sm:$0xff] %v3379
    %3580 = vst [vmem:[#allocation10 + $0x98] sm:$0xff] %v3382
    %3581 = vst [vmem:[#allocation10 + $0xa0] sm:$0xff] %v3387
    %3582 = vst [vmem:[#allocation10 + $0xa8] sm:$0xff] %v3390
    %3583 = vst [vmem:[#allocation10 + $0xb0] sm:$0xff] %v3395
    %3584 = vst [vmem:[#allocation10 + $0xb8] sm:$0xff] %v3398
    %3585 = vst [vmem:[#allocation10 + $0xc0] sm:$0xff] %v3403
    %3586 = vst [vmem:[#allocation10 + $0xc8] sm:$0xff] %v3406
    %3587 = vst [vmem:[#allocation10 + $0xd0] sm:$0xff] %v3411
    %3588 = vst [vmem:[#allocation10 + $0xd8] sm:$0xff] %v3414
    %3589 = vst [vmem:[#allocation10 + $0xe0] sm:$0xff] %v3419
    %3590 = vst [vmem:[#allocation10 + $0xe8] sm:$0xff] %v3422
    %3591 = vst [vmem:[#allocation10 + $0xf0] sm:$0xff] %v3427
    %3592 = vst [vmem:[#allocation10 + $0xf8] sm:$0xff] %v3430
    %3593 = vst [vmem:[#allocation10 + $0x100] sm:$0xff] %v3435
    %3594 = vst [vmem:[#allocation10 + $0x108] sm:$0xff] %v3438
    %3595 = vst [vmem:[#allocation10 + $0x110] sm:$0xff] %v3443
    %3596 = vst [vmem:[#allocation10 + $0x118] sm:$0xff] %v3446
    %3597 = vst [vmem:[#allocation10 + $0x120] sm:$0xff] %v3451
    %3598 = vst [vmem:[#allocation10 + $0x128] sm:$0xff] %v3454
    %3599 = vst [vmem:[#allocation10 + $0x130] sm:$0xff] %v3459
    %3600 = vst [vmem:[#allocation10 + $0x138] sm:$0xff] %v3462
    %3601 = vst [vmem:[#allocation10 + $0x140] sm:$0xff] %v3467
    %3602 = vst [vmem:[#allocation10 + $0x148] sm:$0xff] %v3470
    %3603 = vst [vmem:[#allocation10 + $0x150] sm:$0xff] %v3475
    %3604 = vst [vmem:[#allocation10 + $0x158] sm:$0xff] %v3478
    %3605 = vst [vmem:[#allocation10 + $0x160] sm:$0xff] %v3483
    %3606 = vst [vmem:[#allocation10 + $0x168] sm:$0xff] %v3486
    %3607 = vst [vmem:[#allocation10 + $0x170] sm:$0xff] %v3491
    %3608 = vst [vmem:[#allocation10 + $0x178] sm:$0xff] %v3494
    %3609 = vst [vmem:[#allocation10 + $0x180] sm:$0xff] %v3499
    %3610 = vst [vmem:[#allocation10 + $0x188] sm:$0xff] %v3502
    %3611 = vst [vmem:[#allocation10 + $0x190] sm:$0xff] %v3507
    %3612 = vst [vmem:[#allocation10 + $0x198] sm:$0xff] %v3510
    %3613 = vst [vmem:[#allocation10 + $0x1a0] sm:$0xff] %v3515
    %3614 = vst [vmem:[#allocation10 + $0x1a8] sm:$0xff] %v3518
    %3615 = vst [vmem:[#allocation10 + $0x1b0] sm:$0xff] %v3523
    %3616 = vst [vmem:[#allocation10 + $0x1b8] sm:$0xff] %v3526
    %3617 = vst [vmem:[#allocation10 + $0x1c0] sm:$0xff] %v3531
    %3618 = vst [vmem:[#allocation10 + $0x1c8] sm:$0xff] %v3534
    %3619 = vst [vmem:[#allocation10 + $0x1d0] sm:$0xff] %v3539
    %3620 = vst [vmem:[#allocation10 + $0x1d8] sm:$0xff] %v3542
    %3621 = vst [vmem:[#allocation10 + $0x1e0] sm:$0xff] %v3547
    %3622 = vst [vmem:[#allocation10 + $0x1e8] sm:$0xff] %v3550
    %3623 = vst [vmem:[#allocation10 + $0x1f0] sm:$0xff] %v3555
    %3624 = vst [vmem:[#allocation10 + $0x1f8] sm:$0xff] %v3558
    // Predicated region
    $region42: #{tpu_custom_call.1} parent=1 // pred_check
      _
    $region43: #{tpu_custom_call.1} parent=1 // pred_check_branch
      %3626 = sbr.rel (0) target = $region45
    $region44: #{tpu_custom_call.1} parent=1 // pred_region
      %s3628 = ssub.s32 8192, 8192
      %3629 = vsyncadd [#allocation4], %s3628
      %s3630 = sshll.u32 [#allocation10], 4
      %s3631 = int_to_ptr.vmem [resolvable:$true] %s3630
      %3636 = dma.vmem_to_hbm [thread:$0]  %s3631, 8192, %s6, [#allocation4], 128, 128, 8
    $region45: #{tpu_custom_call.1} parent=1 // pred_fallthru
      _
    // Predicated region
    $region46: #{tpu_custom_call.1} parent=1 // pred_check
      _
    $region47: #{tpu_custom_call.1} parent=1 // pred_check_branch
      %3638 = sbr.rel (0) target = $region49
    $region48: #{tpu_custom_call.1} parent=1 // pred_region
      %3639 = dma.done [#allocation4], 8192
    $region49: #{tpu_custom_call.1} parent=1 // pred_fallthru
      _
    %3640 = vsyncpa [#allocation3], 1
    %3641 = vsyncpa [#allocation6], 1
    %3642 = vsyncpa [#allocation9], 1
    %3643 = vsyncpa [#allocation4], 1

</llo_original>
